<compile_context>
chip_gen: v7x
topology: tpu7x:2x2x1
jax: 0.10.0
libtpu: 0.0.40
codegen_flags: <defaults>
</compile_context>

<pallas_src>
import functools

import jax
import jax.numpy as jnp
from jax import lax
from jax.experimental import pallas as pl
from jax.experimental.pallas import tpu as pltpu


def _round_up(x, m):
    return (x + m - 1) // m * m


def _pad_axis(a, axis, new_size):
    pad = new_size - a.shape[axis]
    if pad <= 0:
        return a
    widths = [(0, 0)] * a.ndim
    widths[axis] = (0, pad)
    return jnp.pad(a, widths)


def _pad_gate_chunks(a, axis, h, hp):
    """Pad an axis laid out as 4 gate chunks [i|f|g|o] of size h to hp each."""
    if h == hp:
        return a
    shape = list(a.shape)
    shape[axis:axis + 1] = [4, h]
    a = a.reshape(shape)
    a = _pad_axis(a, axis + 1, hp)
    shape2 = list(a.shape)
    shape2[axis:axis + 2] = [4 * hp]
    return a.reshape(shape2)


def _vmem_budget_bytes():
    """Generation-aware VMEM budget for the recurrent kernel."""
    try:
        cap = int(pltpu.get_tpu_info().vmem_capacity_bytes)
    except Exception:
        return 32 << 20          # conservative default: fits every generation
    if cap <= (64 << 20):        # v7x-class: 64 MiB physical per TensorCore
        return 48 << 20          # leave headroom for compiler internal scratch
    return 100 << 20             # v5e / v6e: 128 MiB physical


def _pick_block_t(T, b_p, hp, gx_bytes, out_bytes, w_bytes, budget,
                  max_block=128):
    """Largest time block whose pipelined VMEM footprint fits the budget."""
    fixed = (4 * hp * 4 * hp * w_bytes    # W_hh^T, both dirs, double-buffered
             + 4 * b_p * hp * 4           # h/c f32 state scratch (both dirs)
             + (2 << 20))                 # compiler internal scratch slack
    # gx + out tiles, both directions, double-buffered:
    per_t = 4 * b_p * hp * (4 * gx_bytes + out_bytes)
    avail = budget - fixed
    if avail < per_t:
        return 1
    return int(max(1, min(max_block, T, avail // per_t)))


def _bilstm_kernel(gxf_ref, gxb_ref, whf_ref, whb_ref, outf_ref, outb_ref,
                   hf_sc, cf_sc, hb_sc, cb_sc, *, hidden, block_t, unroll):
    """Interleaved fwd+bwd LSTM recurrence over one block of timesteps.

    Grid: (time_block,), marked "arbitrary" (state carried via scratch).

    gxf_ref/gxb_ref: (block_t, B, 4H)  precomputed x@W_ih^T + (b_ih + b_hh)
                     (backward block is fetched at the mirrored time index)
    whf_ref/whb_ref: (H, 4H)           W_hh^T per direction (resident)
    outf_ref/outb_ref: (block_t, B, H) hidden outputs for this time block
    h*_sc / c*_sc:   (B, H) f32        per-direction state, persists over grid
    """
    @pl.when(pl.program_id(0) == 0)
    def _():
        hf_sc[...] = jnp.zeros_like(hf_sc)
        cf_sc[...] = jnp.zeros_like(cf_sc)
        hb_sc[...] = jnp.zeros_like(hb_sc)
        cb_sc[...] = jnp.zeros_like(cb_sc)

    H = hidden
    whf = whf_ref[...]                    # loaded once per grid step
    whb = whb_ref[...]
    mxu_dtype = whf.dtype

    def cell(gx, h, c, whh):
        gates = gx.astype(jnp.float32) + jnp.dot(
            h.astype(mxu_dtype), whh, preferred_element_type=jnp.float32)
        # PyTorch gate order: input, forget, cell(g), output.  H is padded to
        # a multiple of 128, so these slices are lane-aligned vreg views.
        i_g = jax.nn.sigmoid(gates[:, 0 * H:1 * H])
        f_g = jax.nn.sigmoid(gates[:, 1 * H:2 * H])
        g_g = jnp.tanh(gates[:, 2 * H:3 * H])
        o_g = jax.nn.sigmoid(gates[:, 3 * H:4 * H])
        c_new = f_g * c + i_g * g_g
        h_new = o_g * jnp.tanh(c_new)
        return h_new, c_new

    def step(j, carry):
        h_f, c_f, h_b, c_b = carry
        jr = block_t - 1 - j
        # Two independent recurrences issued back-to-back: the scheduler can
        # overlap one direction's MXU push with the other's EUP/VPU work.
        h_f, c_f = cell(gxf_ref[j], h_f, c_f, whf)
        h_b, c_b = cell(gxb_ref[jr], h_b, c_b, whb)
        outf_ref[j] = h_f.astype(outf_ref.dtype)
        outb_ref[jr] = h_b.astype(outb_ref.dtype)
        return h_f, c_f, h_b, c_b

    carry = (hf_sc[...], cf_sc[...], hb_sc[...], cb_sc[...])
    h_f, c_f, h_b, c_b = lax.fori_loop(
        0, block_t, step, carry, unroll=max(1, min(unroll, block_t)))
    hf_sc[...] = h_f
    cf_sc[...] = c_f
    hb_sc[...] = h_b
    cb_sc[...] = c_b


def _run_bilstm(gx_f, gx_b, whh_f, whh_b, *, block_t, unroll, out_dtype,
                vmem_limit):
    """gx_*: (T, B, 4H); whh_*: (H, 4H). Returns (out_f, out_b): (T, B, H)."""
    T, B, G = gx_f.shape
    Hp = whh_f.shape[0]
    assert G == 4 * Hp

    # Pad time to a multiple of block_t.  Zero pre-activation padding keeps
    # h/c exactly zero through the padded region (sigmoid(0)=0.5, tanh(0)=0),
    # so the backward scan enters the valid region with a zero state.
    T_pad = _round_up(T, block_t)
    if T_pad != T:
        tp = ((0, T_pad - T), (0, 0), (0, 0))
        gx_f = jnp.pad(gx_f, tp)
        gx_b = jnp.pad(gx_b, tp)
    num_tb = T_pad // block_t

    gxf_spec = pl.BlockSpec((block_t, B, G), lambda k: (k, 0, 0))
    # Backward time reversal = reversed block index (pure address arithmetic).
    gxb_spec = pl.BlockSpec((block_t, B, G), lambda k: (num_tb - 1 - k, 0, 0))
    wh_spec = pl.BlockSpec((Hp, G), lambda k: (0, 0))     # fetched once
    outf_spec = pl.BlockSpec((block_t, B, Hp), lambda k: (k, 0, 0))
    outb_spec = pl.BlockSpec((block_t, B, Hp), lambda k: (num_tb - 1 - k, 0, 0))

    kernel = functools.partial(_bilstm_kernel, hidden=Hp,
                               block_t=block_t, unroll=unroll)

    out_f, out_b = pl.pallas_call(
        kernel,
        out_shape=(jax.ShapeDtypeStruct((T_pad, B, Hp), out_dtype),
                   jax.ShapeDtypeStruct((T_pad, B, Hp), out_dtype)),
        grid=(num_tb,),
        in_specs=[gxf_spec, gxb_spec, wh_spec, wh_spec],
        out_specs=(outf_spec, outb_spec),
        scratch_shapes=[pltpu.VMEM((B, Hp), jnp.float32) for _ in range(4)],
        compiler_params=pltpu.CompilerParams(
            dimension_semantics=("arbitrary",),
            vmem_limit_bytes=int(vmem_limit)),
    )(gx_f, gx_b, whh_f, whh_b)

    if T_pad != T:
        out_f = out_f[:T]
        out_b = out_b[:T]
    return out_f, out_b


def init_stack_brnn_params(key, input_dim, hidden_dim, num_layers):
    """Deterministic init mimicking nn.LSTM: U(-1/sqrt(H), 1/sqrt(H))."""
    k = 1.0 / jnp.sqrt(jnp.float32(hidden_dim))
    params = []
    for layer in range(num_layers):
        d_in = input_dim if layer == 0 else 2 * hidden_dim
        layer_params = {}
        for direction in ("fwd", "bwd"):
            key, k1, k2, k3, k4 = jax.random.split(key, 5)
            layer_params[direction] = {
                "w_ih": jax.random.uniform(k1, (4 * hidden_dim, d_in),
                                           jnp.float32, -k, k),
                "w_hh": jax.random.uniform(k2, (4 * hidden_dim, hidden_dim),
                                           jnp.float32, -k, k),
                "b_ih": jax.random.uniform(k3, (4 * hidden_dim,),
                                           jnp.float32, -k, k),
                "b_hh": jax.random.uniform(k4, (4 * hidden_dim,),
                                           jnp.float32, -k, k),
            }
        params.append(layer_params)
    return params


def stack_brnn_forward(x_btd, params, *, block_t=None, unroll=8,
                       mxu_dtype=jnp.bfloat16, gates_dtype=jnp.bfloat16):
    """StackBRNN.forward: x (B, T, D) -> (B, T, 2*H).

    mxu_dtype:   dtype of W_hh^T and the h operand of the recurrent matmul
                 (accumulation is always f32).  Set jnp.float32 for parity.
    gates_dtype: storage dtype of the hoisted input-projection gates stream.
                 Set jnp.float32 for exact f32 parity with PyTorch.
    """
    B, T, _ = x_btd.shape
    H = params[0]["fwd"]["w_hh"].shape[1]
    Hp = _round_up(H, 128)                         # lane-dense gate slices
    b_mult = 16 if jnp.dtype(gates_dtype).itemsize < 4 else 8
    B_p = _round_up(B, b_mult)                     # sublane-dense vregs

    budget = _vmem_budget_bytes()
    out_dtype = jnp.float32                        # inter-layer acts stay f32
    bt = block_t if block_t is not None else _pick_block_t(
        T, B_p, Hp, jnp.dtype(gates_dtype).itemsize, 4,
        jnp.dtype(mxu_dtype).itemsize, budget)

    # time-major, batch padded (padded rows are independent garbage, sliced
    # off at the end).
    x_tbd = _pad_axis(jnp.transpose(x_btd, (1, 0, 2)).astype(jnp.float32),
                      1, B_p)

    h_f = h_b = None
    for li, layer in enumerate(params):
        # Hoisted input projection: big MXU-friendly XLA matmuls; only the
        # truly sequential part runs inside the Pallas kernel.
        g_dirs = []
        for direction in ("fwd", "bwd"):
            p = layer[direction]
            bias = _pad_gate_chunks(
                (p["b_ih"] + p["b_hh"]).astype(jnp.float32), 0, H, Hp)
            if li == 0:
                w = _pad_gate_chunks(p["w_ih"], 0, H, Hp)        # (4Hp, Din)
                g = jnp.einsum("tbd,gd->tbg", x_tbd, w,
                               preferred_element_type=jnp.float32)
            else:
                # Split-weight einsum on direction-separated activations:
                # equivalent to concat(h_f, h_b, -1) @ w_ih^T without concat.
                w_f = _pad_gate_chunks(_pad_axis(p["w_ih"][:, :H], 1, Hp),
                                       0, H, Hp)                 # (4Hp, Hp)
                w_b = _pad_gate_chunks(_pad_axis(p["w_ih"][:, H:], 1, Hp),
                                       0, H, Hp)
                g = (jnp.einsum("tbh,gh->tbg", h_f, w_f,
                                preferred_element_type=jnp.float32)
                     + jnp.einsum("tbh,gh->tbg", h_b, w_b,
                                  preferred_element_type=jnp.float32))
            g_dirs.append((g + bias).astype(gates_dtype))

        whh_f = _pad_gate_chunks(_pad_axis(layer["fwd"]["w_hh"].T, 0, Hp),
                                 1, H, Hp).astype(mxu_dtype)     # (Hp, 4Hp)
        whh_b = _pad_gate_chunks(_pad_axis(layer["bwd"]["w_hh"].T, 0, Hp),
                                 1, H, Hp).astype(mxu_dtype)

        h_f, h_b = _run_bilstm(g_dirs[0], g_dirs[1], whh_f, whh_b,
                               block_t=bt, unroll=unroll,
                               out_dtype=out_dtype, vmem_limit=budget)

    out = jnp.concatenate([h_f[:, :B, :H], h_b[:, :B, :H]], axis=-1)
    return jnp.transpose(out, (1, 0, 2)).astype(x_btd.dtype)      # (B, T, 2H)


if __name__ == "__main__":
    BATCH = 2
    SEQ = 8
    INPUT_DIM = 16
    HIDDEN_DIM = 32
    NUM_LAYERS = 2

    key = jax.random.PRNGKey(0)
    key_x, key_p = jax.random.split(key)
    x = jax.random.normal(key_x, (BATCH, SEQ, INPUT_DIM), dtype=jnp.float32)
    params = init_stack_brnn_params(key_p, INPUT_DIM, HIDDEN_DIM, NUM_LAYERS)

    out = stack_brnn_forward(x, params)
    out = jax.block_until_ready(out)

    assert out.shape == (BATCH, SEQ, 2 * HIDDEN_DIM), out.shape
    assert bool(jnp.all(jnp.isfinite(out)))
    print("KERNEL_OK")
</pallas_src>

<mosaic_0001>
module attributes {stable_mosaic.version = 11 : i64} {
  func.func @_bilstm_kernel(%arg0: i32, %arg1: memref<8x16x512xbf16, #tpu.memory_space<vmem>>, %arg2: memref<8x16x512xbf16, #tpu.memory_space<vmem>>, %arg3: memref<128x512xbf16, #tpu.memory_space<vmem>>, %arg4: memref<128x512xbf16, #tpu.memory_space<vmem>>, %arg5: memref<8x16x128xf32, #tpu.memory_space<vmem>>, %arg6: memref<8x16x128xf32, #tpu.memory_space<vmem>>, %arg7: memref<16x128xf32, #tpu.memory_space<vmem>>, %arg8: memref<16x128xf32, #tpu.memory_space<vmem>>, %arg9: memref<16x128xf32, #tpu.memory_space<vmem>>, %arg10: memref<16x128xf32, #tpu.memory_space<vmem>>) attributes {dimension_semantics = [#tpu.dimension_semantics<arbitrary>], iteration_bounds = array<i64: 1>, scalar_prefetch = 0 : i64, scratch_operands = 4 : i64, tpu.core_type = #tpu.core_type<tc>, window_params = [{transform_indices = @transform_0, window_bounds = array<i64: 8, 16, 512>}, {transform_indices = @transform_1, window_bounds = array<i64: 8, 16, 512>}, {pipeline_mode = #tpu.pipeline_mode<synchronous>, transform_indices = @transform_2, window_bounds = array<i64: 128, 512>}, {pipeline_mode = #tpu.pipeline_mode<synchronous>, transform_indices = @transform_3, window_bounds = array<i64: 128, 512>}, {transform_indices = @transform_4, window_bounds = array<i64: 8, 16, 128>}, {transform_indices = @transform_5, window_bounds = array<i64: 8, 16, 128>}]} {
    %c0_i32 = arith.constant 0 : i32
    %0 = arith.cmpi eq, %arg0, %c0_i32 : i32
    %1 = arith.extui %0 : i1 to i32
    %c0_i32_0 = arith.constant 0 : i32
    %2 = arith.cmpi ne, %1, %c0_i32_0 : i32
    scf.if %2 {
      %cst_156 = arith.constant 0.000000e+00 : f32
      %597 = vector.broadcast %cst_156 : f32 to vector<16x128xf32>
      %c0_157 = arith.constant 0 : index
      %c0_158 = arith.constant 0 : index
      %598 = vector.load %arg7[%c0_157, %c0_158] : memref<16x128xf32, #tpu.memory_space<vmem>>, vector<16x128xf32>
      tpu.vector_store %arg7[%c0_157, %c0_158], %597 {strides = array<i32>} : memref<16x128xf32, #tpu.memory_space<vmem>>, vector<16x128xf32>,
      %cst_159 = arith.constant 0.000000e+00 : f32
      %599 = vector.broadcast %cst_159 : f32 to vector<16x128xf32>
      %c0_160 = arith.constant 0 : index
      %c0_161 = arith.constant 0 : index
      %600 = vector.load %arg8[%c0_160, %c0_161] : memref<16x128xf32, #tpu.memory_space<vmem>>, vector<16x128xf32>
      tpu.vector_store %arg8[%c0_160, %c0_161], %599 {strides = array<i32>} : memref<16x128xf32, #tpu.memory_space<vmem>>, vector<16x128xf32>,
      %cst_162 = arith.constant 0.000000e+00 : f32
      %601 = vector.broadcast %cst_162 : f32 to vector<16x128xf32>
      %c0_163 = arith.constant 0 : index
      %c0_164 = arith.constant 0 : index
      %602 = vector.load %arg9[%c0_163, %c0_164] : memref<16x128xf32, #tpu.memory_space<vmem>>, vector<16x128xf32>
      tpu.vector_store %arg9[%c0_163, %c0_164], %601 {strides = array<i32>} : memref<16x128xf32, #tpu.memory_space<vmem>>, vector<16x128xf32>,
      %cst_165 = arith.constant 0.000000e+00 : f32
      %603 = vector.broadcast %cst_165 : f32 to vector<16x128xf32>
      %c0_166 = arith.constant 0 : index
      %c0_167 = arith.constant 0 : index
      %604 = vector.load %arg10[%c0_166, %c0_167] : memref<16x128xf32, #tpu.memory_space<vmem>>, vector<16x128xf32>
      tpu.vector_store %arg10[%c0_166, %c0_167], %603 {strides = array<i32>} : memref<16x128xf32, #tpu.memory_space<vmem>>, vector<16x128xf32>,
    } else {
    }
    %c0 = arith.constant 0 : index
    %c0_1 = arith.constant 0 : index
    %3 = vector.load %arg3[%c0, %c0_1] : memref<128x512xbf16, #tpu.memory_space<vmem>>, vector<128x512xbf16>
    %c0_2 = arith.constant 0 : index
    %c0_3 = arith.constant 0 : index
    %4 = vector.load %arg4[%c0_2, %c0_3] : memref<128x512xbf16, #tpu.memory_space<vmem>>, vector<128x512xbf16>
    %c0_4 = arith.constant 0 : index
    %c0_5 = arith.constant 0 : index
    %5 = vector.load %arg7[%c0_4, %c0_5] : memref<16x128xf32, #tpu.memory_space<vmem>>, vector<16x128xf32>
    %c0_6 = arith.constant 0 : index
    %c0_7 = arith.constant 0 : index
    %6 = vector.load %arg8[%c0_6, %c0_7] : memref<16x128xf32, #tpu.memory_space<vmem>>, vector<16x128xf32>
    %c0_8 = arith.constant 0 : index
    %c0_9 = arith.constant 0 : index
    %7 = vector.load %arg9[%c0_8, %c0_9] : memref<16x128xf32, #tpu.memory_space<vmem>>, vector<16x128xf32>
    %c0_10 = arith.constant 0 : index
    %c0_11 = arith.constant 0 : index
    %8 = vector.load %arg10[%c0_10, %c0_11] : memref<16x128xf32, #tpu.memory_space<vmem>>, vector<16x128xf32>
    %c0_i32_12 = arith.constant 0 : i32
    %c7_i32 = arith.constant 7 : i32
    %9 = arith.subi %c7_i32, %c0_i32_12 : i32
    %10 = arith.index_cast %c0_i32_12 : i32 to index
    %c0_13 = arith.constant 0 : index
    %c0_14 = arith.constant 0 : index
    %11 = vector.load %arg1[%10, %c0_13, %c0_14] : memref<8x16x512xbf16, #tpu.memory_space<vmem>>, vector<1x16x512xbf16>
    %12 = vector.shape_cast %11 : vector<1x16x512xbf16> to vector<16x512xbf16>
    %13 = arith.extf %12 : vector<16x512xbf16> to vector<16x512xf32>
    %14 = arith.truncf %5 : vector<16x128xf32> to vector<16x128xbf16>
    %cst = arith.constant dense<0.000000e+00> : vector<16x512xf32>
    %15 = tpu.matmul %14, %3, %cst {dimension_numbers = #tpu.dot_dimension_numbers<[1], [0], [0], [1], [0, 0, 1, 1], [], []>} : vector<16x128xbf16>, vector<128x512xbf16>, vector<16x512xf32> -> vector<16x512xf32>
    %16 = arith.addf %13, %15 : vector<16x512xf32>
    %17 = vector.extract_strided_slice %16 {offsets = [0, 0], sizes = [16, 128], strides = [1, 1]} : vector<16x512xf32> to vector<16x128xf32>
    %18 = arith.negf %17 : vector<16x128xf32>
    %19 = math.exp %18 : vector<16x128xf32>
    %cst_15 = arith.constant 1.000000e+00 : f32
    %20 = vector.broadcast %cst_15 : f32 to vector<16x128xf32>
    %21 = arith.addf %20, %19 : vector<16x128xf32>
    %22 = arith.divf %20, %21 : vector<16x128xf32>
    %23 = vector.extract_strided_slice %16 {offsets = [0, 128], sizes = [16, 128], strides = [1, 1]} : vector<16x512xf32> to vector<16x128xf32>
    %24 = arith.negf %23 : vector<16x128xf32>
    %25 = math.exp %24 : vector<16x128xf32>
    %cst_16 = arith.constant 1.000000e+00 : f32
    %26 = vector.broadcast %cst_16 : f32 to vector<16x128xf32>
    %27 = arith.addf %26, %25 : vector<16x128xf32>
    %28 = arith.divf %26, %27 : vector<16x128xf32>
    %29 = vector.extract_strided_slice %16 {offsets = [0, 256], sizes = [16, 128], strides = [1, 1]} : vector<16x512xf32> to vector<16x128xf32>
    %30 = math.tanh %29 : vector<16x128xf32>
    %31 = vector.extract_strided_slice %16 {offsets = [0, 384], sizes = [16, 128], strides = [1, 1]} : vector<16x512xf32> to vector<16x128xf32>
    %32 = arith.negf %31 : vector<16x128xf32>
    %33 = math.exp %32 : vector<16x128xf32>
    %cst_17 = arith.constant 1.000000e+00 : f32
    %34 = vector.broadcast %cst_17 : f32 to vector<16x128xf32>
    %35 = arith.addf %34, %33 : vector<16x128xf32>
    %36 = arith.divf %34, %35 : vector<16x128xf32>
    %37 = arith.mulf %28, %6 : vector<16x128xf32>
    %38 = arith.mulf %22, %30 : vector<16x128xf32>
    %39 = arith.addf %37, %38 : vector<16x128xf32>
    %40 = math.tanh %39 : vector<16x128xf32>
    %41 = arith.mulf %36, %40 : vector<16x128xf32>
    %42 = arith.index_cast %9 : i32 to index
    %c0_18 = arith.constant 0 : index
    %c0_19 = arith.constant 0 : index
    %43 = vector.load %arg2[%42, %c0_18, %c0_19] : memref<8x16x512xbf16, #tpu.memory_space<vmem>>, vector<1x16x512xbf16>
    %44 = vector.shape_cast %43 : vector<1x16x512xbf16> to vector<16x512xbf16>
    %45 = arith.extf %44 : vector<16x512xbf16> to vector<16x512xf32>
    %46 = arith.truncf %7 : vector<16x128xf32> to vector<16x128xbf16>
    %cst_20 = arith.constant dense<0.000000e+00> : vector<16x512xf32>
    %47 = tpu.matmul %46, %4, %cst_20 {dimension_numbers = #tpu.dot_dimension_numbers<[1], [0], [0], [1], [0, 0, 1, 1], [], []>} : vector<16x128xbf16>, vector<128x512xbf16>, vector<16x512xf32> -> vector<16x512xf32>
    %48 = arith.addf %45, %47 : vector<16x512xf32>
    %49 = vector.extract_strided_slice %48 {offsets = [0, 0], sizes = [16, 128], strides = [1, 1]} : vector<16x512xf32> to vector<16x128xf32>
    %50 = arith.negf %49 : vector<16x128xf32>
    %51 = math.exp %50 : vector<16x128xf32>
    %cst_21 = arith.constant 1.000000e+00 : f32
    %52 = vector.broadcast %cst_21 : f32 to vector<16x128xf32>
    %53 = arith.addf %52, %51 : vector<16x128xf32>
    %54 = arith.divf %52, %53 : vector<16x128xf32>
    %55 = vector.extract_strided_slice %48 {offsets = [0, 128], sizes = [16, 128], strides = [1, 1]} : vector<16x512xf32> to vector<16x128xf32>
    %56 = arith.negf %55 : vector<16x128xf32>
    %57 = math.exp %56 : vector<16x128xf32>
    %cst_22 = arith.constant 1.000000e+00 : f32
    %58 = vector.broadcast %cst_22 : f32 to vector<16x128xf32>
    %59 = arith.addf %58, %57 : vector<16x128xf32>
    %60 = arith.divf %58, %59 : vector<16x128xf32>
    %61 = vector.extract_strided_slice %48 {offsets = [0, 256], sizes = [16, 128], strides = [1, 1]} : vector<16x512xf32> to vector<16x128xf32>
    %62 = math.tanh %61 : vector<16x128xf32>
    %63 = vector.extract_strided_slice %48 {offsets = [0, 384], sizes = [16, 128], strides = [1, 1]} : vector<16x512xf32> to vector<16x128xf32>
    %64 = arith.negf %63 : vector<16x128xf32>
    %65 = math.exp %64 : vector<16x128xf32>
    %cst_23 = arith.constant 1.000000e+00 : f32
    %66 = vector.broadcast %cst_23 : f32 to vector<16x128xf32>
    %67 = arith.addf %66, %65 : vector<16x128xf32>
    %68 = arith.divf %66, %67 : vector<16x128xf32>
    %69 = arith.mulf %60, %8 : vector<16x128xf32>
    %70 = arith.mulf %54, %62 : vector<16x128xf32>
    %71 = arith.addf %69, %70 : vector<16x128xf32>
    %72 = math.tanh %71 : vector<16x128xf32>
    %73 = arith.mulf %68, %72 : vector<16x128xf32>
    %74 = arith.index_cast %c0_i32_12 : i32 to index
    %c0_24 = arith.constant 0 : index
    %c0_25 = arith.constant 0 : index
    %75 = vector.load %arg5[%74, %c0_24, %c0_25] : memref<8x16x128xf32, #tpu.memory_space<vmem>>, vector<1x16x128xf32>
    %76 = vector.shape_cast %75 : vector<1x16x128xf32> to vector<16x128xf32>
    %77 = vector.shape_cast %41 : vector<16x128xf32> to vector<1x16x128xf32>
    tpu.vector_store %arg5[%74, %c0_24, %c0_25], %77 {strides = array<i32>} : memref<8x16x128xf32, #tpu.memory_space<vmem>>, vector<1x16x128xf32>,
    %78 = arith.index_cast %9 : i32 to index
    %c0_26 = arith.constant 0 : index
    %c0_27 = arith.constant 0 : index
    %79 = vector.load %arg6[%78, %c0_26, %c0_27] : memref<8x16x128xf32, #tpu.memory_space<vmem>>, vector<1x16x128xf32>
    %80 = vector.shape_cast %79 : vector<1x16x128xf32> to vector<16x128xf32>
    %81 = vector.shape_cast %73 : vector<16x128xf32> to vector<1x16x128xf32>
    tpu.vector_store %arg6[%78, %c0_26, %c0_27], %81 {strides = array<i32>} : memref<8x16x128xf32, #tpu.memory_space<vmem>>, vector<1x16x128xf32>,
    %c1_i32 = arith.constant 1 : i32
    %c7_i32_28 = arith.constant 7 : i32
    %82 = arith.subi %c7_i32_28, %c1_i32 : i32
    %83 = arith.index_cast %c1_i32 : i32 to index
    %c0_29 = arith.constant 0 : index
    %c0_30 = arith.constant 0 : index
    %84 = vector.load %arg1[%83, %c0_29, %c0_30] : memref<8x16x512xbf16, #tpu.memory_space<vmem>>, vector<1x16x512xbf16>
    %85 = vector.shape_cast %84 : vector<1x16x512xbf16> to vector<16x512xbf16>
    %86 = arith.extf %85 : vector<16x512xbf16> to vector<16x512xf32>
    %87 = arith.truncf %41 : vector<16x128xf32> to vector<16x128xbf16>
    %cst_31 = arith.constant dense<0.000000e+00> : vector<16x512xf32>
    %88 = tpu.matmul %87, %3, %cst_31 {dimension_numbers = #tpu.dot_dimension_numbers<[1], [0], [0], [1], [0, 0, 1, 1], [], []>} : vector<16x128xbf16>, vector<128x512xbf16>, vector<16x512xf32> -> vector<16x512xf32>
    %89 = arith.addf %86, %88 : vector<16x512xf32>
    %90 = vector.extract_strided_slice %89 {offsets = [0, 0], sizes = [16, 128], strides = [1, 1]} : vector<16x512xf32> to vector<16x128xf32>
    %91 = arith.negf %90 : vector<16x128xf32>
    %92 = math.exp %91 : vector<16x128xf32>
    %cst_32 = arith.constant 1.000000e+00 : f32
    %93 = vector.broadcast %cst_32 : f32 to vector<16x128xf32>
    %94 = arith.addf %93, %92 : vector<16x128xf32>
    %95 = arith.divf %93, %94 : vector<16x128xf32>
    %96 = vector.extract_strided_slice %89 {offsets = [0, 128], sizes = [16, 128], strides = [1, 1]} : vector<16x512xf32> to vector<16x128xf32>
    %97 = arith.negf %96 : vector<16x128xf32>
    %98 = math.exp %97 : vector<16x128xf32>
    %cst_33 = arith.constant 1.000000e+00 : f32
    %99 = vector.broadcast %cst_33 : f32 to vector<16x128xf32>
    %100 = arith.addf %99, %98 : vector<16x128xf32>
    %101 = arith.divf %99, %100 : vector<16x128xf32>
    %102 = vector.extract_strided_slice %89 {offsets = [0, 256], sizes = [16, 128], strides = [1, 1]} : vector<16x512xf32> to vector<16x128xf32>
    %103 = math.tanh %102 : vector<16x128xf32>
    %104 = vector.extract_strided_slice %89 {offsets = [0, 384], sizes = [16, 128], strides = [1, 1]} : vector<16x512xf32> to vector<16x128xf32>
    %105 = arith.negf %104 : vector<16x128xf32>
    %106 = math.exp %105 : vector<16x128xf32>
    %cst_34 = arith.constant 1.000000e+00 : f32
    %107 = vector.broadcast %cst_34 : f32 to vector<16x128xf32>
    %108 = arith.addf %107, %106 : vector<16x128xf32>
    %109 = arith.divf %107, %108 : vector<16x128xf32>
    %110 = arith.mulf %101, %39 : vector<16x128xf32>
    %111 = arith.mulf %95, %103 : vector<16x128xf32>
    %112 = arith.addf %110, %111 : vector<16x128xf32>
    %113 = math.tanh %112 : vector<16x128xf32>
    %114 = arith.mulf %109, %113 : vector<16x128xf32>
    %115 = arith.index_cast %82 : i32 to index
    %c0_35 = arith.constant 0 : index
    %c0_36 = arith.constant 0 : index
    %116 = vector.load %arg2[%115, %c0_35, %c0_36] : memref<8x16x512xbf16, #tpu.memory_space<vmem>>, vector<1x16x512xbf16>
    %117 = vector.shape_cast %116 : vector<1x16x512xbf16> to vector<16x512xbf16>
    %118 = arith.extf %117 : vector<16x512xbf16> to vector<16x512xf32>
    %119 = arith.truncf %73 : vector<16x128xf32> to vector<16x128xbf16>
    %cst_37 = arith.constant dense<0.000000e+00> : vector<16x512xf32>
    %120 = tpu.matmul %119, %4, %cst_37 {dimension_numbers = #tpu.dot_dimension_numbers<[1], [0], [0], [1], [0, 0, 1, 1], [], []>} : vector<16x128xbf16>, vector<128x512xbf16>, vector<16x512xf32> -> vector<16x512xf32>
    %121 = arith.addf %118, %120 : vector<16x512xf32>
    %122 = vector.extract_strided_slice %121 {offsets = [0, 0], sizes = [16, 128], strides = [1, 1]} : vector<16x512xf32> to vector<16x128xf32>
    %123 = arith.negf %122 : vector<16x128xf32>
    %124 = math.exp %123 : vector<16x128xf32>
    %cst_38 = arith.constant 1.000000e+00 : f32
    %125 = vector.broadcast %cst_38 : f32 to vector<16x128xf32>
    %126 = arith.addf %125, %124 : vector<16x128xf32>
    %127 = arith.divf %125, %126 : vector<16x128xf32>
    %128 = vector.extract_strided_slice %121 {offsets = [0, 128], sizes = [16, 128], strides = [1, 1]} : vector<16x512xf32> to vector<16x128xf32>
    %129 = arith.negf %128 : vector<16x128xf32>
    %130 = math.exp %129 : vector<16x128xf32>
    %cst_39 = arith.constant 1.000000e+00 : f32
    %131 = vector.broadcast %cst_39 : f32 to vector<16x128xf32>
    %132 = arith.addf %131, %130 : vector<16x128xf32>
    %133 = arith.divf %131, %132 : vector<16x128xf32>
    %134 = vector.extract_strided_slice %121 {offsets = [0, 256], sizes = [16, 128], strides = [1, 1]} : vector<16x512xf32> to vector<16x128xf32>
    %135 = math.tanh %134 : vector<16x128xf32>
    %136 = vector.extract_strided_slice %121 {offsets = [0, 384], sizes = [16, 128], strides = [1, 1]} : vector<16x512xf32> to vector<16x128xf32>
    %137 = arith.negf %136 : vector<16x128xf32>
    %138 = math.exp %137 : vector<16x128xf32>
    %cst_40 = arith.constant 1.000000e+00 : f32
    %139 = vector.broadcast %cst_40 : f32 to vector<16x128xf32>
    %140 = arith.addf %139, %138 : vector<16x128xf32>
    %141 = arith.divf %139, %140 : vector<16x128xf32>
    %142 = arith.mulf %133, %71 : vector<16x128xf32>
    %143 = arith.mulf %127, %135 : vector<16x128xf32>
    %144 = arith.addf %142, %143 : vector<16x128xf32>
    %145 = math.tanh %144 : vector<16x128xf32>
    %146 = arith.mulf %141, %145 : vector<16x128xf32>
    %147 = arith.index_cast %c1_i32 : i32 to index
    %c0_41 = arith.constant 0 : index
    %c0_42 = arith.constant 0 : index
    %148 = vector.load %arg5[%147, %c0_41, %c0_42] : memref<8x16x128xf32, #tpu.memory_space<vmem>>, vector<1x16x128xf32>
    %149 = vector.shape_cast %148 : vector<1x16x128xf32> to vector<16x128xf32>
    %150 = vector.shape_cast %114 : vector<16x128xf32> to vector<1x16x128xf32>
    tpu.vector_store %arg5[%147, %c0_41, %c0_42], %150 {strides = array<i32>} : memref<8x16x128xf32, #tpu.memory_space<vmem>>, vector<1x16x128xf32>,
    %151 = arith.index_cast %82 : i32 to index
    %c0_43 = arith.constant 0 : index
    %c0_44 = arith.constant 0 : index
    %152 = vector.load %arg6[%151, %c0_43, %c0_44] : memref<8x16x128xf32, #tpu.memory_space<vmem>>, vector<1x16x128xf32>
    %153 = vector.shape_cast %152 : vector<1x16x128xf32> to vector<16x128xf32>
    %154 = vector.shape_cast %146 : vector<16x128xf32> to vector<1x16x128xf32>
    tpu.vector_store %arg6[%151, %c0_43, %c0_44], %154 {strides = array<i32>} : memref<8x16x128xf32, #tpu.memory_space<vmem>>, vector<1x16x128xf32>,
    %c2_i32 = arith.constant 2 : i32
    %c7_i32_45 = arith.constant 7 : i32
    %155 = arith.subi %c7_i32_45, %c2_i32 : i32
    %156 = arith.index_cast %c2_i32 : i32 to index
    %c0_46 = arith.constant 0 : index
    %c0_47 = arith.constant 0 : index
    %157 = vector.load %arg1[%156, %c0_46, %c0_47] : memref<8x16x512xbf16, #tpu.memory_space<vmem>>, vector<1x16x512xbf16>
    %158 = vector.shape_cast %157 : vector<1x16x512xbf16> to vector<16x512xbf16>
    %159 = arith.extf %158 : vector<16x512xbf16> to vector<16x512xf32>
    %160 = arith.truncf %114 : vector<16x128xf32> to vector<16x128xbf16>
    %cst_48 = arith.constant dense<0.000000e+00> : vector<16x512xf32>
    %161 = tpu.matmul %160, %3, %cst_48 {dimension_numbers = #tpu.dot_dimension_numbers<[1], [0], [0], [1], [0, 0, 1, 1], [], []>} : vector<16x128xbf16>, vector<128x512xbf16>, vector<16x512xf32> -> vector<16x512xf32>
    %162 = arith.addf %159, %161 : vector<16x512xf32>
    %163 = vector.extract_strided_slice %162 {offsets = [0, 0], sizes = [16, 128], strides = [1, 1]} : vector<16x512xf32> to vector<16x128xf32>
    %164 = arith.negf %163 : vector<16x128xf32>
    %165 = math.exp %164 : vector<16x128xf32>
    %cst_49 = arith.constant 1.000000e+00 : f32
    %166 = vector.broadcast %cst_49 : f32 to vector<16x128xf32>
    %167 = arith.addf %166, %165 : vector<16x128xf32>
    %168 = arith.divf %166, %167 : vector<16x128xf32>
    %169 = vector.extract_strided_slice %162 {offsets = [0, 128], sizes = [16, 128], strides = [1, 1]} : vector<16x512xf32> to vector<16x128xf32>
    %170 = arith.negf %169 : vector<16x128xf32>
    %171 = math.exp %170 : vector<16x128xf32>
    %cst_50 = arith.constant 1.000000e+00 : f32
    %172 = vector.broadcast %cst_50 : f32 to vector<16x128xf32>
    %173 = arith.addf %172, %171 : vector<16x128xf32>
    %174 = arith.divf %172, %173 : vector<16x128xf32>
    %175 = vector.extract_strided_slice %162 {offsets = [0, 256], sizes = [16, 128], strides = [1, 1]} : vector<16x512xf32> to vector<16x128xf32>
    %176 = math.tanh %175 : vector<16x128xf32>
    %177 = vector.extract_strided_slice %162 {offsets = [0, 384], sizes = [16, 128], strides = [1, 1]} : vector<16x512xf32> to vector<16x128xf32>
    %178 = arith.negf %177 : vector<16x128xf32>
    %179 = math.exp %178 : vector<16x128xf32>
    %cst_51 = arith.constant 1.000000e+00 : f32
    %180 = vector.broadcast %cst_51 : f32 to vector<16x128xf32>
    %181 = arith.addf %180, %179 : vector<16x128xf32>
    %182 = arith.divf %180, %181 : vector<16x128xf32>
    %183 = arith.mulf %174, %112 : vector<16x128xf32>
    %184 = arith.mulf %168, %176 : vector<16x128xf32>
    %185 = arith.addf %183, %184 : vector<16x128xf32>
    %186 = math.tanh %185 : vector<16x128xf32>
    %187 = arith.mulf %182, %186 : vector<16x128xf32>
    %188 = arith.index_cast %155 : i32 to index
    %c0_52 = arith.constant 0 : index
    %c0_53 = arith.constant 0 : index
    %189 = vector.load %arg2[%188, %c0_52, %c0_53] : memref<8x16x512xbf16, #tpu.memory_space<vmem>>, vector<1x16x512xbf16>
    %190 = vector.shape_cast %189 : vector<1x16x512xbf16> to vector<16x512xbf16>
    %191 = arith.extf %190 : vector<16x512xbf16> to vector<16x512xf32>
    %192 = arith.truncf %146 : vector<16x128xf32> to vector<16x128xbf16>
    %cst_54 = arith.constant dense<0.000000e+00> : vector<16x512xf32>
    %193 = tpu.matmul %192, %4, %cst_54 {dimension_numbers = #tpu.dot_dimension_numbers<[1], [0], [0], [1], [0, 0, 1, 1], [], []>} : vector<16x128xbf16>, vector<128x512xbf16>, vector<16x512xf32> -> vector<16x512xf32>
    %194 = arith.addf %191, %193 : vector<16x512xf32>
    %195 = vector.extract_strided_slice %194 {offsets = [0, 0], sizes = [16, 128], strides = [1, 1]} : vector<16x512xf32> to vector<16x128xf32>
    %196 = arith.negf %195 : vector<16x128xf32>
    %197 = math.exp %196 : vector<16x128xf32>
    %cst_55 = arith.constant 1.000000e+00 : f32
    %198 = vector.broadcast %cst_55 : f32 to vector<16x128xf32>
    %199 = arith.addf %198, %197 : vector<16x128xf32>
    %200 = arith.divf %198, %199 : vector<16x128xf32>
    %201 = vector.extract_strided_slice %194 {offsets = [0, 128], sizes = [16, 128], strides = [1, 1]} : vector<16x512xf32> to vector<16x128xf32>
    %202 = arith.negf %201 : vector<16x128xf32>
    %203 = math.exp %202 : vector<16x128xf32>
    %cst_56 = arith.constant 1.000000e+00 : f32
    %204 = vector.broadcast %cst_56 : f32 to vector<16x128xf32>
    %205 = arith.addf %204, %203 : vector<16x128xf32>
    %206 = arith.divf %204, %205 : vector<16x128xf32>
    %207 = vector.extract_strided_slice %194 {offsets = [0, 256], sizes = [16, 128], strides = [1, 1]} : vector<16x512xf32> to vector<16x128xf32>
    %208 = math.tanh %207 : vector<16x128xf32>
    %209 = vector.extract_strided_slice %194 {offsets = [0, 384], sizes = [16, 128], strides = [1, 1]} : vector<16x512xf32> to vector<16x128xf32>
    %210 = arith.negf %209 : vector<16x128xf32>
    %211 = math.exp %210 : vector<16x128xf32>
    %cst_57 = arith.constant 1.000000e+00 : f32
    %212 = vector.broadcast %cst_57 : f32 to vector<16x128xf32>
    %213 = arith.addf %212, %211 : vector<16x128xf32>
    %214 = arith.divf %212, %213 : vector<16x128xf32>
    %215 = arith.mulf %206, %144 : vector<16x128xf32>
    %216 = arith.mulf %200, %208 : vector<16x128xf32>
    %217 = arith.addf %215, %216 : vector<16x128xf32>
    %218 = math.tanh %217 : vector<16x128xf32>
    %219 = arith.mulf %214, %218 : vector<16x128xf32>
    %220 = arith.index_cast %c2_i32 : i32 to index
    %c0_58 = arith.constant 0 : index
    %c0_59 = arith.constant 0 : index
    %221 = vector.load %arg5[%220, %c0_58, %c0_59] : memref<8x16x128xf32, #tpu.memory_space<vmem>>, vector<1x16x128xf32>
    %222 = vector.shape_cast %221 : vector<1x16x128xf32> to vector<16x128xf32>
    %223 = vector.shape_cast %187 : vector<16x128xf32> to vector<1x16x128xf32>
    tpu.vector_store %arg5[%220, %c0_58, %c0_59], %223 {strides = array<i32>} : memref<8x16x128xf32, #tpu.memory_space<vmem>>, vector<1x16x128xf32>,
    %224 = arith.index_cast %155 : i32 to index
    %c0_60 = arith.constant 0 : index
    %c0_61 = arith.constant 0 : index
    %225 = vector.load %arg6[%224, %c0_60, %c0_61] : memref<8x16x128xf32, #tpu.memory_space<vmem>>, vector<1x16x128xf32>
    %226 = vector.shape_cast %225 : vector<1x16x128xf32> to vector<16x128xf32>
    %227 = vector.shape_cast %219 : vector<16x128xf32> to vector<1x16x128xf32>
    tpu.vector_store %arg6[%224, %c0_60, %c0_61], %227 {strides = array<i32>} : memref<8x16x128xf32, #tpu.memory_space<vmem>>, vector<1x16x128xf32>,
    %c3_i32 = arith.constant 3 : i32
    %c7_i32_62 = arith.constant 7 : i32
    %228 = arith.subi %c7_i32_62, %c3_i32 : i32
    %229 = arith.index_cast %c3_i32 : i32 to index
    %c0_63 = arith.constant 0 : index
    %c0_64 = arith.constant 0 : index
    %230 = vector.load %arg1[%229, %c0_63, %c0_64] : memref<8x16x512xbf16, #tpu.memory_space<vmem>>, vector<1x16x512xbf16>
    %231 = vector.shape_cast %230 : vector<1x16x512xbf16> to vector<16x512xbf16>
    %232 = arith.extf %231 : vector<16x512xbf16> to vector<16x512xf32>
    %233 = arith.truncf %187 : vector<16x128xf32> to vector<16x128xbf16>
    %cst_65 = arith.constant dense<0.000000e+00> : vector<16x512xf32>
    %234 = tpu.matmul %233, %3, %cst_65 {dimension_numbers = #tpu.dot_dimension_numbers<[1], [0], [0], [1], [0, 0, 1, 1], [], []>} : vector<16x128xbf16>, vector<128x512xbf16>, vector<16x512xf32> -> vector<16x512xf32>
    %235 = arith.addf %232, %234 : vector<16x512xf32>
    %236 = vector.extract_strided_slice %235 {offsets = [0, 0], sizes = [16, 128], strides = [1, 1]} : vector<16x512xf32> to vector<16x128xf32>
    %237 = arith.negf %236 : vector<16x128xf32>
    %238 = math.exp %237 : vector<16x128xf32>
    %cst_66 = arith.constant 1.000000e+00 : f32
    %239 = vector.broadcast %cst_66 : f32 to vector<16x128xf32>
    %240 = arith.addf %239, %238 : vector<16x128xf32>
    %241 = arith.divf %239, %240 : vector<16x128xf32>
    %242 = vector.extract_strided_slice %235 {offsets = [0, 128], sizes = [16, 128], strides = [1, 1]} : vector<16x512xf32> to vector<16x128xf32>
    %243 = arith.negf %242 : vector<16x128xf32>
    %244 = math.exp %243 : vector<16x128xf32>
    %cst_67 = arith.constant 1.000000e+00 : f32
    %245 = vector.broadcast %cst_67 : f32 to vector<16x128xf32>
    %246 = arith.addf %245, %244 : vector<16x128xf32>
    %247 = arith.divf %245, %246 : vector<16x128xf32>
    %248 = vector.extract_strided_slice %235 {offsets = [0, 256], sizes = [16, 128], strides = [1, 1]} : vector<16x512xf32> to vector<16x128xf32>
    %249 = math.tanh %248 : vector<16x128xf32>
    %250 = vector.extract_strided_slice %235 {offsets = [0, 384], sizes = [16, 128], strides = [1, 1]} : vector<16x512xf32> to vector<16x128xf32>
    %251 = arith.negf %250 : vector<16x128xf32>
    %252 = math.exp %251 : vector<16x128xf32>
    %cst_68 = arith.constant 1.000000e+00 : f32
    %253 = vector.broadcast %cst_68 : f32 to vector<16x128xf32>
    %254 = arith.addf %253, %252 : vector<16x128xf32>
    %255 = arith.divf %253, %254 : vector<16x128xf32>
    %256 = arith.mulf %247, %185 : vector<16x128xf32>
    %257 = arith.mulf %241, %249 : vector<16x128xf32>
    %258 = arith.addf %256, %257 : vector<16x128xf32>
    %259 = math.tanh %258 : vector<16x128xf32>
    %260 = arith.mulf %255, %259 : vector<16x128xf32>
    %261 = arith.index_cast %228 : i32 to index
    %c0_69 = arith.constant 0 : index
    %c0_70 = arith.constant 0 : index
    %262 = vector.load %arg2[%261, %c0_69, %c0_70] : memref<8x16x512xbf16, #tpu.memory_space<vmem>>, vector<1x16x512xbf16>
    %263 = vector.shape_cast %262 : vector<1x16x512xbf16> to vector<16x512xbf16>
    %264 = arith.extf %263 : vector<16x512xbf16> to vector<16x512xf32>
    %265 = arith.truncf %219 : vector<16x128xf32> to vector<16x128xbf16>
    %cst_71 = arith.constant dense<0.000000e+00> : vector<16x512xf32>
    %266 = tpu.matmul %265, %4, %cst_71 {dimension_numbers = #tpu.dot_dimension_numbers<[1], [0], [0], [1], [0, 0, 1, 1], [], []>} : vector<16x128xbf16>, vector<128x512xbf16>, vector<16x512xf32> -> vector<16x512xf32>
    %267 = arith.addf %264, %266 : vector<16x512xf32>
    %268 = vector.extract_strided_slice %267 {offsets = [0, 0], sizes = [16, 128], strides = [1, 1]} : vector<16x512xf32> to vector<16x128xf32>
    %269 = arith.negf %268 : vector<16x128xf32>
    %270 = math.exp %269 : vector<16x128xf32>
    %cst_72 = arith.constant 1.000000e+00 : f32
    %271 = vector.broadcast %cst_72 : f32 to vector<16x128xf32>
    %272 = arith.addf %271, %270 : vector<16x128xf32>
    %273 = arith.divf %271, %272 : vector<16x128xf32>
    %274 = vector.extract_strided_slice %267 {offsets = [0, 128], sizes = [16, 128], strides = [1, 1]} : vector<16x512xf32> to vector<16x128xf32>
    %275 = arith.negf %274 : vector<16x128xf32>
    %276 = math.exp %275 : vector<16x128xf32>
    %cst_73 = arith.constant 1.000000e+00 : f32
    %277 = vector.broadcast %cst_73 : f32 to vector<16x128xf32>
    %278 = arith.addf %277, %276 : vector<16x128xf32>
    %279 = arith.divf %277, %278 : vector<16x128xf32>
    %280 = vector.extract_strided_slice %267 {offsets = [0, 256], sizes = [16, 128], strides = [1, 1]} : vector<16x512xf32> to vector<16x128xf32>
    %281 = math.tanh %280 : vector<16x128xf32>
    %282 = vector.extract_strided_slice %267 {offsets = [0, 384], sizes = [16, 128], strides = [1, 1]} : vector<16x512xf32> to vector<16x128xf32>
    %283 = arith.negf %282 : vector<16x128xf32>
    %284 = math.exp %283 : vector<16x128xf32>
    %cst_74 = arith.constant 1.000000e+00 : f32
    %285 = vector.broadcast %cst_74 : f32 to vector<16x128xf32>
    %286 = arith.addf %285, %284 : vector<16x128xf32>
    %287 = arith.divf %285, %286 : vector<16x128xf32>
    %288 = arith.mulf %279, %217 : vector<16x128xf32>
    %289 = arith.mulf %273, %281 : vector<16x128xf32>
    %290 = arith.addf %288, %289 : vector<16x128xf32>
    %291 = math.tanh %290 : vector<16x128xf32>
    %292 = arith.mulf %287, %291 : vector<16x128xf32>
    %293 = arith.index_cast %c3_i32 : i32 to index
    %c0_75 = arith.constant 0 : index
    %c0_76 = arith.constant 0 : index
    %294 = vector.load %arg5[%293, %c0_75, %c0_76] : memref<8x16x128xf32, #tpu.memory_space<vmem>>, vector<1x16x128xf32>
    %295 = vector.shape_cast %294 : vector<1x16x128xf32> to vector<16x128xf32>
    %296 = vector.shape_cast %260 : vector<16x128xf32> to vector<1x16x128xf32>
    tpu.vector_store %arg5[%293, %c0_75, %c0_76], %296 {strides = array<i32>} : memref<8x16x128xf32, #tpu.memory_space<vmem>>, vector<1x16x128xf32>,
    %297 = arith.index_cast %228 : i32 to index
    %c0_77 = arith.constant 0 : index
    %c0_78 = arith.constant 0 : index
    %298 = vector.load %arg6[%297, %c0_77, %c0_78] : memref<8x16x128xf32, #tpu.memory_space<vmem>>, vector<1x16x128xf32>
    %299 = vector.shape_cast %298 : vector<1x16x128xf32> to vector<16x128xf32>
    %300 = vector.shape_cast %292 : vector<16x128xf32> to vector<1x16x128xf32>
    tpu.vector_store %arg6[%297, %c0_77, %c0_78], %300 {strides = array<i32>} : memref<8x16x128xf32, #tpu.memory_space<vmem>>, vector<1x16x128xf32>,
    %c4_i32 = arith.constant 4 : i32
    %c7_i32_79 = arith.constant 7 : i32
    %301 = arith.subi %c7_i32_79, %c4_i32 : i32
    %302 = arith.index_cast %c4_i32 : i32 to index
    %c0_80 = arith.constant 0 : index
    %c0_81 = arith.constant 0 : index
    %303 = vector.load %arg1[%302, %c0_80, %c0_81] : memref<8x16x512xbf16, #tpu.memory_space<vmem>>, vector<1x16x512xbf16>
    %304 = vector.shape_cast %303 : vector<1x16x512xbf16> to vector<16x512xbf16>
    %305 = arith.extf %304 : vector<16x512xbf16> to vector<16x512xf32>
    %306 = arith.truncf %260 : vector<16x128xf32> to vector<16x128xbf16>
    %cst_82 = arith.constant dense<0.000000e+00> : vector<16x512xf32>
    %307 = tpu.matmul %306, %3, %cst_82 {dimension_numbers = #tpu.dot_dimension_numbers<[1], [0], [0], [1], [0, 0, 1, 1], [], []>} : vector<16x128xbf16>, vector<128x512xbf16>, vector<16x512xf32> -> vector<16x512xf32>
    %308 = arith.addf %305, %307 : vector<16x512xf32>
    %309 = vector.extract_strided_slice %308 {offsets = [0, 0], sizes = [16, 128], strides = [1, 1]} : vector<16x512xf32> to vector<16x128xf32>
    %310 = arith.negf %309 : vector<16x128xf32>
    %311 = math.exp %310 : vector<16x128xf32>
    %cst_83 = arith.constant 1.000000e+00 : f32
    %312 = vector.broadcast %cst_83 : f32 to vector<16x128xf32>
    %313 = arith.addf %312, %311 : vector<16x128xf32>
    %314 = arith.divf %312, %313 : vector<16x128xf32>
    %315 = vector.extract_strided_slice %308 {offsets = [0, 128], sizes = [16, 128], strides = [1, 1]} : vector<16x512xf32> to vector<16x128xf32>
    %316 = arith.negf %315 : vector<16x128xf32>
    %317 = math.exp %316 : vector<16x128xf32>
    %cst_84 = arith.constant 1.000000e+00 : f32
    %318 = vector.broadcast %cst_84 : f32 to vector<16x128xf32>
    %319 = arith.addf %318, %317 : vector<16x128xf32>
    %320 = arith.divf %318, %319 : vector<16x128xf32>
    %321 = vector.extract_strided_slice %308 {offsets = [0, 256], sizes = [16, 128], strides = [1, 1]} : vector<16x512xf32> to vector<16x128xf32>
    %322 = math.tanh %321 : vector<16x128xf32>
    %323 = vector.extract_strided_slice %308 {offsets = [0, 384], sizes = [16, 128], strides = [1, 1]} : vector<16x512xf32> to vector<16x128xf32>
    %324 = arith.negf %323 : vector<16x128xf32>
    %325 = math.exp %324 : vector<16x128xf32>
    %cst_85 = arith.constant 1.000000e+00 : f32
    %326 = vector.broadcast %cst_85 : f32 to vector<16x128xf32>
    %327 = arith.addf %326, %325 : vector<16x128xf32>
    %328 = arith.divf %326, %327 : vector<16x128xf32>
    %329 = arith.mulf %320, %258 : vector<16x128xf32>
    %330 = arith.mulf %314, %322 : vector<16x128xf32>
    %331 = arith.addf %329, %330 : vector<16x128xf32>
    %332 = math.tanh %331 : vector<16x128xf32>
    %333 = arith.mulf %328, %332 : vector<16x128xf32>
    %334 = arith.index_cast %301 : i32 to index
    %c0_86 = arith.constant 0 : index
    %c0_87 = arith.constant 0 : index
    %335 = vector.load %arg2[%334, %c0_86, %c0_87] : memref<8x16x512xbf16, #tpu.memory_space<vmem>>, vector<1x16x512xbf16>
    %336 = vector.shape_cast %335 : vector<1x16x512xbf16> to vector<16x512xbf16>
    %337 = arith.extf %336 : vector<16x512xbf16> to vector<16x512xf32>
    %338 = arith.truncf %292 : vector<16x128xf32> to vector<16x128xbf16>
    %cst_88 = arith.constant dense<0.000000e+00> : vector<16x512xf32>
    %339 = tpu.matmul %338, %4, %cst_88 {dimension_numbers = #tpu.dot_dimension_numbers<[1], [0], [0], [1], [0, 0, 1, 1], [], []>} : vector<16x128xbf16>, vector<128x512xbf16>, vector<16x512xf32> -> vector<16x512xf32>
    %340 = arith.addf %337, %339 : vector<16x512xf32>
    %341 = vector.extract_strided_slice %340 {offsets = [0, 0], sizes = [16, 128], strides = [1, 1]} : vector<16x512xf32> to vector<16x128xf32>
    %342 = arith.negf %341 : vector<16x128xf32>
    %343 = math.exp %342 : vector<16x128xf32>
    %cst_89 = arith.constant 1.000000e+00 : f32
    %344 = vector.broadcast %cst_89 : f32 to vector<16x128xf32>
    %345 = arith.addf %344, %343 : vector<16x128xf32>
    %346 = arith.divf %344, %345 : vector<16x128xf32>
    %347 = vector.extract_strided_slice %340 {offsets = [0, 128], sizes = [16, 128], strides = [1, 1]} : vector<16x512xf32> to vector<16x128xf32>
    %348 = arith.negf %347 : vector<16x128xf32>
    %349 = math.exp %348 : vector<16x128xf32>
    %cst_90 = arith.constant 1.000000e+00 : f32
    %350 = vector.broadcast %cst_90 : f32 to vector<16x128xf32>
    %351 = arith.addf %350, %349 : vector<16x128xf32>
    %352 = arith.divf %350, %351 : vector<16x128xf32>
    %353 = vector.extract_strided_slice %340 {offsets = [0, 256], sizes = [16, 128], strides = [1, 1]} : vector<16x512xf32> to vector<16x128xf32>
    %354 = math.tanh %353 : vector<16x128xf32>
    %355 = vector.extract_strided_slice %340 {offsets = [0, 384], sizes = [16, 128], strides = [1, 1]} : vector<16x512xf32> to vector<16x128xf32>
    %356 = arith.negf %355 : vector<16x128xf32>
    %357 = math.exp %356 : vector<16x128xf32>
    %cst_91 = arith.constant 1.000000e+00 : f32
    %358 = vector.broadcast %cst_91 : f32 to vector<16x128xf32>
    %359 = arith.addf %358, %357 : vector<16x128xf32>
    %360 = arith.divf %358, %359 : vector<16x128xf32>
    %361 = arith.mulf %352, %290 : vector<16x128xf32>
    %362 = arith.mulf %346, %354 : vector<16x128xf32>
    %363 = arith.addf %361, %362 : vector<16x128xf32>
    %364 = math.tanh %363 : vector<16x128xf32>
    %365 = arith.mulf %360, %364 : vector<16x128xf32>
    %366 = arith.index_cast %c4_i32 : i32 to index
    %c0_92 = arith.constant 0 : index
    %c0_93 = arith.constant 0 : index
    %367 = vector.load %arg5[%366, %c0_92, %c0_93] : memref<8x16x128xf32, #tpu.memory_space<vmem>>, vector<1x16x128xf32>
    %368 = vector.shape_cast %367 : vector<1x16x128xf32> to vector<16x128xf32>
    %369 = vector.shape_cast %333 : vector<16x128xf32> to vector<1x16x128xf32>
    tpu.vector_store %arg5[%366, %c0_92, %c0_93], %369 {strides = array<i32>} : memref<8x16x128xf32, #tpu.memory_space<vmem>>, vector<1x16x128xf32>,
    %370 = arith.index_cast %301 : i32 to index
    %c0_94 = arith.constant 0 : index
    %c0_95 = arith.constant 0 : index
    %371 = vector.load %arg6[%370, %c0_94, %c0_95] : memref<8x16x128xf32, #tpu.memory_space<vmem>>, vector<1x16x128xf32>
    %372 = vector.shape_cast %371 : vector<1x16x128xf32> to vector<16x128xf32>
    %373 = vector.shape_cast %365 : vector<16x128xf32> to vector<1x16x128xf32>
    tpu.vector_store %arg6[%370, %c0_94, %c0_95], %373 {strides = array<i32>} : memref<8x16x128xf32, #tpu.memory_space<vmem>>, vector<1x16x128xf32>,
    %c5_i32 = arith.constant 5 : i32
    %c7_i32_96 = arith.constant 7 : i32
    %374 = arith.subi %c7_i32_96, %c5_i32 : i32
    %375 = arith.index_cast %c5_i32 : i32 to index
    %c0_97 = arith.constant 0 : index
    %c0_98 = arith.constant 0 : index
    %376 = vector.load %arg1[%375, %c0_97, %c0_98] : memref<8x16x512xbf16, #tpu.memory_space<vmem>>, vector<1x16x512xbf16>
    %377 = vector.shape_cast %376 : vector<1x16x512xbf16> to vector<16x512xbf16>
    %378 = arith.extf %377 : vector<16x512xbf16> to vector<16x512xf32>
    %379 = arith.truncf %333 : vector<16x128xf32> to vector<16x128xbf16>
    %cst_99 = arith.constant dense<0.000000e+00> : vector<16x512xf32>
    %380 = tpu.matmul %379, %3, %cst_99 {dimension_numbers = #tpu.dot_dimension_numbers<[1], [0], [0], [1], [0, 0, 1, 1], [], []>} : vector<16x128xbf16>, vector<128x512xbf16>, vector<16x512xf32> -> vector<16x512xf32>
    %381 = arith.addf %378, %380 : vector<16x512xf32>
    %382 = vector.extract_strided_slice %381 {offsets = [0, 0], sizes = [16, 128], strides = [1, 1]} : vector<16x512xf32> to vector<16x128xf32>
    %383 = arith.negf %382 : vector<16x128xf32>
    %384 = math.exp %383 : vector<16x128xf32>
    %cst_100 = arith.constant 1.000000e+00 : f32
    %385 = vector.broadcast %cst_100 : f32 to vector<16x128xf32>
    %386 = arith.addf %385, %384 : vector<16x128xf32>
    %387 = arith.divf %385, %386 : vector<16x128xf32>
    %388 = vector.extract_strided_slice %381 {offsets = [0, 128], sizes = [16, 128], strides = [1, 1]} : vector<16x512xf32> to vector<16x128xf32>
    %389 = arith.negf %388 : vector<16x128xf32>
    %390 = math.exp %389 : vector<16x128xf32>
    %cst_101 = arith.constant 1.000000e+00 : f32
    %391 = vector.broadcast %cst_101 : f32 to vector<16x128xf32>
    %392 = arith.addf %391, %390 : vector<16x128xf32>
    %393 = arith.divf %391, %392 : vector<16x128xf32>
    %394 = vector.extract_strided_slice %381 {offsets = [0, 256], sizes = [16, 128], strides = [1, 1]} : vector<16x512xf32> to vector<16x128xf32>
    %395 = math.tanh %394 : vector<16x128xf32>
    %396 = vector.extract_strided_slice %381 {offsets = [0, 384], sizes = [16, 128], strides = [1, 1]} : vector<16x512xf32> to vector<16x128xf32>
    %397 = arith.negf %396 : vector<16x128xf32>
    %398 = math.exp %397 : vector<16x128xf32>
    %cst_102 = arith.constant 1.000000e+00 : f32
    %399 = vector.broadcast %cst_102 : f32 to vector<16x128xf32>
    %400 = arith.addf %399, %398 : vector<16x128xf32>
    %401 = arith.divf %399, %400 : vector<16x128xf32>
    %402 = arith.mulf %393, %331 : vector<16x128xf32>
    %403 = arith.mulf %387, %395 : vector<16x128xf32>
    %404 = arith.addf %402, %403 : vector<16x128xf32>
    %405 = math.tanh %404 : vector<16x128xf32>
    %406 = arith.mulf %401, %405 : vector<16x128xf32>
    %407 = arith.index_cast %374 : i32 to index
    %c0_103 = arith.constant 0 : index
    %c0_104 = arith.constant 0 : index
    %408 = vector.load %arg2[%407, %c0_103, %c0_104] : memref<8x16x512xbf16, #tpu.memory_space<vmem>>, vector<1x16x512xbf16>
    %409 = vector.shape_cast %408 : vector<1x16x512xbf16> to vector<16x512xbf16>
    %410 = arith.extf %409 : vector<16x512xbf16> to vector<16x512xf32>
    %411 = arith.truncf %365 : vector<16x128xf32> to vector<16x128xbf16>
    %cst_105 = arith.constant dense<0.000000e+00> : vector<16x512xf32>
    %412 = tpu.matmul %411, %4, %cst_105 {dimension_numbers = #tpu.dot_dimension_numbers<[1], [0], [0], [1], [0, 0, 1, 1], [], []>} : vector<16x128xbf16>, vector<128x512xbf16>, vector<16x512xf32> -> vector<16x512xf32>
    %413 = arith.addf %410, %412 : vector<16x512xf32>
    %414 = vector.extract_strided_slice %413 {offsets = [0, 0], sizes = [16, 128], strides = [1, 1]} : vector<16x512xf32> to vector<16x128xf32>
    %415 = arith.negf %414 : vector<16x128xf32>
    %416 = math.exp %415 : vector<16x128xf32>
    %cst_106 = arith.constant 1.000000e+00 : f32
    %417 = vector.broadcast %cst_106 : f32 to vector<16x128xf32>
    %418 = arith.addf %417, %416 : vector<16x128xf32>
    %419 = arith.divf %417, %418 : vector<16x128xf32>
    %420 = vector.extract_strided_slice %413 {offsets = [0, 128], sizes = [16, 128], strides = [1, 1]} : vector<16x512xf32> to vector<16x128xf32>
    %421 = arith.negf %420 : vector<16x128xf32>
    %422 = math.exp %421 : vector<16x128xf32>
    %cst_107 = arith.constant 1.000000e+00 : f32
    %423 = vector.broadcast %cst_107 : f32 to vector<16x128xf32>
    %424 = arith.addf %423, %422 : vector<16x128xf32>
    %425 = arith.divf %423, %424 : vector<16x128xf32>
    %426 = vector.extract_strided_slice %413 {offsets = [0, 256], sizes = [16, 128], strides = [1, 1]} : vector<16x512xf32> to vector<16x128xf32>
    %427 = math.tanh %426 : vector<16x128xf32>
    %428 = vector.extract_strided_slice %413 {offsets = [0, 384], sizes = [16, 128], strides = [1, 1]} : vector<16x512xf32> to vector<16x128xf32>
    %429 = arith.negf %428 : vector<16x128xf32>
    %430 = math.exp %429 : vector<16x128xf32>
    %cst_108 = arith.constant 1.000000e+00 : f32
    %431 = vector.broadcast %cst_108 : f32 to vector<16x128xf32>
    %432 = arith.addf %431, %430 : vector<16x128xf32>
    %433 = arith.divf %431, %432 : vector<16x128xf32>
    %434 = arith.mulf %425, %363 : vector<16x128xf32>
    %435 = arith.mulf %419, %427 : vector<16x128xf32>
    %436 = arith.addf %434, %435 : vector<16x128xf32>
    %437 = math.tanh %436 : vector<16x128xf32>
    %438 = arith.mulf %433, %437 : vector<16x128xf32>
    %439 = arith.index_cast %c5_i32 : i32 to index
    %c0_109 = arith.constant 0 : index
    %c0_110 = arith.constant 0 : index
    %440 = vector.load %arg5[%439, %c0_109, %c0_110] : memref<8x16x128xf32, #tpu.memory_space<vmem>>, vector<1x16x128xf32>
    %441 = vector.shape_cast %440 : vector<1x16x128xf32> to vector<16x128xf32>
    %442 = vector.shape_cast %406 : vector<16x128xf32> to vector<1x16x128xf32>
    tpu.vector_store %arg5[%439, %c0_109, %c0_110], %442 {strides = array<i32>} : memref<8x16x128xf32, #tpu.memory_space<vmem>>, vector<1x16x128xf32>,
    %443 = arith.index_cast %374 : i32 to index
    %c0_111 = arith.constant 0 : index
    %c0_112 = arith.constant 0 : index
    %444 = vector.load %arg6[%443, %c0_111, %c0_112] : memref<8x16x128xf32, #tpu.memory_space<vmem>>, vector<1x16x128xf32>
    %445 = vector.shape_cast %444 : vector<1x16x128xf32> to vector<16x128xf32>
    %446 = vector.shape_cast %438 : vector<16x128xf32> to vector<1x16x128xf32>
    tpu.vector_store %arg6[%443, %c0_111, %c0_112], %446 {strides = array<i32>} : memref<8x16x128xf32, #tpu.memory_space<vmem>>, vector<1x16x128xf32>,
    %c6_i32 = arith.constant 6 : i32
    %c7_i32_113 = arith.constant 7 : i32
    %447 = arith.subi %c7_i32_113, %c6_i32 : i32
    %448 = arith.index_cast %c6_i32 : i32 to index
    %c0_114 = arith.constant 0 : index
    %c0_115 = arith.constant 0 : index
    %449 = vector.load %arg1[%448, %c0_114, %c0_115] : memref<8x16x512xbf16, #tpu.memory_space<vmem>>, vector<1x16x512xbf16>
    %450 = vector.shape_cast %449 : vector<1x16x512xbf16> to vector<16x512xbf16>
    %451 = arith.extf %450 : vector<16x512xbf16> to vector<16x512xf32>
    %452 = arith.truncf %406 : vector<16x128xf32> to vector<16x128xbf16>
    %cst_116 = arith.constant dense<0.000000e+00> : vector<16x512xf32>
    %453 = tpu.matmul %452, %3, %cst_116 {dimension_numbers = #tpu.dot_dimension_numbers<[1], [0], [0], [1], [0, 0, 1, 1], [], []>} : vector<16x128xbf16>, vector<128x512xbf16>, vector<16x512xf32> -> vector<16x512xf32>
    %454 = arith.addf %451, %453 : vector<16x512xf32>
    %455 = vector.extract_strided_slice %454 {offsets = [0, 0], sizes = [16, 128], strides = [1, 1]} : vector<16x512xf32> to vector<16x128xf32>
    %456 = arith.negf %455 : vector<16x128xf32>
    %457 = math.exp %456 : vector<16x128xf32>
    %cst_117 = arith.constant 1.000000e+00 : f32
    %458 = vector.broadcast %cst_117 : f32 to vector<16x128xf32>
    %459 = arith.addf %458, %457 : vector<16x128xf32>
    %460 = arith.divf %458, %459 : vector<16x128xf32>
    %461 = vector.extract_strided_slice %454 {offsets = [0, 128], sizes = [16, 128], strides = [1, 1]} : vector<16x512xf32> to vector<16x128xf32>
    %462 = arith.negf %461 : vector<16x128xf32>
    %463 = math.exp %462 : vector<16x128xf32>
    %cst_118 = arith.constant 1.000000e+00 : f32
    %464 = vector.broadcast %cst_118 : f32 to vector<16x128xf32>
    %465 = arith.addf %464, %463 : vector<16x128xf32>
    %466 = arith.divf %464, %465 : vector<16x128xf32>
    %467 = vector.extract_strided_slice %454 {offsets = [0, 256], sizes = [16, 128], strides = [1, 1]} : vector<16x512xf32> to vector<16x128xf32>
    %468 = math.tanh %467 : vector<16x128xf32>
    %469 = vector.extract_strided_slice %454 {offsets = [0, 384], sizes = [16, 128], strides = [1, 1]} : vector<16x512xf32> to vector<16x128xf32>
    %470 = arith.negf %469 : vector<16x128xf32>
    %471 = math.exp %470 : vector<16x128xf32>
    %cst_119 = arith.constant 1.000000e+00 : f32
    %472 = vector.broadcast %cst_119 : f32 to vector<16x128xf32>
    %473 = arith.addf %472, %471 : vector<16x128xf32>
    %474 = arith.divf %472, %473 : vector<16x128xf32>
    %475 = arith.mulf %466, %404 : vector<16x128xf32>
    %476 = arith.mulf %460, %468 : vector<16x128xf32>
    %477 = arith.addf %475, %476 : vector<16x128xf32>
    %478 = math.tanh %477 : vector<16x128xf32>
    %479 = arith.mulf %474, %478 : vector<16x128xf32>
    %480 = arith.index_cast %447 : i32 to index
    %c0_120 = arith.constant 0 : index
    %c0_121 = arith.constant 0 : index
    %481 = vector.load %arg2[%480, %c0_120, %c0_121] : memref<8x16x512xbf16, #tpu.memory_space<vmem>>, vector<1x16x512xbf16>
    %482 = vector.shape_cast %481 : vector<1x16x512xbf16> to vector<16x512xbf16>
    %483 = arith.extf %482 : vector<16x512xbf16> to vector<16x512xf32>
    %484 = arith.truncf %438 : vector<16x128xf32> to vector<16x128xbf16>
    %cst_122 = arith.constant dense<0.000000e+00> : vector<16x512xf32>
    %485 = tpu.matmul %484, %4, %cst_122 {dimension_numbers = #tpu.dot_dimension_numbers<[1], [0], [0], [1], [0, 0, 1, 1], [], []>} : vector<16x128xbf16>, vector<128x512xbf16>, vector<16x512xf32> -> vector<16x512xf32>
    %486 = arith.addf %483, %485 : vector<16x512xf32>
    %487 = vector.extract_strided_slice %486 {offsets = [0, 0], sizes = [16, 128], strides = [1, 1]} : vector<16x512xf32> to vector<16x128xf32>
    %488 = arith.negf %487 : vector<16x128xf32>
    %489 = math.exp %488 : vector<16x128xf32>
    %cst_123 = arith.constant 1.000000e+00 : f32
    %490 = vector.broadcast %cst_123 : f32 to vector<16x128xf32>
    %491 = arith.addf %490, %489 : vector<16x128xf32>
    %492 = arith.divf %490, %491 : vector<16x128xf32>
    %493 = vector.extract_strided_slice %486 {offsets = [0, 128], sizes = [16, 128], strides = [1, 1]} : vector<16x512xf32> to vector<16x128xf32>
    %494 = arith.negf %493 : vector<16x128xf32>
    %495 = math.exp %494 : vector<16x128xf32>
    %cst_124 = arith.constant 1.000000e+00 : f32
    %496 = vector.broadcast %cst_124 : f32 to vector<16x128xf32>
    %497 = arith.addf %496, %495 : vector<16x128xf32>
    %498 = arith.divf %496, %497 : vector<16x128xf32>
    %499 = vector.extract_strided_slice %486 {offsets = [0, 256], sizes = [16, 128], strides = [1, 1]} : vector<16x512xf32> to vector<16x128xf32>
    %500 = math.tanh %499 : vector<16x128xf32>
    %501 = vector.extract_strided_slice %486 {offsets = [0, 384], sizes = [16, 128], strides = [1, 1]} : vector<16x512xf32> to vector<16x128xf32>
    %502 = arith.negf %501 : vector<16x128xf32>
    %503 = math.exp %502 : vector<16x128xf32>
    %cst_125 = arith.constant 1.000000e+00 : f32
    %504 = vector.broadcast %cst_125 : f32 to vector<16x128xf32>
    %505 = arith.addf %504, %503 : vector<16x128xf32>
    %506 = arith.divf %504, %505 : vector<16x128xf32>
    %507 = arith.mulf %498, %436 : vector<16x128xf32>
    %508 = arith.mulf %492, %500 : vector<16x128xf32>
    %509 = arith.addf %507, %508 : vector<16x128xf32>
    %510 = math.tanh %509 : vector<16x128xf32>
    %511 = arith.mulf %506, %510 : vector<16x128xf32>
    %512 = arith.index_cast %c6_i32 : i32 to index
    %c0_126 = arith.constant 0 : index
    %c0_127 = arith.constant 0 : index
    %513 = vector.load %arg5[%512, %c0_126, %c0_127] : memref<8x16x128xf32, #tpu.memory_space<vmem>>, vector<1x16x128xf32>
    %514 = vector.shape_cast %513 : vector<1x16x128xf32> to vector<16x128xf32>
    %515 = vector.shape_cast %479 : vector<16x128xf32> to vector<1x16x128xf32>
    tpu.vector_store %arg5[%512, %c0_126, %c0_127], %515 {strides = array<i32>} : memref<8x16x128xf32, #tpu.memory_space<vmem>>, vector<1x16x128xf32>,
    %516 = arith.index_cast %447 : i32 to index
    %c0_128 = arith.constant 0 : index
    %c0_129 = arith.constant 0 : index
    %517 = vector.load %arg6[%516, %c0_128, %c0_129] : memref<8x16x128xf32, #tpu.memory_space<vmem>>, vector<1x16x128xf32>
    %518 = vector.shape_cast %517 : vector<1x16x128xf32> to vector<16x128xf32>
    %519 = vector.shape_cast %511 : vector<16x128xf32> to vector<1x16x128xf32>
    tpu.vector_store %arg6[%516, %c0_128, %c0_129], %519 {strides = array<i32>} : memref<8x16x128xf32, #tpu.memory_space<vmem>>, vector<1x16x128xf32>,
    %c7_i32_130 = arith.constant 7 : i32
    %c7_i32_131 = arith.constant 7 : i32
    %520 = arith.subi %c7_i32_131, %c7_i32_130 : i32
    %521 = arith.index_cast %c7_i32_130 : i32 to index
    %c0_132 = arith.constant 0 : index
    %c0_133 = arith.constant 0 : index
    %522 = vector.load %arg1[%521, %c0_132, %c0_133] : memref<8x16x512xbf16, #tpu.memory_space<vmem>>, vector<1x16x512xbf16>
    %523 = vector.shape_cast %522 : vector<1x16x512xbf16> to vector<16x512xbf16>
    %524 = arith.extf %523 : vector<16x512xbf16> to vector<16x512xf32>
    %525 = arith.truncf %479 : vector<16x128xf32> to vector<16x128xbf16>
    %cst_134 = arith.constant dense<0.000000e+00> : vector<16x512xf32>
    %526 = tpu.matmul %525, %3, %cst_134 {dimension_numbers = #tpu.dot_dimension_numbers<[1], [0], [0], [1], [0, 0, 1, 1], [], []>} : vector<16x128xbf16>, vector<128x512xbf16>, vector<16x512xf32> -> vector<16x512xf32>
    %527 = arith.addf %524, %526 : vector<16x512xf32>
    %528 = vector.extract_strided_slice %527 {offsets = [0, 0], sizes = [16, 128], strides = [1, 1]} : vector<16x512xf32> to vector<16x128xf32>
    %529 = arith.negf %528 : vector<16x128xf32>
    %530 = math.exp %529 : vector<16x128xf32>
    %cst_135 = arith.constant 1.000000e+00 : f32
    %531 = vector.broadcast %cst_135 : f32 to vector<16x128xf32>
    %532 = arith.addf %531, %530 : vector<16x128xf32>
    %533 = arith.divf %531, %532 : vector<16x128xf32>
    %534 = vector.extract_strided_slice %527 {offsets = [0, 128], sizes = [16, 128], strides = [1, 1]} : vector<16x512xf32> to vector<16x128xf32>
    %535 = arith.negf %534 : vector<16x128xf32>
    %536 = math.exp %535 : vector<16x128xf32>
    %cst_136 = arith.constant 1.000000e+00 : f32
    %537 = vector.broadcast %cst_136 : f32 to vector<16x128xf32>
    %538 = arith.addf %537, %536 : vector<16x128xf32>
    %539 = arith.divf %537, %538 : vector<16x128xf32>
    %540 = vector.extract_strided_slice %527 {offsets = [0, 256], sizes = [16, 128], strides = [1, 1]} : vector<16x512xf32> to vector<16x128xf32>
    %541 = math.tanh %540 : vector<16x128xf32>
    %542 = vector.extract_strided_slice %527 {offsets = [0, 384], sizes = [16, 128], strides = [1, 1]} : vector<16x512xf32> to vector<16x128xf32>
    %543 = arith.negf %542 : vector<16x128xf32>
    %544 = math.exp %543 : vector<16x128xf32>
    %cst_137 = arith.constant 1.000000e+00 : f32
    %545 = vector.broadcast %cst_137 : f32 to vector<16x128xf32>
    %546 = arith.addf %545, %544 : vector<16x128xf32>
    %547 = arith.divf %545, %546 : vector<16x128xf32>
    %548 = arith.mulf %539, %477 : vector<16x128xf32>
    %549 = arith.mulf %533, %541 : vector<16x128xf32>
    %550 = arith.addf %548, %549 : vector<16x128xf32>
    %551 = math.tanh %550 : vector<16x128xf32>
    %552 = arith.mulf %547, %551 : vector<16x128xf32>
    %553 = arith.index_cast %520 : i32 to index
    %c0_138 = arith.constant 0 : index
    %c0_139 = arith.constant 0 : index
    %554 = vector.load %arg2[%553, %c0_138, %c0_139] : memref<8x16x512xbf16, #tpu.memory_space<vmem>>, vector<1x16x512xbf16>
    %555 = vector.shape_cast %554 : vector<1x16x512xbf16> to vector<16x512xbf16>
    %556 = arith.extf %555 : vector<16x512xbf16> to vector<16x512xf32>
    %557 = arith.truncf %511 : vector<16x128xf32> to vector<16x128xbf16>
    %cst_140 = arith.constant dense<0.000000e+00> : vector<16x512xf32>
    %558 = tpu.matmul %557, %4, %cst_140 {dimension_numbers = #tpu.dot_dimension_numbers<[1], [0], [0], [1], [0, 0, 1, 1], [], []>} : vector<16x128xbf16>, vector<128x512xbf16>, vector<16x512xf32> -> vector<16x512xf32>
    %559 = arith.addf %556, %558 : vector<16x512xf32>
    %560 = vector.extract_strided_slice %559 {offsets = [0, 0], sizes = [16, 128], strides = [1, 1]} : vector<16x512xf32> to vector<16x128xf32>
    %561 = arith.negf %560 : vector<16x128xf32>
    %562 = math.exp %561 : vector<16x128xf32>
    %cst_141 = arith.constant 1.000000e+00 : f32
    %563 = vector.broadcast %cst_141 : f32 to vector<16x128xf32>
    %564 = arith.addf %563, %562 : vector<16x128xf32>
    %565 = arith.divf %563, %564 : vector<16x128xf32>
    %566 = vector.extract_strided_slice %559 {offsets = [0, 128], sizes = [16, 128], strides = [1, 1]} : vector<16x512xf32> to vector<16x128xf32>
    %567 = arith.negf %566 : vector<16x128xf32>
    %568 = math.exp %567 : vector<16x128xf32>
    %cst_142 = arith.constant 1.000000e+00 : f32
    %569 = vector.broadcast %cst_142 : f32 to vector<16x128xf32>
    %570 = arith.addf %569, %568 : vector<16x128xf32>
    %571 = arith.divf %569, %570 : vector<16x128xf32>
    %572 = vector.extract_strided_slice %559 {offsets = [0, 256], sizes = [16, 128], strides = [1, 1]} : vector<16x512xf32> to vector<16x128xf32>
    %573 = math.tanh %572 : vector<16x128xf32>
    %574 = vector.extract_strided_slice %559 {offsets = [0, 384], sizes = [16, 128], strides = [1, 1]} : vector<16x512xf32> to vector<16x128xf32>
    %575 = arith.negf %574 : vector<16x128xf32>
    %576 = math.exp %575 : vector<16x128xf32>
    %cst_143 = arith.constant 1.000000e+00 : f32
    %577 = vector.broadcast %cst_143 : f32 to vector<16x128xf32>
    %578 = arith.addf %577, %576 : vector<16x128xf32>
    %579 = arith.divf %577, %578 : vector<16x128xf32>
    %580 = arith.mulf %571, %509 : vector<16x128xf32>
    %581 = arith.mulf %565, %573 : vector<16x128xf32>
    %582 = arith.addf %580, %581 : vector<16x128xf32>
    %583 = math.tanh %582 : vector<16x128xf32>
    %584 = arith.mulf %579, %583 : vector<16x128xf32>
    %585 = arith.index_cast %c7_i32_130 : i32 to index
    %c0_144 = arith.constant 0 : index
    %c0_145 = arith.constant 0 : index
    %586 = vector.load %arg5[%585, %c0_144, %c0_145] : memref<8x16x128xf32, #tpu.memory_space<vmem>>, vector<1x16x128xf32>
    %587 = vector.shape_cast %586 : vector<1x16x128xf32> to vector<16x128xf32>
    %588 = vector.shape_cast %552 : vector<16x128xf32> to vector<1x16x128xf32>
    tpu.vector_store %arg5[%585, %c0_144, %c0_145], %588 {strides = array<i32>} : memref<8x16x128xf32, #tpu.memory_space<vmem>>, vector<1x16x128xf32>,
    %589 = arith.index_cast %520 : i32 to index
    %c0_146 = arith.constant 0 : index
    %c0_147 = arith.constant 0 : index
    %590 = vector.load %arg6[%589, %c0_146, %c0_147] : memref<8x16x128xf32, #tpu.memory_space<vmem>>, vector<1x16x128xf32>
    %591 = vector.shape_cast %590 : vector<1x16x128xf32> to vector<16x128xf32>
    %592 = vector.shape_cast %584 : vector<16x128xf32> to vector<1x16x128xf32>
    tpu.vector_store %arg6[%589, %c0_146, %c0_147], %592 {strides = array<i32>} : memref<8x16x128xf32, #tpu.memory_space<vmem>>, vector<1x16x128xf32>,
    %c8_i32 = arith.constant 8 : i32
    %c0_148 = arith.constant 0 : index
    %c0_149 = arith.constant 0 : index
    %593 = vector.load %arg7[%c0_148, %c0_149] : memref<16x128xf32, #tpu.memory_space<vmem>>, vector<16x128xf32>
    tpu.vector_store %arg7[%c0_148, %c0_149], %552 {strides = array<i32>} : memref<16x128xf32, #tpu.memory_space<vmem>>, vector<16x128xf32>,
    %c0_150 = arith.constant 0 : index
    %c0_151 = arith.constant 0 : index
    %594 = vector.load %arg8[%c0_150, %c0_151] : memref<16x128xf32, #tpu.memory_space<vmem>>, vector<16x128xf32>
    tpu.vector_store %arg8[%c0_150, %c0_151], %550 {strides = array<i32>} : memref<16x128xf32, #tpu.memory_space<vmem>>, vector<16x128xf32>,
    %c0_152 = arith.constant 0 : index
    %c0_153 = arith.constant 0 : index
    %595 = vector.load %arg9[%c0_152, %c0_153] : memref<16x128xf32, #tpu.memory_space<vmem>>, vector<16x128xf32>
    tpu.vector_store %arg9[%c0_152, %c0_153], %584 {strides = array<i32>} : memref<16x128xf32, #tpu.memory_space<vmem>>, vector<16x128xf32>,
    %c0_154 = arith.constant 0 : index
    %c0_155 = arith.constant 0 : index
    %596 = vector.load %arg10[%c0_154, %c0_155] : memref<16x128xf32, #tpu.memory_space<vmem>>, vector<16x128xf32>
    tpu.vector_store %arg10[%c0_154, %c0_155], %582 {strides = array<i32>} : memref<16x128xf32, #tpu.memory_space<vmem>>, vector<16x128xf32>,
    return
  }
  func.func @transform_0(%arg0: i32) -> (i32, i32, i32) {
    %c0_i32 = arith.constant 0 : i32
    %c0_i32_0 = arith.constant 0 : i32
    %c0_i32_1 = arith.constant 0 : i32
    return %arg0, %c0_i32, %c0_i32_0 : i32, i32, i32
  }
  func.func @transform_1(%arg0: i32) -> (i32, i32, i32) {
    %c0_i32 = arith.constant 0 : i32
    %0 = arith.subi %c0_i32, %arg0 : i32
    %c0_i32_0 = arith.constant 0 : i32
    %c0_i32_1 = arith.constant 0 : i32
    %c0_i32_2 = arith.constant 0 : i32
    return %0, %c0_i32_0, %c0_i32_1 : i32, i32, i32
  }
  func.func @transform_2(%arg0: i32) -> (i32, i32) {
    %c0_i32 = arith.constant 0 : i32
    %c0_i32_0 = arith.constant 0 : i32
    %c0_i32_1 = arith.constant 0 : i32
    return %c0_i32, %c0_i32_0 : i32, i32
  }
  func.func @transform_3(%arg0: i32) -> (i32, i32) {
    %c0_i32 = arith.constant 0 : i32
    %c0_i32_0 = arith.constant 0 : i32
    %c0_i32_1 = arith.constant 0 : i32
    return %c0_i32, %c0_i32_0 : i32, i32
  }
  func.func @transform_4(%arg0: i32) -> (i32, i32, i32) {
    %c0_i32 = arith.constant 0 : i32
    %c0_i32_0 = arith.constant 0 : i32
    %c0_i32_1 = arith.constant 0 : i32
    return %arg0, %c0_i32, %c0_i32_0 : i32, i32, i32
  }
  func.func @transform_5(%arg0: i32) -> (i32, i32, i32) {
    %c0_i32 = arith.constant 0 : i32
    %0 = arith.subi %c0_i32, %arg0 : i32
    %c0_i32_0 = arith.constant 0 : i32
    %c0_i32_1 = arith.constant 0 : i32
    %c0_i32_2 = arith.constant 0 : i32
    return %0, %c0_i32_0, %c0_i32_1 : i32, i32, i32
  }
}

</mosaic_0001>

<llo_original>
// kernel: tpu_custom_call.1
$region0: #{tpu_custom_call.1}
  #allocation0 [shape = 'u32[]', space=smem, size = 0x4, offset = 0x4, fixed_abs, tag = 'smem constant byte address 0x4 - core index']
  #allocation1 [shape = 'u32[144,128]{1,0:T(1,128)}', space=vmem, size = 0x12000, scoped, tag = 'internal scratch']
  #allocation2 [shape = 'f32[16,128]{1,0:T(8,128)}', space=vmem, size = 0x2000, scoped, tag = 'scratch operand']
  #allocation3 [shape = 'f32[16,128]{1,0:T(8,128)}', space=vmem, size = 0x2000, scoped, tag = 'scratch operand']
  #allocation4 [shape = 'f32[16,128]{1,0:T(8,128)}', space=vmem, size = 0x2000, scoped, tag = 'scratch operand']
  #allocation5 [shape = 'f32[16,128]{1,0:T(8,128)}', space=vmem, size = 0x2000, scoped, tag = 'scratch operand']
  %s0 = inlined_call_operand.hbm [shape: bf16[8,16,512], index: 0, kind: input, shape index: {}]
  %s1 = inlined_call_operand.hbm [shape: bf16[8,16,512], index: 1, kind: input, shape index: {}]
  %s2 = inlined_call_operand.hbm [shape: bf16[128,512], index: 2, kind: input, shape index: {}]
  %s3 = inlined_call_operand.hbm [shape: bf16[128,512], index: 3, kind: input, shape index: {}]
  %s4 = inlined_call_operand.hbm [shape: f32[8,16,128], index: 4, kind: output, shape index: {0}]
  %s5 = inlined_call_operand.hbm [shape: f32[8,16,128], index: 5, kind: output, shape index: {1}]
  %6 = xla_tuple %s4, %s5
  %s7 = sld [smem:[#allocation0]]
  $region54: #{tpu_custom_call.1} parent=0
    _
  %s9 = ssub.s32 1, %s7
  %s10 = scalar_select 0, %s9, %s7
  $region1: #{tpu_custom_call.1} parent=0
    #allocation6 [shape = 'u8[131072]{0}', space=vmem, size = 0x20000, scoped, tag = 'input window, operand 0, single buffered']
    #allocation7 [shape = 's32[1]{0}', space=sflag, size = 0x4, scoped, tag = 'scoped memory for tpu_custom_call.1']
    #allocation8 [shape = 's32[1]{0}', space=sflag, size = 0x4, scoped, tag = 'scoped memory for tpu_custom_call.1']
    #allocation9 [shape = 'u8[131072]{0}', space=vmem, size = 0x20000, scoped, tag = 'input window, operand 1, single buffered']
    #allocation10 [shape = 's32[1]{0}', space=sflag, size = 0x4, scoped, tag = 'scoped memory for tpu_custom_call.1']
    #allocation11 [shape = 'u8[131072]{0}', space=vmem, size = 0x20000, scoped, tag = 'input window, operand 2, single buffered']
    #allocation12 [shape = 'u8[131072]{0}', space=vmem, size = 0x20000, scoped, tag = 'input window, operand 3, single buffered']
    #allocation13 [shape = 's32[1]{0}', space=sflag, size = 0x4, scoped, tag = 'scoped memory for tpu_custom_call.1']
    #allocation14 [shape = 'u8[65536]{0}', space=vmem, size = 0x10000, scoped, tag = 'output window, operand 0, single buffered']
    #allocation15 [shape = 'u8[65536]{0}', space=vmem, size = 0x10000, scoped, tag = 'output window, operand 1, single buffered']
    #allocation16 [shape = 's32[1]{0}', space=sflag, size = 0x4, scoped, tag = 'scoped memory for tpu_custom_call.1']
    %11 = vsyncpa [#allocation7], 0
    %12 = vsyncpa [#allocation10], 0
    %13 = vsyncpa [#allocation13], 0
    %14 = vsyncpa [#allocation8], 0
    %15 = vsyncpa [#allocation16], 0
    // Predicated region
    $region2: #{tpu_custom_call.1} parent=1 // pred_check
      _
    $region3: #{tpu_custom_call.1} parent=1 // pred_check_branch
      %17 = sbr.rel (0) target = $region5
    $region4: #{tpu_custom_call.1} parent=1 // pred_region
      %s19 = ssub.s32 4096, 4096
      %20 = vsyncadd [#allocation7], %s19
      %s21 = sshll.u32 [#allocation6], 4
      %s22 = int_to_ptr.vmem [resolvable:$true] %s21
      %27 = dma.hbm_to_vmem [thread:$0]  %s0, 4096, %s22, [#allocation7], 256, 256, 16
    $region5: #{tpu_custom_call.1} parent=1 // pred_fallthru
      _
    // Predicated region
    $region6: #{tpu_custom_call.1} parent=1 // pred_check
      _
    $region7: #{tpu_custom_call.1} parent=1 // pred_check_branch
      %29 = sbr.rel (0) target = $region9
    $region8: #{tpu_custom_call.1} parent=1 // pred_region
      %s30 = ssub.s32 0, 0
      %s31 = smul.u32 8, %s30
      %s33 = ssub.s32 4096, 4096
      %34 = vsyncadd [#allocation10], %s33
      %s35 = smul.addr %s31, 8
      %s36 = smul.addr %s35, 64
      %s37 = scalar_lea.hbm %s1, %s36
      %s38 = sshll.u32 [#allocation9], 4
      %s39 = int_to_ptr.vmem [resolvable:$true] %s38
      %44 = dma.hbm_to_vmem [thread:$0]  %s37, 4096, %s39, [#allocation10], 256, 256, 16
    $region9: #{tpu_custom_call.1} parent=1 // pred_fallthru
      _
    // Predicated region
    $region10: #{tpu_custom_call.1} parent=1 // pred_check
      _
    $region11: #{tpu_custom_call.1} parent=1 // pred_check_branch
      %46 = sbr.rel (0) target = $region13
    $region12: #{tpu_custom_call.1} parent=1 // pred_region
      %s48 = ssub.s32 4096, 4096
      %49 = vsyncadd [#allocation10], %s48
      %s50 = sshll.u32 [#allocation11], 4
      %s51 = int_to_ptr.vmem [resolvable:$true] %s50
      %56 = dma.hbm_to_vmem [thread:$0]  %s2, 4096, %s51, [#allocation10], 256, 256, 16
    $region13: #{tpu_custom_call.1} parent=1 // pred_fallthru
      _
    // Predicated region
    $region14: #{tpu_custom_call.1} parent=1 // pred_check
      _
    $region15: #{tpu_custom_call.1} parent=1 // pred_check_branch
      %58 = sbr.rel (0) target = $region17
    $region16: #{tpu_custom_call.1} parent=1 // pred_region
      %s60 = ssub.s32 4096, 4096
      %61 = vsyncadd [#allocation13], %s60
      %s62 = sshll.u32 [#allocation12], 4
      %s63 = int_to_ptr.vmem [resolvable:$true] %s62
      %68 = dma.hbm_to_vmem [thread:$0]  %s3, 4096, %s63, [#allocation13], 256, 256, 16
    $region17: #{tpu_custom_call.1} parent=1 // pred_fallthru
      _
    // Predicated region
    $region18: #{tpu_custom_call.1} parent=1 // pred_check
      _
    $region19: #{tpu_custom_call.1} parent=1 // pred_check_branch
      %70 = sbr.rel (0) target = $region21
    $region20: #{tpu_custom_call.1} parent=1 // pred_region
      %71 = dma.done [#allocation7], 4096
    $region21: #{tpu_custom_call.1} parent=1 // pred_fallthru
      _
    // Predicated region
    $region22: #{tpu_custom_call.1} parent=1 // pred_check
      _
    $region23: #{tpu_custom_call.1} parent=1 // pred_check_branch
      %73 = sbr.rel (0) target = $region25
    $region24: #{tpu_custom_call.1} parent=1 // pred_region
      %74 = dma.done [#allocation10], 4096
    $region25: #{tpu_custom_call.1} parent=1 // pred_fallthru
      _
    // Predicated region
    $region26: #{tpu_custom_call.1} parent=1 // pred_check
      _
    $region27: #{tpu_custom_call.1} parent=1 // pred_check_branch
      %76 = sbr.rel (0) target = $region29
    $region28: #{tpu_custom_call.1} parent=1 // pred_region
      %77 = dma.done [#allocation10], 4096
    $region29: #{tpu_custom_call.1} parent=1 // pred_fallthru
      _
    // Predicated region
    $region30: #{tpu_custom_call.1} parent=1 // pred_check
      _
    $region31: #{tpu_custom_call.1} parent=1 // pred_check_branch
      %79 = sbr.rel (0) target = $region33
    $region32: #{tpu_custom_call.1} parent=1 // pred_region
      %80 = dma.done [#allocation13], 4096
    $region33: #{tpu_custom_call.1} parent=1 // pred_fallthru
      _
    %s81 = ssub.s32 0, 0
    %s82 = smul.u32 8, %s81
    %s83 = ssub.s32 0, 0
    %s84 = smul.u32 8, %s83
    %p86 = scmp.eq.s32.totalorder 0, 0
    // Predicated region
    $region34: #{tpu_custom_call.1} parent=1 // pred_check
      %p87 = pneg %p86
    $region35: #{tpu_custom_call.1} parent=1 // pred_check_branch
      %89 = sbr.rel (%p87) target = $region37
    $region36: #{tpu_custom_call.1} parent=1 // pred_region
      %90 = vst [vmem:[#allocation2] sm:$0xff] 0.0
      %91 = vst [vmem:[#allocation2 + $0x8] sm:$0xff] 0.0
      %92 = vst [vmem:[#allocation3] sm:$0xff] 0.0
      %93 = vst [vmem:[#allocation3 + $0x8] sm:$0xff] 0.0
      %94 = vst [vmem:[#allocation4] sm:$0xff] 0.0
      %95 = vst [vmem:[#allocation4 + $0x8] sm:$0xff] 0.0
      %96 = vst [vmem:[#allocation5] sm:$0xff] 0.0
      %97 = vst [vmem:[#allocation5 + $0x8] sm:$0xff] 0.0
    $region37: #{tpu_custom_call.1} parent=1 // pred_fallthru
      _
    %v98 = vld [vmem:[#allocation11] sm:$0xff]
    %v99 = vld [vmem:[#allocation11 + $0x8] sm:$0xff]
    %v100 = vld [vmem:[#allocation11 + $0x10] sm:$0xff]
    %v101 = vld [vmem:[#allocation11 + $0x18] sm:$0xff]
    %v102 = vld [vmem:[#allocation11 + $0x20] sm:$0xff]
    %v103 = vld [vmem:[#allocation11 + $0x28] sm:$0xff]
    %v104 = vld [vmem:[#allocation11 + $0x30] sm:$0xff]
    %v105 = vld [vmem:[#allocation11 + $0x38] sm:$0xff]
    %v106 = vld [vmem:[#allocation11 + $0x40] sm:$0xff]
    %v107 = vld [vmem:[#allocation11 + $0x48] sm:$0xff]
    %v108 = vld [vmem:[#allocation11 + $0x50] sm:$0xff]
    %v109 = vld [vmem:[#allocation11 + $0x58] sm:$0xff]
    %v110 = vld [vmem:[#allocation11 + $0x60] sm:$0xff]
    %v111 = vld [vmem:[#allocation11 + $0x68] sm:$0xff]
    %v112 = vld [vmem:[#allocation11 + $0x70] sm:$0xff]
    %v113 = vld [vmem:[#allocation11 + $0x78] sm:$0xff]
    %v114 = vld [vmem:[#allocation11 + $0x80] sm:$0xff]
    %v115 = vld [vmem:[#allocation11 + $0x88] sm:$0xff]
    %v116 = vld [vmem:[#allocation11 + $0x90] sm:$0xff]
    %v117 = vld [vmem:[#allocation11 + $0x98] sm:$0xff]
    %v118 = vld [vmem:[#allocation11 + $0xa0] sm:$0xff]
    %v119 = vld [vmem:[#allocation11 + $0xa8] sm:$0xff]
    %v120 = vld [vmem:[#allocation11 + $0xb0] sm:$0xff]
    %v121 = vld [vmem:[#allocation11 + $0xb8] sm:$0xff]
    %v122 = vld [vmem:[#allocation11 + $0xc0] sm:$0xff]
    %v123 = vld [vmem:[#allocation11 + $0xc8] sm:$0xff]
    %v124 = vld [vmem:[#allocation11 + $0xd0] sm:$0xff]
    %v125 = vld [vmem:[#allocation11 + $0xd8] sm:$0xff]
    %v126 = vld [vmem:[#allocation11 + $0xe0] sm:$0xff]
    %v127 = vld [vmem:[#allocation11 + $0xe8] sm:$0xff]
    %v128 = vld [vmem:[#allocation11 + $0xf0] sm:$0xff]
    %v129 = vld [vmem:[#allocation11 + $0xf8] sm:$0xff]
    %v130 = vld [vmem:[#allocation12] sm:$0xff]
    %v131 = vld [vmem:[#allocation12 + $0x8] sm:$0xff]
    %v132 = vld [vmem:[#allocation12 + $0x10] sm:$0xff]
    %v133 = vld [vmem:[#allocation12 + $0x18] sm:$0xff]
    %v134 = vld [vmem:[#allocation12 + $0x20] sm:$0xff]
    %v135 = vld [vmem:[#allocation12 + $0x28] sm:$0xff]
    %v136 = vld [vmem:[#allocation12 + $0x30] sm:$0xff]
    %v137 = vld [vmem:[#allocation12 + $0x38] sm:$0xff]
    %v138 = vld [vmem:[#allocation12 + $0x40] sm:$0xff]
    %v139 = vld [vmem:[#allocation12 + $0x48] sm:$0xff]
    %v140 = vld [vmem:[#allocation12 + $0x50] sm:$0xff]
    %v141 = vld [vmem:[#allocation12 + $0x58] sm:$0xff]
    %v142 = vld [vmem:[#allocation12 + $0x60] sm:$0xff]
    %v143 = vld [vmem:[#allocation12 + $0x68] sm:$0xff]
    %v144 = vld [vmem:[#allocation12 + $0x70] sm:$0xff]
    %v145 = vld [vmem:[#allocation12 + $0x78] sm:$0xff]
    %v146 = vld [vmem:[#allocation12 + $0x80] sm:$0xff]
    %v147 = vld [vmem:[#allocation12 + $0x88] sm:$0xff]
    %v148 = vld [vmem:[#allocation12 + $0x90] sm:$0xff]
    %v149 = vld [vmem:[#allocation12 + $0x98] sm:$0xff]
    %v150 = vld [vmem:[#allocation12 + $0xa0] sm:$0xff]
    %v151 = vld [vmem:[#allocation12 + $0xa8] sm:$0xff]
    %v152 = vld [vmem:[#allocation12 + $0xb0] sm:$0xff]
    %v153 = vld [vmem:[#allocation12 + $0xb8] sm:$0xff]
    %v154 = vld [vmem:[#allocation12 + $0xc0] sm:$0xff]
    %v155 = vld [vmem:[#allocation12 + $0xc8] sm:$0xff]
    %v156 = vld [vmem:[#allocation12 + $0xd0] sm:$0xff]
    %v157 = vld [vmem:[#allocation12 + $0xd8] sm:$0xff]
    %v158 = vld [vmem:[#allocation12 + $0xe0] sm:$0xff]
    %v159 = vld [vmem:[#allocation12 + $0xe8] sm:$0xff]
    %v160 = vld [vmem:[#allocation12 + $0xf0] sm:$0xff]
    %v161 = vld [vmem:[#allocation12 + $0xf8] sm:$0xff]
    %v162 = vld [vmem:[#allocation2] sm:$0xff]
    %v163 = vld [vmem:[#allocation2 + $0x8] sm:$0xff]
    %v164 = vld [vmem:[#allocation3] sm:$0xff]
    %v165 = vld [vmem:[#allocation3 + $0x8] sm:$0xff]
    %v166 = vld [vmem:[#allocation4] sm:$0xff]
    %v167 = vld [vmem:[#allocation4 + $0x8] sm:$0xff]
    %v168 = vld [vmem:[#allocation5] sm:$0xff]
    %v169 = vld [vmem:[#allocation5 + $0x8] sm:$0xff]
    %v170 = vld [vmem:[#allocation6] sm:$0xff]
    %v171 = vld [vmem:[#allocation6 + $0x8] sm:$0xff]
    %v172 = vld [vmem:[#allocation6 + $0x10] sm:$0xff]
    %v173 = vld [vmem:[#allocation6 + $0x18] sm:$0xff]
    %v174 = vunpack.c.l.bf16 %v170
    %v175 = vunpack.c.h.bf16 %v170
    %v176 = vunpack.c.l.bf16 %v171
    %v177 = vunpack.c.h.bf16 %v171
    %v178 = vunpack.c.l.bf16 %v172
    %v179 = vunpack.c.h.bf16 %v172
    %v180 = vunpack.c.l.bf16 %v173
    %v181 = vunpack.c.h.bf16 %v173
    %v182 = vpack.c.bf16 %v163, %v162
    %v215 = vunpack.c.l.b16 %v98
    %v216 = vunpack.c.h.b16 %v98
    %v217 = vunpack.c.l.b16 %v99
    %v218 = vunpack.c.h.b16 %v99
    %v219 = vunpack.c.l.b16 %v100
    %v220 = vunpack.c.h.b16 %v100
    %v221 = vunpack.c.l.b16 %v101
    %v222 = vunpack.c.h.b16 %v101
    %v223 = vunpack.c.l.b16 %v102
    %v224 = vunpack.c.h.b16 %v102
    %v225 = vunpack.c.l.b16 %v103
    %v226 = vunpack.c.h.b16 %v103
    %v227 = vunpack.c.l.b16 %v104
    %v228 = vunpack.c.h.b16 %v104
    %v229 = vunpack.c.l.b16 %v105
    %v230 = vunpack.c.h.b16 %v105
    %v231 = vunpack.c.l.b16 %v106
    %v232 = vunpack.c.h.b16 %v106
    %v233 = vunpack.c.l.b16 %v107
    %v234 = vunpack.c.h.b16 %v107
    %v235 = vunpack.c.l.b16 %v108
    %v236 = vunpack.c.h.b16 %v108
    %v237 = vunpack.c.l.b16 %v109
    %v238 = vunpack.c.h.b16 %v109
    %v239 = vunpack.c.l.b16 %v110
    %v240 = vunpack.c.h.b16 %v110
    %v241 = vunpack.c.l.b16 %v111
    %v242 = vunpack.c.h.b16 %v111
    %v243 = vunpack.c.l.b16 %v112
    %v244 = vunpack.c.h.b16 %v112
    %v245 = vunpack.c.l.b16 %v113
    %v246 = vunpack.c.h.b16 %v113
    %v247 = vunpack.c.l.b16 %v114
    %v248 = vunpack.c.h.b16 %v114
    %v249 = vunpack.c.l.b16 %v115
    %v250 = vunpack.c.h.b16 %v115
    %v251 = vunpack.c.l.b16 %v116
    %v252 = vunpack.c.h.b16 %v116
    %v253 = vunpack.c.l.b16 %v117
    %v254 = vunpack.c.h.b16 %v117
    %v255 = vunpack.c.l.b16 %v118
    %v256 = vunpack.c.h.b16 %v118
    %v257 = vunpack.c.l.b16 %v119
    %v258 = vunpack.c.h.b16 %v119
    %v259 = vunpack.c.l.b16 %v120
    %v260 = vunpack.c.h.b16 %v120
    %v261 = vunpack.c.l.b16 %v121
    %v262 = vunpack.c.h.b16 %v121
    %v263 = vunpack.c.l.b16 %v122
    %v264 = vunpack.c.h.b16 %v122
    %v265 = vunpack.c.l.b16 %v123
    %v266 = vunpack.c.h.b16 %v123
    %v267 = vunpack.c.l.b16 %v124
    %v268 = vunpack.c.h.b16 %v124
    %v269 = vunpack.c.l.b16 %v125
    %v270 = vunpack.c.h.b16 %v125
    %v271 = vunpack.c.l.b16 %v126
    %v272 = vunpack.c.h.b16 %v126
    %v273 = vunpack.c.l.b16 %v127
    %v274 = vunpack.c.h.b16 %v127
    %v275 = vunpack.c.l.b16 %v128
    %v276 = vunpack.c.h.b16 %v128
    %v277 = vunpack.c.l.b16 %v129
    %v278 = vunpack.c.h.b16 %v129
    %v279 = vpack.c.b16 %v219, %v215
    %v280 = vpack.c.b16 %v220, %v216
    %v281 = vpack.c.b16 %v221, %v217
    %v282 = vpack.c.b16 %v222, %v218
    %v283 = vpack.c.b16 %v227, %v223
    %v284 = vpack.c.b16 %v228, %v224
    %v285 = vpack.c.b16 %v229, %v225
    %v286 = vpack.c.b16 %v230, %v226
    %v287 = vpack.c.b16 %v235, %v231
    %v288 = vpack.c.b16 %v236, %v232
    %v289 = vpack.c.b16 %v237, %v233
    %v290 = vpack.c.b16 %v238, %v234
    %v291 = vpack.c.b16 %v243, %v239
    %v292 = vpack.c.b16 %v244, %v240
    %v293 = vpack.c.b16 %v245, %v241
    %v294 = vpack.c.b16 %v246, %v242
    %v295 = vpack.c.b16 %v251, %v247
    %v296 = vpack.c.b16 %v252, %v248
    %v297 = vpack.c.b16 %v253, %v249
    %v298 = vpack.c.b16 %v254, %v250
    %v299 = vpack.c.b16 %v259, %v255
    %v300 = vpack.c.b16 %v260, %v256
    %v301 = vpack.c.b16 %v261, %v257
    %v302 = vpack.c.b16 %v262, %v258
    %v303 = vpack.c.b16 %v267, %v263
    %v304 = vpack.c.b16 %v268, %v264
    %v305 = vpack.c.b16 %v269, %v265
    %v306 = vpack.c.b16 %v270, %v266
    %v307 = vpack.c.b16 %v275, %v271
    %v308 = vpack.c.b16 %v276, %v272
    %v309 = vpack.c.b16 %v277, %v273
    %v310 = vpack.c.b16 %v278, %v274
    %343 = vmatprep.subr.bf16.mxu0 %v280
    %344 = vmatpush1.bf16.msra.mxu0 %v279
    %345 = vmatprep.subr.bf16.mxu0 %v284
    %346 = vmatpush1.bf16.msra.mxu0 %v283
    %347 = vmatprep.subr.bf16.mxu0 %v288
    %348 = vmatpush1.bf16.msra.mxu0 %v287
    %349 = vmatprep.subr.bf16.mxu0 %v292
    %350 = vmatpush1.bf16.msra.mxu0 %v291
    %351 = vmatprep.subr.bf16.mxu0 %v296
    %352 = vmatpush1.bf16.msra.mxu0 %v295
    %353 = vmatprep.subr.bf16.mxu0 %v300
    %354 = vmatpush1.bf16.msra.mxu0 %v299
    %355 = vmatprep.subr.bf16.mxu0 %v304
    %356 = vmatpush1.bf16.msra.mxu0 %v303
    %357 = vmatprep.subr.bf16.mxu0 %v308
    %358 = vmatpush1.bf16.msra.mxu0 %v307
    %359 = vmatprep.subr.bf16.mxu0 0
    %360 = vmatpush1.bf16.msra.mxu0 0
    %361 = vmatprep.subr.bf16.mxu0 0
    %362 = vmatpush1.bf16.msra.mxu0 0
    %363 = vmatprep.subr.bf16.mxu0 0
    %364 = vmatpush1.bf16.msra.mxu0 0
    %365 = vmatprep.subr.bf16.mxu0 0
    %366 = vmatpush1.bf16.msra.mxu0 0
    %367 = vmatprep.subr.bf16.mxu0 0
    %368 = vmatpush1.bf16.msra.mxu0 0
    %369 = vmatprep.subr.bf16.mxu0 0
    %370 = vmatpush1.bf16.msra.mxu0 0
    %371 = vmatprep.subr.bf16.mxu0 0
    %372 = vmatpush1.bf16.msra.mxu0 0
    %373 = vmatprep.subr.bf16.mxu0 0
    %374 = vmatpush1.bf16.msra.mxu0 0
    %375 = vmatprep.mubr.bf16.mxu0 0
    %376 = vmatmul.mubr.bf16.gmra.mrb[0].mxu0 %v182
    %v377 = vpop.f32.mrb[0].mxu0
    %v378 = vadd.f32 0.0, %v377
    %v379 = vpop.f32.mrb[0].mxu0
    %v380 = vadd.f32 0.0, %v379
    %v381 = vpop.f32.mrb[0].mxu0
    %v382 = vadd.f32 0.0, %v381
    %v383 = vpop.f32.mrb[0].mxu0
    %v384 = vadd.f32 0.0, %v383
    %385 = vdwg.mxu0
    %386 = vmatprep.subr.bf16.mxu0 %v282
    %387 = vmatpush1.bf16.msra.mxu0 %v281
    %388 = vmatprep.subr.bf16.mxu0 %v286
    %389 = vmatpush1.bf16.msra.mxu0 %v285
    %390 = vmatprep.subr.bf16.mxu0 %v290
    %391 = vmatpush1.bf16.msra.mxu0 %v289
    %392 = vmatprep.subr.bf16.mxu0 %v294
    %393 = vmatpush1.bf16.msra.mxu0 %v293
    %394 = vmatprep.subr.bf16.mxu0 %v298
    %395 = vmatpush1.bf16.msra.mxu0 %v297
    %396 = vmatprep.subr.bf16.mxu0 %v302
    %397 = vmatpush1.bf16.msra.mxu0 %v301
    %398 = vmatprep.subr.bf16.mxu0 %v306
    %399 = vmatpush1.bf16.msra.mxu0 %v305
    %400 = vmatprep.subr.bf16.mxu0 %v310
    %401 = vmatpush1.bf16.msra.mxu0 %v309
    %402 = vmatprep.subr.bf16.mxu0 0
    %403 = vmatpush1.bf16.msra.mxu0 0
    %404 = vmatprep.subr.bf16.mxu0 0
    %405 = vmatpush1.bf16.msra.mxu0 0
    %406 = vmatprep.subr.bf16.mxu0 0
    %407 = vmatpush1.bf16.msra.mxu0 0
    %408 = vmatprep.subr.bf16.mxu0 0
    %409 = vmatpush1.bf16.msra.mxu0 0
    %410 = vmatprep.subr.bf16.mxu0 0
    %411 = vmatpush1.bf16.msra.mxu0 0
    %412 = vmatprep.subr.bf16.mxu0 0
    %413 = vmatpush1.bf16.msra.mxu0 0
    %414 = vmatprep.subr.bf16.mxu0 0
    %415 = vmatpush1.bf16.msra.mxu0 0
    %416 = vmatprep.subr.bf16.mxu0 0
    %417 = vmatpush1.bf16.msra.mxu0 0
    %418 = vmatprep.mubr.bf16.mxu0 0
    %419 = vmatmul.mubr.bf16.gmra.mrb[0].mxu0 %v182
    %v420 = vpop.f32.mrb[0].mxu0
    %v421 = vadd.f32 0.0, %v420
    %v422 = vpop.f32.mrb[0].mxu0
    %v423 = vadd.f32 0.0, %v422
    %v424 = vpop.f32.mrb[0].mxu0
    %v425 = vadd.f32 0.0, %v424
    %v426 = vpop.f32.mrb[0].mxu0
    %v427 = vadd.f32 0.0, %v426
    %428 = vdwg.mxu0
    %v429 = vadd.f32 %v174, %v378
    %v430 = vadd.f32 %v175, %v380
    %v431 = vadd.f32 %v176, %v421
    %v432 = vadd.f32 %v177, %v423
    %v433 = vadd.f32 %v178, %v382
    %v434 = vadd.f32 %v179, %v384
    %v435 = vadd.f32 %v180, %v425
    %v436 = vadd.f32 %v181, %v427
    %v437 = vxor.u32 %v429, 2147483648
    %v438 = vxor.u32 %v433, 2147483648
    %v439 = vmul.f32 %v437, 1.442695
    %v440 = vpow.pop %v439
    %v441 = vmul.f32 %v438, 1.442695
    %v442 = vpow.pop %v441
    %v443 = vadd.f32 %v440, 1.0
    %v444 = vadd.f32 %v442, 1.0
    %v445 = vrcp.pop %v443
    %v446 = vmul.f32 1.0, %v445
    %v447 = vrcp.pop %v444
    %v448 = vmul.f32 1.0, %v447
    %v449 = vxor.u32 %v430, 2147483648
    %v450 = vxor.u32 %v434, 2147483648
    %v451 = vmul.f32 %v449, 1.442695
    %v452 = vpow.pop %v451
    %v453 = vmul.f32 %v450, 1.442695
    %v454 = vpow.pop %v453
    %v455 = vadd.f32 %v452, 1.0
    %v456 = vadd.f32 %v454, 1.0
    %v457 = vrcp.pop %v455
    %v458 = vmul.f32 1.0, %v457
    %v459 = vrcp.pop %v456
    %v460 = vmul.f32 1.0, %v459
    %v461 = vtanh.pop %v431
    %v462 = vtanh.pop %v435
    %v463 = vxor.u32 %v432, 2147483648
    %v464 = vxor.u32 %v436, 2147483648
    %v465 = vmul.f32 %v463, 1.442695
    %v466 = vpow.pop %v465
    %v467 = vmul.f32 %v464, 1.442695
    %v468 = vpow.pop %v467
    %v469 = vadd.f32 %v466, 1.0
    %v470 = vadd.f32 %v468, 1.0
    %v471 = vrcp.pop %v469
    %v472 = vmul.f32 1.0, %v471
    %v473 = vrcp.pop %v470
    %v474 = vmul.f32 1.0, %v473
    %v475 = vmul.f32 %v458, %v164
    %v476 = vmul.f32 %v460, %v165
    %v477 = vmul.f32 %v446, %v461
    %v478 = vmul.f32 %v448, %v462
    %v479 = vadd.f32 %v475, %v477
    %v480 = vadd.f32 %v476, %v478
    %v481 = vtanh.pop %v479
    %v482 = vtanh.pop %v480
    %v483 = vmul.f32 %v472, %v481
    %v484 = vmul.f32 %v474, %v482
    %s485 = scalar_lea.vmem [#allocation9], 224
    %v486 = vld [vmem:[%s485] sm:$0xff]
    %v487 = vld [vmem:[%s485 + $0x8] sm:$0xff]
    %v488 = vld [vmem:[%s485 + $0x10] sm:$0xff]
    %v489 = vld [vmem:[%s485 + $0x18] sm:$0xff]
    %v490 = vunpack.c.l.bf16 %v486
    %v491 = vunpack.c.h.bf16 %v486
    %v492 = vunpack.c.l.bf16 %v487
    %v493 = vunpack.c.h.bf16 %v487
    %v494 = vunpack.c.l.bf16 %v488
    %v495 = vunpack.c.h.bf16 %v488
    %v496 = vunpack.c.l.bf16 %v489
    %v497 = vunpack.c.h.bf16 %v489
    %v498 = vpack.c.bf16 %v167, %v166
    %v531 = vunpack.c.l.b16 %v130
    %v532 = vunpack.c.h.b16 %v130
    %v533 = vunpack.c.l.b16 %v131
    %v534 = vunpack.c.h.b16 %v131
    %v535 = vunpack.c.l.b16 %v132
    %v536 = vunpack.c.h.b16 %v132
    %v537 = vunpack.c.l.b16 %v133
    %v538 = vunpack.c.h.b16 %v133
    %v539 = vunpack.c.l.b16 %v134
    %v540 = vunpack.c.h.b16 %v134
    %v541 = vunpack.c.l.b16 %v135
    %v542 = vunpack.c.h.b16 %v135
    %v543 = vunpack.c.l.b16 %v136
    %v544 = vunpack.c.h.b16 %v136
    %v545 = vunpack.c.l.b16 %v137
    %v546 = vunpack.c.h.b16 %v137
    %v547 = vunpack.c.l.b16 %v138
    %v548 = vunpack.c.h.b16 %v138
    %v549 = vunpack.c.l.b16 %v139
    %v550 = vunpack.c.h.b16 %v139
    %v551 = vunpack.c.l.b16 %v140
    %v552 = vunpack.c.h.b16 %v140
    %v553 = vunpack.c.l.b16 %v141
    %v554 = vunpack.c.h.b16 %v141
    %v555 = vunpack.c.l.b16 %v142
    %v556 = vunpack.c.h.b16 %v142
    %v557 = vunpack.c.l.b16 %v143
    %v558 = vunpack.c.h.b16 %v143
    %v559 = vunpack.c.l.b16 %v144
    %v560 = vunpack.c.h.b16 %v144
    %v561 = vunpack.c.l.b16 %v145
    %v562 = vunpack.c.h.b16 %v145
    %v563 = vunpack.c.l.b16 %v146
    %v564 = vunpack.c.h.b16 %v146
    %v565 = vunpack.c.l.b16 %v147
    %v566 = vunpack.c.h.b16 %v147
    %v567 = vunpack.c.l.b16 %v148
    %v568 = vunpack.c.h.b16 %v148
    %v569 = vunpack.c.l.b16 %v149
    %v570 = vunpack.c.h.b16 %v149
    %v571 = vunpack.c.l.b16 %v150
    %v572 = vunpack.c.h.b16 %v150
    %v573 = vunpack.c.l.b16 %v151
    %v574 = vunpack.c.h.b16 %v151
    %v575 = vunpack.c.l.b16 %v152
    %v576 = vunpack.c.h.b16 %v152
    %v577 = vunpack.c.l.b16 %v153
    %v578 = vunpack.c.h.b16 %v153
    %v579 = vunpack.c.l.b16 %v154
    %v580 = vunpack.c.h.b16 %v154
    %v581 = vunpack.c.l.b16 %v155
    %v582 = vunpack.c.h.b16 %v155
    %v583 = vunpack.c.l.b16 %v156
    %v584 = vunpack.c.h.b16 %v156
    %v585 = vunpack.c.l.b16 %v157
    %v586 = vunpack.c.h.b16 %v157
    %v587 = vunpack.c.l.b16 %v158
    %v588 = vunpack.c.h.b16 %v158
    %v589 = vunpack.c.l.b16 %v159
    %v590 = vunpack.c.h.b16 %v159
    %v591 = vunpack.c.l.b16 %v160
    %v592 = vunpack.c.h.b16 %v160
    %v593 = vunpack.c.l.b16 %v161
    %v594 = vunpack.c.h.b16 %v161
    %v595 = vpack.c.b16 %v535, %v531
    %v596 = vpack.c.b16 %v536, %v532
    %v597 = vpack.c.b16 %v537, %v533
    %v598 = vpack.c.b16 %v538, %v534
    %v599 = vpack.c.b16 %v543, %v539
    %v600 = vpack.c.b16 %v544, %v540
    %v601 = vpack.c.b16 %v545, %v541
    %v602 = vpack.c.b16 %v546, %v542
    %v603 = vpack.c.b16 %v551, %v547
    %v604 = vpack.c.b16 %v552, %v548
    %v605 = vpack.c.b16 %v553, %v549
    %v606 = vpack.c.b16 %v554, %v550
    %v607 = vpack.c.b16 %v559, %v555
    %v608 = vpack.c.b16 %v560, %v556
    %v609 = vpack.c.b16 %v561, %v557
    %v610 = vpack.c.b16 %v562, %v558
    %v611 = vpack.c.b16 %v567, %v563
    %v612 = vpack.c.b16 %v568, %v564
    %v613 = vpack.c.b16 %v569, %v565
    %v614 = vpack.c.b16 %v570, %v566
    %v615 = vpack.c.b16 %v575, %v571
    %v616 = vpack.c.b16 %v576, %v572
    %v617 = vpack.c.b16 %v577, %v573
    %v618 = vpack.c.b16 %v578, %v574
    %v619 = vpack.c.b16 %v583, %v579
    %v620 = vpack.c.b16 %v584, %v580
    %v621 = vpack.c.b16 %v585, %v581
    %v622 = vpack.c.b16 %v586, %v582
    %v623 = vpack.c.b16 %v591, %v587
    %v624 = vpack.c.b16 %v592, %v588
    %v625 = vpack.c.b16 %v593, %v589
    %v626 = vpack.c.b16 %v594, %v590
    %659 = vmatprep.subr.bf16.mxu0 %v596
    %660 = vmatpush1.bf16.msra.mxu0 %v595
    %661 = vmatprep.subr.bf16.mxu0 %v600
    %662 = vmatpush1.bf16.msra.mxu0 %v599
    %663 = vmatprep.subr.bf16.mxu0 %v604
    %664 = vmatpush1.bf16.msra.mxu0 %v603
    %665 = vmatprep.subr.bf16.mxu0 %v608
    %666 = vmatpush1.bf16.msra.mxu0 %v607
    %667 = vmatprep.subr.bf16.mxu0 %v612
    %668 = vmatpush1.bf16.msra.mxu0 %v611
    %669 = vmatprep.subr.bf16.mxu0 %v616
    %670 = vmatpush1.bf16.msra.mxu0 %v615
    %671 = vmatprep.subr.bf16.mxu0 %v620
    %672 = vmatpush1.bf16.msra.mxu0 %v619
    %673 = vmatprep.subr.bf16.mxu0 %v624
    %674 = vmatpush1.bf16.msra.mxu0 %v623
    %675 = vmatprep.subr.bf16.mxu0 0
    %676 = vmatpush1.bf16.msra.mxu0 0
    %677 = vmatprep.subr.bf16.mxu0 0
    %678 = vmatpush1.bf16.msra.mxu0 0
    %679 = vmatprep.subr.bf16.mxu0 0
    %680 = vmatpush1.bf16.msra.mxu0 0
    %681 = vmatprep.subr.bf16.mxu0 0
    %682 = vmatpush1.bf16.msra.mxu0 0
    %683 = vmatprep.subr.bf16.mxu0 0
    %684 = vmatpush1.bf16.msra.mxu0 0
    %685 = vmatprep.subr.bf16.mxu0 0
    %686 = vmatpush1.bf16.msra.mxu0 0
    %687 = vmatprep.subr.bf16.mxu0 0
    %688 = vmatpush1.bf16.msra.mxu0 0
    %689 = vmatprep.subr.bf16.mxu0 0
    %690 = vmatpush1.bf16.msra.mxu0 0
    %691 = vmatprep.mubr.bf16.mxu0 0
    %692 = vmatmul.mubr.bf16.gmra.mrb[0].mxu0 %v498
    %v693 = vpop.f32.mrb[0].mxu0
    %v694 = vadd.f32 0.0, %v693
    %v695 = vpop.f32.mrb[0].mxu0
    %v696 = vadd.f32 0.0, %v695
    %v697 = vpop.f32.mrb[0].mxu0
    %v698 = vadd.f32 0.0, %v697
    %v699 = vpop.f32.mrb[0].mxu0
    %v700 = vadd.f32 0.0, %v699
    %701 = vdwg.mxu0
    %702 = vmatprep.subr.bf16.mxu0 %v598
    %703 = vmatpush1.bf16.msra.mxu0 %v597
    %704 = vmatprep.subr.bf16.mxu0 %v602
    %705 = vmatpush1.bf16.msra.mxu0 %v601
    %706 = vmatprep.subr.bf16.mxu0 %v606
    %707 = vmatpush1.bf16.msra.mxu0 %v605
    %708 = vmatprep.subr.bf16.mxu0 %v610
    %709 = vmatpush1.bf16.msra.mxu0 %v609
    %710 = vmatprep.subr.bf16.mxu0 %v614
    %711 = vmatpush1.bf16.msra.mxu0 %v613
    %712 = vmatprep.subr.bf16.mxu0 %v618
    %713 = vmatpush1.bf16.msra.mxu0 %v617
    %714 = vmatprep.subr.bf16.mxu0 %v622
    %715 = vmatpush1.bf16.msra.mxu0 %v621
    %716 = vmatprep.subr.bf16.mxu0 %v626
    %717 = vmatpush1.bf16.msra.mxu0 %v625
    %718 = vmatprep.subr.bf16.mxu0 0
    %719 = vmatpush1.bf16.msra.mxu0 0
    %720 = vmatprep.subr.bf16.mxu0 0
    %721 = vmatpush1.bf16.msra.mxu0 0
    %722 = vmatprep.subr.bf16.mxu0 0
    %723 = vmatpush1.bf16.msra.mxu0 0
    %724 = vmatprep.subr.bf16.mxu0 0
    %725 = vmatpush1.bf16.msra.mxu0 0
    %726 = vmatprep.subr.bf16.mxu0 0
    %727 = vmatpush1.bf16.msra.mxu0 0
    %728 = vmatprep.subr.bf16.mxu0 0
    %729 = vmatpush1.bf16.msra.mxu0 0
    %730 = vmatprep.subr.bf16.mxu0 0
    %731 = vmatpush1.bf16.msra.mxu0 0
    %732 = vmatprep.subr.bf16.mxu0 0
    %733 = vmatpush1.bf16.msra.mxu0 0
    %734 = vmatprep.mubr.bf16.mxu0 0
    %735 = vmatmul.mubr.bf16.gmra.mrb[0].mxu0 %v498
    %v736 = vpop.f32.mrb[0].mxu0
    %v737 = vadd.f32 0.0, %v736
    %v738 = vpop.f32.mrb[0].mxu0
    %v739 = vadd.f32 0.0, %v738
    %v740 = vpop.f32.mrb[0].mxu0
    %v741 = vadd.f32 0.0, %v740
    %v742 = vpop.f32.mrb[0].mxu0
    %v743 = vadd.f32 0.0, %v742
    %744 = vdwg.mxu0
    %v745 = vadd.f32 %v490, %v694
    %v746 = vadd.f32 %v491, %v696
    %v747 = vadd.f32 %v492, %v737
    %v748 = vadd.f32 %v493, %v739
    %v749 = vadd.f32 %v494, %v698
    %v750 = vadd.f32 %v495, %v700
    %v751 = vadd.f32 %v496, %v741
    %v752 = vadd.f32 %v497, %v743
    %v753 = vxor.u32 %v745, 2147483648
    %v754 = vxor.u32 %v749, 2147483648
    %v755 = vmul.f32 %v753, 1.442695
    %v756 = vpow.pop %v755
    %v757 = vmul.f32 %v754, 1.442695
    %v758 = vpow.pop %v757
    %v759 = vadd.f32 %v756, 1.0
    %v760 = vadd.f32 %v758, 1.0
    %v761 = vrcp.pop %v759
    %v762 = vmul.f32 1.0, %v761
    %v763 = vrcp.pop %v760
    %v764 = vmul.f32 1.0, %v763
    %v765 = vxor.u32 %v746, 2147483648
    %v766 = vxor.u32 %v750, 2147483648
    %v767 = vmul.f32 %v765, 1.442695
    %v768 = vpow.pop %v767
    %v769 = vmul.f32 %v766, 1.442695
    %v770 = vpow.pop %v769
    %v771 = vadd.f32 %v768, 1.0
    %v772 = vadd.f32 %v770, 1.0
    %v773 = vrcp.pop %v771
    %v774 = vmul.f32 1.0, %v773
    %v775 = vrcp.pop %v772
    %v776 = vmul.f32 1.0, %v775
    %v777 = vtanh.pop %v747
    %v778 = vtanh.pop %v751
    %v779 = vxor.u32 %v748, 2147483648
    %v780 = vxor.u32 %v752, 2147483648
    %v781 = vmul.f32 %v779, 1.442695
    %v782 = vpow.pop %v781
    %v783 = vmul.f32 %v780, 1.442695
    %v784 = vpow.pop %v783
    %v785 = vadd.f32 %v782, 1.0
    %v786 = vadd.f32 %v784, 1.0
    %v787 = vrcp.pop %v785
    %v788 = vmul.f32 1.0, %v787
    %v789 = vrcp.pop %v786
    %v790 = vmul.f32 1.0, %v789
    %v791 = vmul.f32 %v774, %v168
    %v792 = vmul.f32 %v776, %v169
    %v793 = vmul.f32 %v762, %v777
    %v794 = vmul.f32 %v764, %v778
    %v795 = vadd.f32 %v791, %v793
    %v796 = vadd.f32 %v792, %v794
    %v797 = vtanh.pop %v795
    %v798 = vtanh.pop %v796
    %v799 = vmul.f32 %v788, %v797
    %v800 = vmul.f32 %v790, %v798
    %801 = vst [vmem:[#allocation14] sm:$0xff] %v483
    %802 = vst [vmem:[#allocation14 + $0x8] sm:$0xff] %v484
    %s803 = scalar_lea.vmem [#allocation15], 112
    %804 = vst [vmem:[%s803] sm:$0xff] %v799
    %805 = vst [vmem:[%s803 + $0x8] sm:$0xff] %v800
    %s806 = scalar_lea.vmem [#allocation6], 32
    %v807 = vld [vmem:[%s806] sm:$0xff]
    %v808 = vld [vmem:[%s806 + $0x8] sm:$0xff]
    %v809 = vld [vmem:[%s806 + $0x10] sm:$0xff]
    %v810 = vld [vmem:[%s806 + $0x18] sm:$0xff]
    %v811 = vunpack.c.l.bf16 %v807
    %v812 = vunpack.c.h.bf16 %v807
    %v813 = vunpack.c.l.bf16 %v808
    %v814 = vunpack.c.h.bf16 %v808
    %v815 = vunpack.c.l.bf16 %v809
    %v816 = vunpack.c.h.bf16 %v809
    %v817 = vunpack.c.l.bf16 %v810
    %v818 = vunpack.c.h.bf16 %v810
    %v819 = vpack.c.bf16 %v484, %v483
    %820 = vmatprep.subr.bf16.mxu0 %v280
    %821 = vmatpush1.bf16.msra.mxu0 %v279
    %822 = vmatprep.subr.bf16.mxu0 %v284
    %823 = vmatpush1.bf16.msra.mxu0 %v283
    %824 = vmatprep.subr.bf16.mxu0 %v288
    %825 = vmatpush1.bf16.msra.mxu0 %v287
    %826 = vmatprep.subr.bf16.mxu0 %v292
    %827 = vmatpush1.bf16.msra.mxu0 %v291
    %828 = vmatprep.subr.bf16.mxu0 %v296
    %829 = vmatpush1.bf16.msra.mxu0 %v295
    %830 = vmatprep.subr.bf16.mxu0 %v300
    %831 = vmatpush1.bf16.msra.mxu0 %v299
    %832 = vmatprep.subr.bf16.mxu0 %v304
    %833 = vmatpush1.bf16.msra.mxu0 %v303
    %834 = vmatprep.subr.bf16.mxu0 %v308
    %835 = vmatpush1.bf16.msra.mxu0 %v307
    %836 = vmatprep.subr.bf16.mxu0 0
    %837 = vmatpush1.bf16.msra.mxu0 0
    %838 = vmatprep.subr.bf16.mxu0 0
    %839 = vmatpush1.bf16.msra.mxu0 0
    %840 = vmatprep.subr.bf16.mxu0 0
    %841 = vmatpush1.bf16.msra.mxu0 0
    %842 = vmatprep.subr.bf16.mxu0 0
    %843 = vmatpush1.bf16.msra.mxu0 0
    %844 = vmatprep.subr.bf16.mxu0 0
    %845 = vmatpush1.bf16.msra.mxu0 0
    %846 = vmatprep.subr.bf16.mxu0 0
    %847 = vmatpush1.bf16.msra.mxu0 0
    %848 = vmatprep.subr.bf16.mxu0 0
    %849 = vmatpush1.bf16.msra.mxu0 0
    %850 = vmatprep.subr.bf16.mxu0 0
    %851 = vmatpush1.bf16.msra.mxu0 0
    %852 = vmatprep.mubr.bf16.mxu0 0
    %853 = vmatmul.mubr.bf16.gmra.mrb[0].mxu0 %v819
    %v854 = vpop.f32.mrb[0].mxu0
    %v855 = vadd.f32 0.0, %v854
    %v856 = vpop.f32.mrb[0].mxu0
    %v857 = vadd.f32 0.0, %v856
    %v858 = vpop.f32.mrb[0].mxu0
    %v859 = vadd.f32 0.0, %v858
    %v860 = vpop.f32.mrb[0].mxu0
    %v861 = vadd.f32 0.0, %v860
    %862 = vdwg.mxu0
    %863 = vmatprep.subr.bf16.mxu0 %v282
    %864 = vmatpush1.bf16.msra.mxu0 %v281
    %865 = vmatprep.subr.bf16.mxu0 %v286
    %866 = vmatpush1.bf16.msra.mxu0 %v285
    %867 = vmatprep.subr.bf16.mxu0 %v290
    %868 = vmatpush1.bf16.msra.mxu0 %v289
    %869 = vmatprep.subr.bf16.mxu0 %v294
    %870 = vmatpush1.bf16.msra.mxu0 %v293
    %871 = vmatprep.subr.bf16.mxu0 %v298
    %872 = vmatpush1.bf16.msra.mxu0 %v297
    %873 = vmatprep.subr.bf16.mxu0 %v302
    %874 = vmatpush1.bf16.msra.mxu0 %v301
    %875 = vmatprep.subr.bf16.mxu0 %v306
    %876 = vmatpush1.bf16.msra.mxu0 %v305
    %877 = vmatprep.subr.bf16.mxu0 %v310
    %878 = vmatpush1.bf16.msra.mxu0 %v309
    %879 = vmatprep.subr.bf16.mxu0 0
    %880 = vmatpush1.bf16.msra.mxu0 0
    %881 = vmatprep.subr.bf16.mxu0 0
    %882 = vmatpush1.bf16.msra.mxu0 0
    %883 = vmatprep.subr.bf16.mxu0 0
    %884 = vmatpush1.bf16.msra.mxu0 0
    %885 = vmatprep.subr.bf16.mxu0 0
    %886 = vmatpush1.bf16.msra.mxu0 0
    %887 = vmatprep.subr.bf16.mxu0 0
    %888 = vmatpush1.bf16.msra.mxu0 0
    %889 = vmatprep.subr.bf16.mxu0 0
    %890 = vmatpush1.bf16.msra.mxu0 0
    %891 = vmatprep.subr.bf16.mxu0 0
    %892 = vmatpush1.bf16.msra.mxu0 0
    %893 = vmatprep.subr.bf16.mxu0 0
    %894 = vmatpush1.bf16.msra.mxu0 0
    %895 = vmatprep.mubr.bf16.mxu0 0
    %896 = vmatmul.mubr.bf16.gmra.mrb[0].mxu0 %v819
    %v897 = vpop.f32.mrb[0].mxu0
    %v898 = vadd.f32 0.0, %v897
    %v899 = vpop.f32.mrb[0].mxu0
    %v900 = vadd.f32 0.0, %v899
    %v901 = vpop.f32.mrb[0].mxu0
    %v902 = vadd.f32 0.0, %v901
    %v903 = vpop.f32.mrb[0].mxu0
    %v904 = vadd.f32 0.0, %v903
    %905 = vdwg.mxu0
    %v906 = vadd.f32 %v811, %v855
    %v907 = vadd.f32 %v812, %v857
    %v908 = vadd.f32 %v813, %v898
    %v909 = vadd.f32 %v814, %v900
    %v910 = vadd.f32 %v815, %v859
    %v911 = vadd.f32 %v816, %v861
    %v912 = vadd.f32 %v817, %v902
    %v913 = vadd.f32 %v818, %v904
    %v914 = vxor.u32 %v906, 2147483648
    %v915 = vxor.u32 %v910, 2147483648
    %v916 = vmul.f32 %v914, 1.442695
    %v917 = vpow.pop %v916
    %v918 = vmul.f32 %v915, 1.442695
    %v919 = vpow.pop %v918
    %v920 = vadd.f32 %v917, 1.0
    %v921 = vadd.f32 %v919, 1.0
    %v922 = vrcp.pop %v920
    %v923 = vmul.f32 1.0, %v922
    %v924 = vrcp.pop %v921
    %v925 = vmul.f32 1.0, %v924
    %v926 = vxor.u32 %v907, 2147483648
    %v927 = vxor.u32 %v911, 2147483648
    %v928 = vmul.f32 %v926, 1.442695
    %v929 = vpow.pop %v928
    %v930 = vmul.f32 %v927, 1.442695
    %v931 = vpow.pop %v930
    %v932 = vadd.f32 %v929, 1.0
    %v933 = vadd.f32 %v931, 1.0
    %v934 = vrcp.pop %v932
    %v935 = vmul.f32 1.0, %v934
    %v936 = vrcp.pop %v933
    %v937 = vmul.f32 1.0, %v936
    %v938 = vtanh.pop %v908
    %v939 = vtanh.pop %v912
    %v940 = vxor.u32 %v909, 2147483648
    %v941 = vxor.u32 %v913, 2147483648
    %v942 = vmul.f32 %v940, 1.442695
    %v943 = vpow.pop %v942
    %v944 = vmul.f32 %v941, 1.442695
    %v945 = vpow.pop %v944
    %v946 = vadd.f32 %v943, 1.0
    %v947 = vadd.f32 %v945, 1.0
    %v948 = vrcp.pop %v946
    %v949 = vmul.f32 1.0, %v948
    %v950 = vrcp.pop %v947
    %v951 = vmul.f32 1.0, %v950
    %v952 = vmul.f32 %v935, %v479
    %v953 = vmul.f32 %v937, %v480
    %v954 = vmul.f32 %v923, %v938
    %v955 = vmul.f32 %v925, %v939
    %v956 = vadd.f32 %v952, %v954
    %v957 = vadd.f32 %v953, %v955
    %v958 = vtanh.pop %v956
    %v959 = vtanh.pop %v957
    %v960 = vmul.f32 %v949, %v958
    %v961 = vmul.f32 %v951, %v959
    %s962 = scalar_lea.vmem [#allocation9], 192
    %v963 = vld [vmem:[%s962] sm:$0xff]
    %v964 = vld [vmem:[%s962 + $0x8] sm:$0xff]
    %v965 = vld [vmem:[%s962 + $0x10] sm:$0xff]
    %v966 = vld [vmem:[%s962 + $0x18] sm:$0xff]
    %v967 = vunpack.c.l.bf16 %v963
    %v968 = vunpack.c.h.bf16 %v963
    %v969 = vunpack.c.l.bf16 %v964
    %v970 = vunpack.c.h.bf16 %v964
    %v971 = vunpack.c.l.bf16 %v965
    %v972 = vunpack.c.h.bf16 %v965
    %v973 = vunpack.c.l.bf16 %v966
    %v974 = vunpack.c.h.bf16 %v966
    %v975 = vpack.c.bf16 %v800, %v799
    %976 = vmatprep.subr.bf16.mxu0 %v596
    %977 = vmatpush1.bf16.msra.mxu0 %v595
    %978 = vmatprep.subr.bf16.mxu0 %v600
    %979 = vmatpush1.bf16.msra.mxu0 %v599
    %980 = vmatprep.subr.bf16.mxu0 %v604
    %981 = vmatpush1.bf16.msra.mxu0 %v603
    %982 = vmatprep.subr.bf16.mxu0 %v608
    %983 = vmatpush1.bf16.msra.mxu0 %v607
    %984 = vmatprep.subr.bf16.mxu0 %v612
    %985 = vmatpush1.bf16.msra.mxu0 %v611
    %986 = vmatprep.subr.bf16.mxu0 %v616
    %987 = vmatpush1.bf16.msra.mxu0 %v615
    %988 = vmatprep.subr.bf16.mxu0 %v620
    %989 = vmatpush1.bf16.msra.mxu0 %v619
    %990 = vmatprep.subr.bf16.mxu0 %v624
    %991 = vmatpush1.bf16.msra.mxu0 %v623
    %992 = vmatprep.subr.bf16.mxu0 0
    %993 = vmatpush1.bf16.msra.mxu0 0
    %994 = vmatprep.subr.bf16.mxu0 0
    %995 = vmatpush1.bf16.msra.mxu0 0
    %996 = vmatprep.subr.bf16.mxu0 0
    %997 = vmatpush1.bf16.msra.mxu0 0
    %998 = vmatprep.subr.bf16.mxu0 0
    %999 = vmatpush1.bf16.msra.mxu0 0
    %1000 = vmatprep.subr.bf16.mxu0 0
    %1001 = vmatpush1.bf16.msra.mxu0 0
    %1002 = vmatprep.subr.bf16.mxu0 0
    %1003 = vmatpush1.bf16.msra.mxu0 0
    %1004 = vmatprep.subr.bf16.mxu0 0
    %1005 = vmatpush1.bf16.msra.mxu0 0
    %1006 = vmatprep.subr.bf16.mxu0 0
    %1007 = vmatpush1.bf16.msra.mxu0 0
    %1008 = vmatprep.mubr.bf16.mxu0 0
    %1009 = vmatmul.mubr.bf16.gmra.mrb[0].mxu0 %v975
    %v1010 = vpop.f32.mrb[0].mxu0
    %v1011 = vadd.f32 0.0, %v1010
    %v1012 = vpop.f32.mrb[0].mxu0
    %v1013 = vadd.f32 0.0, %v1012
    %v1014 = vpop.f32.mrb[0].mxu0
    %v1015 = vadd.f32 0.0, %v1014
    %v1016 = vpop.f32.mrb[0].mxu0
    %v1017 = vadd.f32 0.0, %v1016
    %1018 = vdwg.mxu0
    %1019 = vmatprep.subr.bf16.mxu0 %v598
    %1020 = vmatpush1.bf16.msra.mxu0 %v597
    %1021 = vmatprep.subr.bf16.mxu0 %v602
    %1022 = vmatpush1.bf16.msra.mxu0 %v601
    %1023 = vmatprep.subr.bf16.mxu0 %v606
    %1024 = vmatpush1.bf16.msra.mxu0 %v605
    %1025 = vmatprep.subr.bf16.mxu0 %v610
    %1026 = vmatpush1.bf16.msra.mxu0 %v609
    %1027 = vmatprep.subr.bf16.mxu0 %v614
    %1028 = vmatpush1.bf16.msra.mxu0 %v613
    %1029 = vmatprep.subr.bf16.mxu0 %v618
    %1030 = vmatpush1.bf16.msra.mxu0 %v617
    %1031 = vmatprep.subr.bf16.mxu0 %v622
    %1032 = vmatpush1.bf16.msra.mxu0 %v621
    %1033 = vmatprep.subr.bf16.mxu0 %v626
    %1034 = vmatpush1.bf16.msra.mxu0 %v625
    %1035 = vmatprep.subr.bf16.mxu0 0
    %1036 = vmatpush1.bf16.msra.mxu0 0
    %1037 = vmatprep.subr.bf16.mxu0 0
    %1038 = vmatpush1.bf16.msra.mxu0 0
    %1039 = vmatprep.subr.bf16.mxu0 0
    %1040 = vmatpush1.bf16.msra.mxu0 0
    %1041 = vmatprep.subr.bf16.mxu0 0
    %1042 = vmatpush1.bf16.msra.mxu0 0
    %1043 = vmatprep.subr.bf16.mxu0 0
    %1044 = vmatpush1.bf16.msra.mxu0 0
    %1045 = vmatprep.subr.bf16.mxu0 0
    %1046 = vmatpush1.bf16.msra.mxu0 0
    %1047 = vmatprep.subr.bf16.mxu0 0
    %1048 = vmatpush1.bf16.msra.mxu0 0
    %1049 = vmatprep.subr.bf16.mxu0 0
    %1050 = vmatpush1.bf16.msra.mxu0 0
    %1051 = vmatprep.mubr.bf16.mxu0 0
    %1052 = vmatmul.mubr.bf16.gmra.mrb[0].mxu0 %v975
    %v1053 = vpop.f32.mrb[0].mxu0
    %v1054 = vadd.f32 0.0, %v1053
    %v1055 = vpop.f32.mrb[0].mxu0
    %v1056 = vadd.f32 0.0, %v1055
    %v1057 = vpop.f32.mrb[0].mxu0
    %v1058 = vadd.f32 0.0, %v1057
    %v1059 = vpop.f32.mrb[0].mxu0
    %v1060 = vadd.f32 0.0, %v1059
    %1061 = vdwg.mxu0
    %v1062 = vadd.f32 %v967, %v1011
    %v1063 = vadd.f32 %v968, %v1013
    %v1064 = vadd.f32 %v969, %v1054
    %v1065 = vadd.f32 %v970, %v1056
    %v1066 = vadd.f32 %v971, %v1015
    %v1067 = vadd.f32 %v972, %v1017
    %v1068 = vadd.f32 %v973, %v1058
    %v1069 = vadd.f32 %v974, %v1060
    %v1070 = vxor.u32 %v1062, 2147483648
    %v1071 = vxor.u32 %v1066, 2147483648
    %v1072 = vmul.f32 %v1070, 1.442695
    %v1073 = vpow.pop %v1072
    %v1074 = vmul.f32 %v1071, 1.442695
    %v1075 = vpow.pop %v1074
    %v1076 = vadd.f32 %v1073, 1.0
    %v1077 = vadd.f32 %v1075, 1.0
    %v1078 = vrcp.pop %v1076
    %v1079 = vmul.f32 1.0, %v1078
    %v1080 = vrcp.pop %v1077
    %v1081 = vmul.f32 1.0, %v1080
    %v1082 = vxor.u32 %v1063, 2147483648
    %v1083 = vxor.u32 %v1067, 2147483648
    %v1084 = vmul.f32 %v1082, 1.442695
    %v1085 = vpow.pop %v1084
    %v1086 = vmul.f32 %v1083, 1.442695
    %v1087 = vpow.pop %v1086
    %v1088 = vadd.f32 %v1085, 1.0
    %v1089 = vadd.f32 %v1087, 1.0
    %v1090 = vrcp.pop %v1088
    %v1091 = vmul.f32 1.0, %v1090
    %v1092 = vrcp.pop %v1089
    %v1093 = vmul.f32 1.0, %v1092
    %v1094 = vtanh.pop %v1064
    %v1095 = vtanh.pop %v1068
    %v1096 = vxor.u32 %v1065, 2147483648
    %v1097 = vxor.u32 %v1069, 2147483648
    %v1098 = vmul.f32 %v1096, 1.442695
    %v1099 = vpow.pop %v1098
    %v1100 = vmul.f32 %v1097, 1.442695
    %v1101 = vpow.pop %v1100
    %v1102 = vadd.f32 %v1099, 1.0
    %v1103 = vadd.f32 %v1101, 1.0
    %v1104 = vrcp.pop %v1102
    %v1105 = vmul.f32 1.0, %v1104
    %v1106 = vrcp.pop %v1103
    %v1107 = vmul.f32 1.0, %v1106
    %v1108 = vmul.f32 %v1091, %v795
    %v1109 = vmul.f32 %v1093, %v796
    %v1110 = vmul.f32 %v1079, %v1094
    %v1111 = vmul.f32 %v1081, %v1095
    %v1112 = vadd.f32 %v1108, %v1110
    %v1113 = vadd.f32 %v1109, %v1111
    %v1114 = vtanh.pop %v1112
    %v1115 = vtanh.pop %v1113
    %v1116 = vmul.f32 %v1105, %v1114
    %v1117 = vmul.f32 %v1107, %v1115
    %s1118 = scalar_lea.vmem [#allocation14], 16
    %1119 = vst [vmem:[%s1118] sm:$0xff] %v960
    %1120 = vst [vmem:[%s1118 + $0x8] sm:$0xff] %v961
    %s1121 = scalar_lea.vmem [#allocation15], 96
    %1122 = vst [vmem:[%s1121] sm:$0xff] %v1116
    %1123 = vst [vmem:[%s1121 + $0x8] sm:$0xff] %v1117
    %s1124 = scalar_lea.vmem [#allocation6], 64
    %v1125 = vld [vmem:[%s1124] sm:$0xff]
    %v1126 = vld [vmem:[%s1124 + $0x8] sm:$0xff]
    %v1127 = vld [vmem:[%s1124 + $0x10] sm:$0xff]
    %v1128 = vld [vmem:[%s1124 + $0x18] sm:$0xff]
    %v1129 = vunpack.c.l.bf16 %v1125
    %v1130 = vunpack.c.h.bf16 %v1125
    %v1131 = vunpack.c.l.bf16 %v1126
    %v1132 = vunpack.c.h.bf16 %v1126
    %v1133 = vunpack.c.l.bf16 %v1127
    %v1134 = vunpack.c.h.bf16 %v1127
    %v1135 = vunpack.c.l.bf16 %v1128
    %v1136 = vunpack.c.h.bf16 %v1128
    %v1137 = vpack.c.bf16 %v961, %v960
    %1138 = vmatprep.subr.bf16.mxu0 %v280
    %1139 = vmatpush1.bf16.msra.mxu0 %v279
    %1140 = vmatprep.subr.bf16.mxu0 %v284
    %1141 = vmatpush1.bf16.msra.mxu0 %v283
    %1142 = vmatprep.subr.bf16.mxu0 %v288
    %1143 = vmatpush1.bf16.msra.mxu0 %v287
    %1144 = vmatprep.subr.bf16.mxu0 %v292
    %1145 = vmatpush1.bf16.msra.mxu0 %v291
    %1146 = vmatprep.subr.bf16.mxu0 %v296
    %1147 = vmatpush1.bf16.msra.mxu0 %v295
    %1148 = vmatprep.subr.bf16.mxu0 %v300
    %1149 = vmatpush1.bf16.msra.mxu0 %v299
    %1150 = vmatprep.subr.bf16.mxu0 %v304
    %1151 = vmatpush1.bf16.msra.mxu0 %v303
    %1152 = vmatprep.subr.bf16.mxu0 %v308
    %1153 = vmatpush1.bf16.msra.mxu0 %v307
    %1154 = vmatprep.subr.bf16.mxu0 0
    %1155 = vmatpush1.bf16.msra.mxu0 0
    %1156 = vmatprep.subr.bf16.mxu0 0
    %1157 = vmatpush1.bf16.msra.mxu0 0
    %1158 = vmatprep.subr.bf16.mxu0 0
    %1159 = vmatpush1.bf16.msra.mxu0 0
    %1160 = vmatprep.subr.bf16.mxu0 0
    %1161 = vmatpush1.bf16.msra.mxu0 0
    %1162 = vmatprep.subr.bf16.mxu0 0
    %1163 = vmatpush1.bf16.msra.mxu0 0
    %1164 = vmatprep.subr.bf16.mxu0 0
    %1165 = vmatpush1.bf16.msra.mxu0 0
    %1166 = vmatprep.subr.bf16.mxu0 0
    %1167 = vmatpush1.bf16.msra.mxu0 0
    %1168 = vmatprep.subr.bf16.mxu0 0
    %1169 = vmatpush1.bf16.msra.mxu0 0
    %1170 = vmatprep.mubr.bf16.mxu0 0
    %1171 = vmatmul.mubr.bf16.gmra.mrb[0].mxu0 %v1137
    %v1172 = vpop.f32.mrb[0].mxu0
    %v1173 = vadd.f32 0.0, %v1172
    %v1174 = vpop.f32.mrb[0].mxu0
    %v1175 = vadd.f32 0.0, %v1174
    %v1176 = vpop.f32.mrb[0].mxu0
    %v1177 = vadd.f32 0.0, %v1176
    %v1178 = vpop.f32.mrb[0].mxu0
    %v1179 = vadd.f32 0.0, %v1178
    %1180 = vdwg.mxu0
    %1181 = vmatprep.subr.bf16.mxu0 %v282
    %1182 = vmatpush1.bf16.msra.mxu0 %v281
    %1183 = vmatprep.subr.bf16.mxu0 %v286
    %1184 = vmatpush1.bf16.msra.mxu0 %v285
    %1185 = vmatprep.subr.bf16.mxu0 %v290
    %1186 = vmatpush1.bf16.msra.mxu0 %v289
    %1187 = vmatprep.subr.bf16.mxu0 %v294
    %1188 = vmatpush1.bf16.msra.mxu0 %v293
    %1189 = vmatprep.subr.bf16.mxu0 %v298
    %1190 = vmatpush1.bf16.msra.mxu0 %v297
    %1191 = vmatprep.subr.bf16.mxu0 %v302
    %1192 = vmatpush1.bf16.msra.mxu0 %v301
    %1193 = vmatprep.subr.bf16.mxu0 %v306
    %1194 = vmatpush1.bf16.msra.mxu0 %v305
    %1195 = vmatprep.subr.bf16.mxu0 %v310
    %1196 = vmatpush1.bf16.msra.mxu0 %v309
    %1197 = vmatprep.subr.bf16.mxu0 0
    %1198 = vmatpush1.bf16.msra.mxu0 0
    %1199 = vmatprep.subr.bf16.mxu0 0
    %1200 = vmatpush1.bf16.msra.mxu0 0
    %1201 = vmatprep.subr.bf16.mxu0 0
    %1202 = vmatpush1.bf16.msra.mxu0 0
    %1203 = vmatprep.subr.bf16.mxu0 0
    %1204 = vmatpush1.bf16.msra.mxu0 0
    %1205 = vmatprep.subr.bf16.mxu0 0
    %1206 = vmatpush1.bf16.msra.mxu0 0
    %1207 = vmatprep.subr.bf16.mxu0 0
    %1208 = vmatpush1.bf16.msra.mxu0 0
    %1209 = vmatprep.subr.bf16.mxu0 0
    %1210 = vmatpush1.bf16.msra.mxu0 0
    %1211 = vmatprep.subr.bf16.mxu0 0
    %1212 = vmatpush1.bf16.msra.mxu0 0
    %1213 = vmatprep.mubr.bf16.mxu0 0
    %1214 = vmatmul.mubr.bf16.gmra.mrb[0].mxu0 %v1137
    %v1215 = vpop.f32.mrb[0].mxu0
    %v1216 = vadd.f32 0.0, %v1215
    %v1217 = vpop.f32.mrb[0].mxu0
    %v1218 = vadd.f32 0.0, %v1217
    %v1219 = vpop.f32.mrb[0].mxu0
    %v1220 = vadd.f32 0.0, %v1219
    %v1221 = vpop.f32.mrb[0].mxu0
    %v1222 = vadd.f32 0.0, %v1221
    %1223 = vdwg.mxu0
    %v1224 = vadd.f32 %v1129, %v1173
    %v1225 = vadd.f32 %v1130, %v1175
    %v1226 = vadd.f32 %v1131, %v1216
    %v1227 = vadd.f32 %v1132, %v1218
    %v1228 = vadd.f32 %v1133, %v1177
    %v1229 = vadd.f32 %v1134, %v1179
    %v1230 = vadd.f32 %v1135, %v1220
    %v1231 = vadd.f32 %v1136, %v1222
    %v1232 = vxor.u32 %v1224, 2147483648
    %v1233 = vxor.u32 %v1228, 2147483648
    %v1234 = vmul.f32 %v1232, 1.442695
    %v1235 = vpow.pop %v1234
    %v1236 = vmul.f32 %v1233, 1.442695
    %v1237 = vpow.pop %v1236
    %v1238 = vadd.f32 %v1235, 1.0
    %v1239 = vadd.f32 %v1237, 1.0
    %v1240 = vrcp.pop %v1238
    %v1241 = vmul.f32 1.0, %v1240
    %v1242 = vrcp.pop %v1239
    %v1243 = vmul.f32 1.0, %v1242
    %v1244 = vxor.u32 %v1225, 2147483648
    %v1245 = vxor.u32 %v1229, 2147483648
    %v1246 = vmul.f32 %v1244, 1.442695
    %v1247 = vpow.pop %v1246
    %v1248 = vmul.f32 %v1245, 1.442695
    %v1249 = vpow.pop %v1248
    %v1250 = vadd.f32 %v1247, 1.0
    %v1251 = vadd.f32 %v1249, 1.0
    %v1252 = vrcp.pop %v1250
    %v1253 = vmul.f32 1.0, %v1252
    %v1254 = vrcp.pop %v1251
    %v1255 = vmul.f32 1.0, %v1254
    %v1256 = vtanh.pop %v1226
    %v1257 = vtanh.pop %v1230
    %v1258 = vxor.u32 %v1227, 2147483648
    %v1259 = vxor.u32 %v1231, 2147483648
    %v1260 = vmul.f32 %v1258, 1.442695
    %v1261 = vpow.pop %v1260
    %v1262 = vmul.f32 %v1259, 1.442695
    %v1263 = vpow.pop %v1262
    %v1264 = vadd.f32 %v1261, 1.0
    %v1265 = vadd.f32 %v1263, 1.0
    %v1266 = vrcp.pop %v1264
    %v1267 = vmul.f32 1.0, %v1266
    %v1268 = vrcp.pop %v1265
    %v1269 = vmul.f32 1.0, %v1268
    %v1270 = vmul.f32 %v1253, %v956
    %v1271 = vmul.f32 %v1255, %v957
    %v1272 = vmul.f32 %v1241, %v1256
    %v1273 = vmul.f32 %v1243, %v1257
    %v1274 = vadd.f32 %v1270, %v1272
    %v1275 = vadd.f32 %v1271, %v1273
    %v1276 = vtanh.pop %v1274
    %v1277 = vtanh.pop %v1275
    %v1278 = vmul.f32 %v1267, %v1276
    %v1279 = vmul.f32 %v1269, %v1277
    %s1280 = scalar_lea.vmem [#allocation9], 160
    %v1281 = vld [vmem:[%s1280] sm:$0xff]
    %v1282 = vld [vmem:[%s1280 + $0x8] sm:$0xff]
    %v1283 = vld [vmem:[%s1280 + $0x10] sm:$0xff]
    %v1284 = vld [vmem:[%s1280 + $0x18] sm:$0xff]
    %v1285 = vunpack.c.l.bf16 %v1281
    %v1286 = vunpack.c.h.bf16 %v1281
    %v1287 = vunpack.c.l.bf16 %v1282
    %v1288 = vunpack.c.h.bf16 %v1282
    %v1289 = vunpack.c.l.bf16 %v1283
    %v1290 = vunpack.c.h.bf16 %v1283
    %v1291 = vunpack.c.l.bf16 %v1284
    %v1292 = vunpack.c.h.bf16 %v1284
    %v1293 = vpack.c.bf16 %v1117, %v1116
    %1294 = vmatprep.subr.bf16.mxu0 %v596
    %1295 = vmatpush1.bf16.msra.mxu0 %v595
    %1296 = vmatprep.subr.bf16.mxu0 %v600
    %1297 = vmatpush1.bf16.msra.mxu0 %v599
    %1298 = vmatprep.subr.bf16.mxu0 %v604
    %1299 = vmatpush1.bf16.msra.mxu0 %v603
    %1300 = vmatprep.subr.bf16.mxu0 %v608
    %1301 = vmatpush1.bf16.msra.mxu0 %v607
    %1302 = vmatprep.subr.bf16.mxu0 %v612
    %1303 = vmatpush1.bf16.msra.mxu0 %v611
    %1304 = vmatprep.subr.bf16.mxu0 %v616
    %1305 = vmatpush1.bf16.msra.mxu0 %v615
    %1306 = vmatprep.subr.bf16.mxu0 %v620
    %1307 = vmatpush1.bf16.msra.mxu0 %v619
    %1308 = vmatprep.subr.bf16.mxu0 %v624
    %1309 = vmatpush1.bf16.msra.mxu0 %v623
    %1310 = vmatprep.subr.bf16.mxu0 0
    %1311 = vmatpush1.bf16.msra.mxu0 0
    %1312 = vmatprep.subr.bf16.mxu0 0
    %1313 = vmatpush1.bf16.msra.mxu0 0
    %1314 = vmatprep.subr.bf16.mxu0 0
    %1315 = vmatpush1.bf16.msra.mxu0 0
    %1316 = vmatprep.subr.bf16.mxu0 0
    %1317 = vmatpush1.bf16.msra.mxu0 0
    %1318 = vmatprep.subr.bf16.mxu0 0
    %1319 = vmatpush1.bf16.msra.mxu0 0
    %1320 = vmatprep.subr.bf16.mxu0 0
    %1321 = vmatpush1.bf16.msra.mxu0 0
    %1322 = vmatprep.subr.bf16.mxu0 0
    %1323 = vmatpush1.bf16.msra.mxu0 0
    %1324 = vmatprep.subr.bf16.mxu0 0
    %1325 = vmatpush1.bf16.msra.mxu0 0
    %1326 = vmatprep.mubr.bf16.mxu0 0
    %1327 = vmatmul.mubr.bf16.gmra.mrb[0].mxu0 %v1293
    %v1328 = vpop.f32.mrb[0].mxu0
    %v1329 = vadd.f32 0.0, %v1328
    %v1330 = vpop.f32.mrb[0].mxu0
    %v1331 = vadd.f32 0.0, %v1330
    %v1332 = vpop.f32.mrb[0].mxu0
    %v1333 = vadd.f32 0.0, %v1332
    %v1334 = vpop.f32.mrb[0].mxu0
    %v1335 = vadd.f32 0.0, %v1334
    %1336 = vdwg.mxu0
    %1337 = vmatprep.subr.bf16.mxu0 %v598
    %1338 = vmatpush1.bf16.msra.mxu0 %v597
    %1339 = vmatprep.subr.bf16.mxu0 %v602
    %1340 = vmatpush1.bf16.msra.mxu0 %v601
    %1341 = vmatprep.subr.bf16.mxu0 %v606
    %1342 = vmatpush1.bf16.msra.mxu0 %v605
    %1343 = vmatprep.subr.bf16.mxu0 %v610
    %1344 = vmatpush1.bf16.msra.mxu0 %v609
    %1345 = vmatprep.subr.bf16.mxu0 %v614
    %1346 = vmatpush1.bf16.msra.mxu0 %v613
    %1347 = vmatprep.subr.bf16.mxu0 %v618
    %1348 = vmatpush1.bf16.msra.mxu0 %v617
    %1349 = vmatprep.subr.bf16.mxu0 %v622
    %1350 = vmatpush1.bf16.msra.mxu0 %v621
    %1351 = vmatprep.subr.bf16.mxu0 %v626
    %1352 = vmatpush1.bf16.msra.mxu0 %v625
    %1353 = vmatprep.subr.bf16.mxu0 0
    %1354 = vmatpush1.bf16.msra.mxu0 0
    %1355 = vmatprep.subr.bf16.mxu0 0
    %1356 = vmatpush1.bf16.msra.mxu0 0
    %1357 = vmatprep.subr.bf16.mxu0 0
    %1358 = vmatpush1.bf16.msra.mxu0 0
    %1359 = vmatprep.subr.bf16.mxu0 0
    %1360 = vmatpush1.bf16.msra.mxu0 0
    %1361 = vmatprep.subr.bf16.mxu0 0
    %1362 = vmatpush1.bf16.msra.mxu0 0
    %1363 = vmatprep.subr.bf16.mxu0 0
    %1364 = vmatpush1.bf16.msra.mxu0 0
    %1365 = vmatprep.subr.bf16.mxu0 0
    %1366 = vmatpush1.bf16.msra.mxu0 0
    %1367 = vmatprep.subr.bf16.mxu0 0
    %1368 = vmatpush1.bf16.msra.mxu0 0
    %1369 = vmatprep.mubr.bf16.mxu0 0
    %1370 = vmatmul.mubr.bf16.gmra.mrb[0].mxu0 %v1293
    %v1371 = vpop.f32.mrb[0].mxu0
    %v1372 = vadd.f32 0.0, %v1371
    %v1373 = vpop.f32.mrb[0].mxu0
    %v1374 = vadd.f32 0.0, %v1373
    %v1375 = vpop.f32.mrb[0].mxu0
    %v1376 = vadd.f32 0.0, %v1375
    %v1377 = vpop.f32.mrb[0].mxu0
    %v1378 = vadd.f32 0.0, %v1377
    %1379 = vdwg.mxu0
    %v1380 = vadd.f32 %v1285, %v1329
    %v1381 = vadd.f32 %v1286, %v1331
    %v1382 = vadd.f32 %v1287, %v1372
    %v1383 = vadd.f32 %v1288, %v1374
    %v1384 = vadd.f32 %v1289, %v1333
    %v1385 = vadd.f32 %v1290, %v1335
    %v1386 = vadd.f32 %v1291, %v1376
    %v1387 = vadd.f32 %v1292, %v1378
    %v1388 = vxor.u32 %v1380, 2147483648
    %v1389 = vxor.u32 %v1384, 2147483648
    %v1390 = vmul.f32 %v1388, 1.442695
    %v1391 = vpow.pop %v1390
    %v1392 = vmul.f32 %v1389, 1.442695
    %v1393 = vpow.pop %v1392
    %v1394 = vadd.f32 %v1391, 1.0
    %v1395 = vadd.f32 %v1393, 1.0
    %v1396 = vrcp.pop %v1394
    %v1397 = vmul.f32 1.0, %v1396
    %v1398 = vrcp.pop %v1395
    %v1399 = vmul.f32 1.0, %v1398
    %v1400 = vxor.u32 %v1381, 2147483648
    %v1401 = vxor.u32 %v1385, 2147483648
    %v1402 = vmul.f32 %v1400, 1.442695
    %v1403 = vpow.pop %v1402
    %v1404 = vmul.f32 %v1401, 1.442695
    %v1405 = vpow.pop %v1404
    %v1406 = vadd.f32 %v1403, 1.0
    %v1407 = vadd.f32 %v1405, 1.0
    %v1408 = vrcp.pop %v1406
    %v1409 = vmul.f32 1.0, %v1408
    %v1410 = vrcp.pop %v1407
    %v1411 = vmul.f32 1.0, %v1410
    %v1412 = vtanh.pop %v1382
    %v1413 = vtanh.pop %v1386
    %v1414 = vxor.u32 %v1383, 2147483648
    %v1415 = vxor.u32 %v1387, 2147483648
    %v1416 = vmul.f32 %v1414, 1.442695
    %v1417 = vpow.pop %v1416
    %v1418 = vmul.f32 %v1415, 1.442695
    %v1419 = vpow.pop %v1418
    %v1420 = vadd.f32 %v1417, 1.0
    %v1421 = vadd.f32 %v1419, 1.0
    %v1422 = vrcp.pop %v1420
    %v1423 = vmul.f32 1.0, %v1422
    %v1424 = vrcp.pop %v1421
    %v1425 = vmul.f32 1.0, %v1424
    %v1426 = vmul.f32 %v1409, %v1112
    %v1427 = vmul.f32 %v1411, %v1113
    %v1428 = vmul.f32 %v1397, %v1412
    %v1429 = vmul.f32 %v1399, %v1413
    %v1430 = vadd.f32 %v1426, %v1428
    %v1431 = vadd.f32 %v1427, %v1429
    %v1432 = vtanh.pop %v1430
    %v1433 = vtanh.pop %v1431
    %v1434 = vmul.f32 %v1423, %v1432
    %v1435 = vmul.f32 %v1425, %v1433
    %s1436 = scalar_lea.vmem [#allocation14], 32
    %1437 = vst [vmem:[%s1436] sm:$0xff] %v1278
    %1438 = vst [vmem:[%s1436 + $0x8] sm:$0xff] %v1279
    %s1439 = scalar_lea.vmem [#allocation15], 80
    %1440 = vst [vmem:[%s1439] sm:$0xff] %v1434
    %1441 = vst [vmem:[%s1439 + $0x8] sm:$0xff] %v1435
    %s1442 = scalar_lea.vmem [#allocation6], 96
    %v1443 = vld [vmem:[%s1442] sm:$0xff]
    %v1444 = vld [vmem:[%s1442 + $0x8] sm:$0xff]
    %v1445 = vld [vmem:[%s1442 + $0x10] sm:$0xff]
    %v1446 = vld [vmem:[%s1442 + $0x18] sm:$0xff]
    %v1447 = vunpack.c.l.bf16 %v1443
    %v1448 = vunpack.c.h.bf16 %v1443
    %v1449 = vunpack.c.l.bf16 %v1444
    %v1450 = vunpack.c.h.bf16 %v1444
    %v1451 = vunpack.c.l.bf16 %v1445
    %v1452 = vunpack.c.h.bf16 %v1445
    %v1453 = vunpack.c.l.bf16 %v1446
    %v1454 = vunpack.c.h.bf16 %v1446
    %v1455 = vpack.c.bf16 %v1279, %v1278
    %1456 = vmatprep.subr.bf16.mxu0 %v280
    %1457 = vmatpush1.bf16.msra.mxu0 %v279
    %1458 = vmatprep.subr.bf16.mxu0 %v284
    %1459 = vmatpush1.bf16.msra.mxu0 %v283
    %1460 = vmatprep.subr.bf16.mxu0 %v288
    %1461 = vmatpush1.bf16.msra.mxu0 %v287
    %1462 = vmatprep.subr.bf16.mxu0 %v292
    %1463 = vmatpush1.bf16.msra.mxu0 %v291
    %1464 = vmatprep.subr.bf16.mxu0 %v296
    %1465 = vmatpush1.bf16.msra.mxu0 %v295
    %1466 = vmatprep.subr.bf16.mxu0 %v300
    %1467 = vmatpush1.bf16.msra.mxu0 %v299
    %1468 = vmatprep.subr.bf16.mxu0 %v304
    %1469 = vmatpush1.bf16.msra.mxu0 %v303
    %1470 = vmatprep.subr.bf16.mxu0 %v308
    %1471 = vmatpush1.bf16.msra.mxu0 %v307
    %1472 = vmatprep.subr.bf16.mxu0 0
    %1473 = vmatpush1.bf16.msra.mxu0 0
    %1474 = vmatprep.subr.bf16.mxu0 0
    %1475 = vmatpush1.bf16.msra.mxu0 0
    %1476 = vmatprep.subr.bf16.mxu0 0
    %1477 = vmatpush1.bf16.msra.mxu0 0
    %1478 = vmatprep.subr.bf16.mxu0 0
    %1479 = vmatpush1.bf16.msra.mxu0 0
    %1480 = vmatprep.subr.bf16.mxu0 0
    %1481 = vmatpush1.bf16.msra.mxu0 0
    %1482 = vmatprep.subr.bf16.mxu0 0
    %1483 = vmatpush1.bf16.msra.mxu0 0
    %1484 = vmatprep.subr.bf16.mxu0 0
    %1485 = vmatpush1.bf16.msra.mxu0 0
    %1486 = vmatprep.subr.bf16.mxu0 0
    %1487 = vmatpush1.bf16.msra.mxu0 0
    %1488 = vmatprep.mubr.bf16.mxu0 0
    %1489 = vmatmul.mubr.bf16.gmra.mrb[0].mxu0 %v1455
    %v1490 = vpop.f32.mrb[0].mxu0
    %v1491 = vadd.f32 0.0, %v1490
    %v1492 = vpop.f32.mrb[0].mxu0
    %v1493 = vadd.f32 0.0, %v1492
    %v1494 = vpop.f32.mrb[0].mxu0
    %v1495 = vadd.f32 0.0, %v1494
    %v1496 = vpop.f32.mrb[0].mxu0
    %v1497 = vadd.f32 0.0, %v1496
    %1498 = vdwg.mxu0
    %1499 = vmatprep.subr.bf16.mxu0 %v282
    %1500 = vmatpush1.bf16.msra.mxu0 %v281
    %1501 = vmatprep.subr.bf16.mxu0 %v286
    %1502 = vmatpush1.bf16.msra.mxu0 %v285
    %1503 = vmatprep.subr.bf16.mxu0 %v290
    %1504 = vmatpush1.bf16.msra.mxu0 %v289
    %1505 = vmatprep.subr.bf16.mxu0 %v294
    %1506 = vmatpush1.bf16.msra.mxu0 %v293
    %1507 = vmatprep.subr.bf16.mxu0 %v298
    %1508 = vmatpush1.bf16.msra.mxu0 %v297
    %1509 = vmatprep.subr.bf16.mxu0 %v302
    %1510 = vmatpush1.bf16.msra.mxu0 %v301
    %1511 = vmatprep.subr.bf16.mxu0 %v306
    %1512 = vmatpush1.bf16.msra.mxu0 %v305
    %1513 = vmatprep.subr.bf16.mxu0 %v310
    %1514 = vmatpush1.bf16.msra.mxu0 %v309
    %1515 = vmatprep.subr.bf16.mxu0 0
    %1516 = vmatpush1.bf16.msra.mxu0 0
    %1517 = vmatprep.subr.bf16.mxu0 0
    %1518 = vmatpush1.bf16.msra.mxu0 0
    %1519 = vmatprep.subr.bf16.mxu0 0
    %1520 = vmatpush1.bf16.msra.mxu0 0
    %1521 = vmatprep.subr.bf16.mxu0 0
    %1522 = vmatpush1.bf16.msra.mxu0 0
    %1523 = vmatprep.subr.bf16.mxu0 0
    %1524 = vmatpush1.bf16.msra.mxu0 0
    %1525 = vmatprep.subr.bf16.mxu0 0
    %1526 = vmatpush1.bf16.msra.mxu0 0
    %1527 = vmatprep.subr.bf16.mxu0 0
    %1528 = vmatpush1.bf16.msra.mxu0 0
    %1529 = vmatprep.subr.bf16.mxu0 0
    %1530 = vmatpush1.bf16.msra.mxu0 0
    %1531 = vmatprep.mubr.bf16.mxu0 0
    %1532 = vmatmul.mubr.bf16.gmra.mrb[0].mxu0 %v1455
    %v1533 = vpop.f32.mrb[0].mxu0
    %v1534 = vadd.f32 0.0, %v1533
    %v1535 = vpop.f32.mrb[0].mxu0
    %v1536 = vadd.f32 0.0, %v1535
    %v1537 = vpop.f32.mrb[0].mxu0
    %v1538 = vadd.f32 0.0, %v1537
    %v1539 = vpop.f32.mrb[0].mxu0
    %v1540 = vadd.f32 0.0, %v1539
    %1541 = vdwg.mxu0
    %v1542 = vadd.f32 %v1447, %v1491
    %v1543 = vadd.f32 %v1448, %v1493
    %v1544 = vadd.f32 %v1449, %v1534
    %v1545 = vadd.f32 %v1450, %v1536
    %v1546 = vadd.f32 %v1451, %v1495
    %v1547 = vadd.f32 %v1452, %v1497
    %v1548 = vadd.f32 %v1453, %v1538
    %v1549 = vadd.f32 %v1454, %v1540
    %v1550 = vxor.u32 %v1542, 2147483648
    %v1551 = vxor.u32 %v1546, 2147483648
    %v1552 = vmul.f32 %v1550, 1.442695
    %v1553 = vpow.pop %v1552
    %v1554 = vmul.f32 %v1551, 1.442695
    %v1555 = vpow.pop %v1554
    %v1556 = vadd.f32 %v1553, 1.0
    %v1557 = vadd.f32 %v1555, 1.0
    %v1558 = vrcp.pop %v1556
    %v1559 = vmul.f32 1.0, %v1558
    %v1560 = vrcp.pop %v1557
    %v1561 = vmul.f32 1.0, %v1560
    %v1562 = vxor.u32 %v1543, 2147483648
    %v1563 = vxor.u32 %v1547, 2147483648
    %v1564 = vmul.f32 %v1562, 1.442695
    %v1565 = vpow.pop %v1564
    %v1566 = vmul.f32 %v1563, 1.442695
    %v1567 = vpow.pop %v1566
    %v1568 = vadd.f32 %v1565, 1.0
    %v1569 = vadd.f32 %v1567, 1.0
    %v1570 = vrcp.pop %v1568
    %v1571 = vmul.f32 1.0, %v1570
    %v1572 = vrcp.pop %v1569
    %v1573 = vmul.f32 1.0, %v1572
    %v1574 = vtanh.pop %v1544
    %v1575 = vtanh.pop %v1548
    %v1576 = vxor.u32 %v1545, 2147483648
    %v1577 = vxor.u32 %v1549, 2147483648
    %v1578 = vmul.f32 %v1576, 1.442695
    %v1579 = vpow.pop %v1578
    %v1580 = vmul.f32 %v1577, 1.442695
    %v1581 = vpow.pop %v1580
    %v1582 = vadd.f32 %v1579, 1.0
    %v1583 = vadd.f32 %v1581, 1.0
    %v1584 = vrcp.pop %v1582
    %v1585 = vmul.f32 1.0, %v1584
    %v1586 = vrcp.pop %v1583
    %v1587 = vmul.f32 1.0, %v1586
    %v1588 = vmul.f32 %v1571, %v1274
    %v1589 = vmul.f32 %v1573, %v1275
    %v1590 = vmul.f32 %v1559, %v1574
    %v1591 = vmul.f32 %v1561, %v1575
    %v1592 = vadd.f32 %v1588, %v1590
    %v1593 = vadd.f32 %v1589, %v1591
    %v1594 = vtanh.pop %v1592
    %v1595 = vtanh.pop %v1593
    %v1596 = vmul.f32 %v1585, %v1594
    %v1597 = vmul.f32 %v1587, %v1595
    %s1598 = scalar_lea.vmem [#allocation9], 128
    %v1599 = vld [vmem:[%s1598] sm:$0xff]
    %v1600 = vld [vmem:[%s1598 + $0x8] sm:$0xff]
    %v1601 = vld [vmem:[%s1598 + $0x10] sm:$0xff]
    %v1602 = vld [vmem:[%s1598 + $0x18] sm:$0xff]
    %v1603 = vunpack.c.l.bf16 %v1599
    %v1604 = vunpack.c.h.bf16 %v1599
    %v1605 = vunpack.c.l.bf16 %v1600
    %v1606 = vunpack.c.h.bf16 %v1600
    %v1607 = vunpack.c.l.bf16 %v1601
    %v1608 = vunpack.c.h.bf16 %v1601
    %v1609 = vunpack.c.l.bf16 %v1602
    %v1610 = vunpack.c.h.bf16 %v1602
    %v1611 = vpack.c.bf16 %v1435, %v1434
    %1612 = vmatprep.subr.bf16.mxu0 %v596
    %1613 = vmatpush1.bf16.msra.mxu0 %v595
    %1614 = vmatprep.subr.bf16.mxu0 %v600
    %1615 = vmatpush1.bf16.msra.mxu0 %v599
    %1616 = vmatprep.subr.bf16.mxu0 %v604
    %1617 = vmatpush1.bf16.msra.mxu0 %v603
    %1618 = vmatprep.subr.bf16.mxu0 %v608
    %1619 = vmatpush1.bf16.msra.mxu0 %v607
    %1620 = vmatprep.subr.bf16.mxu0 %v612
    %1621 = vmatpush1.bf16.msra.mxu0 %v611
    %1622 = vmatprep.subr.bf16.mxu0 %v616
    %1623 = vmatpush1.bf16.msra.mxu0 %v615
    %1624 = vmatprep.subr.bf16.mxu0 %v620
    %1625 = vmatpush1.bf16.msra.mxu0 %v619
    %1626 = vmatprep.subr.bf16.mxu0 %v624
    %1627 = vmatpush1.bf16.msra.mxu0 %v623
    %1628 = vmatprep.subr.bf16.mxu0 0
    %1629 = vmatpush1.bf16.msra.mxu0 0
    %1630 = vmatprep.subr.bf16.mxu0 0
    %1631 = vmatpush1.bf16.msra.mxu0 0
    %1632 = vmatprep.subr.bf16.mxu0 0
    %1633 = vmatpush1.bf16.msra.mxu0 0
    %1634 = vmatprep.subr.bf16.mxu0 0
    %1635 = vmatpush1.bf16.msra.mxu0 0
    %1636 = vmatprep.subr.bf16.mxu0 0
    %1637 = vmatpush1.bf16.msra.mxu0 0
    %1638 = vmatprep.subr.bf16.mxu0 0
    %1639 = vmatpush1.bf16.msra.mxu0 0
    %1640 = vmatprep.subr.bf16.mxu0 0
    %1641 = vmatpush1.bf16.msra.mxu0 0
    %1642 = vmatprep.subr.bf16.mxu0 0
    %1643 = vmatpush1.bf16.msra.mxu0 0
    %1644 = vmatprep.mubr.bf16.mxu0 0
    %1645 = vmatmul.mubr.bf16.gmra.mrb[0].mxu0 %v1611
    %v1646 = vpop.f32.mrb[0].mxu0
    %v1647 = vadd.f32 0.0, %v1646
    %v1648 = vpop.f32.mrb[0].mxu0
    %v1649 = vadd.f32 0.0, %v1648
    %v1650 = vpop.f32.mrb[0].mxu0
    %v1651 = vadd.f32 0.0, %v1650
    %v1652 = vpop.f32.mrb[0].mxu0
    %v1653 = vadd.f32 0.0, %v1652
    %1654 = vdwg.mxu0
    %1655 = vmatprep.subr.bf16.mxu0 %v598
    %1656 = vmatpush1.bf16.msra.mxu0 %v597
    %1657 = vmatprep.subr.bf16.mxu0 %v602
    %1658 = vmatpush1.bf16.msra.mxu0 %v601
    %1659 = vmatprep.subr.bf16.mxu0 %v606
    %1660 = vmatpush1.bf16.msra.mxu0 %v605
    %1661 = vmatprep.subr.bf16.mxu0 %v610
    %1662 = vmatpush1.bf16.msra.mxu0 %v609
    %1663 = vmatprep.subr.bf16.mxu0 %v614
    %1664 = vmatpush1.bf16.msra.mxu0 %v613
    %1665 = vmatprep.subr.bf16.mxu0 %v618
    %1666 = vmatpush1.bf16.msra.mxu0 %v617
    %1667 = vmatprep.subr.bf16.mxu0 %v622
    %1668 = vmatpush1.bf16.msra.mxu0 %v621
    %1669 = vmatprep.subr.bf16.mxu0 %v626
    %1670 = vmatpush1.bf16.msra.mxu0 %v625
    %1671 = vmatprep.subr.bf16.mxu0 0
    %1672 = vmatpush1.bf16.msra.mxu0 0
    %1673 = vmatprep.subr.bf16.mxu0 0
    %1674 = vmatpush1.bf16.msra.mxu0 0
    %1675 = vmatprep.subr.bf16.mxu0 0
    %1676 = vmatpush1.bf16.msra.mxu0 0
    %1677 = vmatprep.subr.bf16.mxu0 0
    %1678 = vmatpush1.bf16.msra.mxu0 0
    %1679 = vmatprep.subr.bf16.mxu0 0
    %1680 = vmatpush1.bf16.msra.mxu0 0
    %1681 = vmatprep.subr.bf16.mxu0 0
    %1682 = vmatpush1.bf16.msra.mxu0 0
    %1683 = vmatprep.subr.bf16.mxu0 0
    %1684 = vmatpush1.bf16.msra.mxu0 0
    %1685 = vmatprep.subr.bf16.mxu0 0
    %1686 = vmatpush1.bf16.msra.mxu0 0
    %1687 = vmatprep.mubr.bf16.mxu0 0
    %1688 = vmatmul.mubr.bf16.gmra.mrb[0].mxu0 %v1611
    %v1689 = vpop.f32.mrb[0].mxu0
    %v1690 = vadd.f32 0.0, %v1689
    %v1691 = vpop.f32.mrb[0].mxu0
    %v1692 = vadd.f32 0.0, %v1691
    %v1693 = vpop.f32.mrb[0].mxu0
    %v1694 = vadd.f32 0.0, %v1693
    %v1695 = vpop.f32.mrb[0].mxu0
    %v1696 = vadd.f32 0.0, %v1695
    %1697 = vdwg.mxu0
    %v1698 = vadd.f32 %v1603, %v1647
    %v1699 = vadd.f32 %v1604, %v1649
    %v1700 = vadd.f32 %v1605, %v1690
    %v1701 = vadd.f32 %v1606, %v1692
    %v1702 = vadd.f32 %v1607, %v1651
    %v1703 = vadd.f32 %v1608, %v1653
    %v1704 = vadd.f32 %v1609, %v1694
    %v1705 = vadd.f32 %v1610, %v1696
    %v1706 = vxor.u32 %v1698, 2147483648
    %v1707 = vxor.u32 %v1702, 2147483648
    %v1708 = vmul.f32 %v1706, 1.442695
    %v1709 = vpow.pop %v1708
    %v1710 = vmul.f32 %v1707, 1.442695
    %v1711 = vpow.pop %v1710
    %v1712 = vadd.f32 %v1709, 1.0
    %v1713 = vadd.f32 %v1711, 1.0
    %v1714 = vrcp.pop %v1712
    %v1715 = vmul.f32 1.0, %v1714
    %v1716 = vrcp.pop %v1713
    %v1717 = vmul.f32 1.0, %v1716
    %v1718 = vxor.u32 %v1699, 2147483648
    %v1719 = vxor.u32 %v1703, 2147483648
    %v1720 = vmul.f32 %v1718, 1.442695
    %v1721 = vpow.pop %v1720
    %v1722 = vmul.f32 %v1719, 1.442695
    %v1723 = vpow.pop %v1722
    %v1724 = vadd.f32 %v1721, 1.0
    %v1725 = vadd.f32 %v1723, 1.0
    %v1726 = vrcp.pop %v1724
    %v1727 = vmul.f32 1.0, %v1726
    %v1728 = vrcp.pop %v1725
    %v1729 = vmul.f32 1.0, %v1728
    %v1730 = vtanh.pop %v1700
    %v1731 = vtanh.pop %v1704
    %v1732 = vxor.u32 %v1701, 2147483648
    %v1733 = vxor.u32 %v1705, 2147483648
    %v1734 = vmul.f32 %v1732, 1.442695
    %v1735 = vpow.pop %v1734
    %v1736 = vmul.f32 %v1733, 1.442695
    %v1737 = vpow.pop %v1736
    %v1738 = vadd.f32 %v1735, 1.0
    %v1739 = vadd.f32 %v1737, 1.0
    %v1740 = vrcp.pop %v1738
    %v1741 = vmul.f32 1.0, %v1740
    %v1742 = vrcp.pop %v1739
    %v1743 = vmul.f32 1.0, %v1742
    %v1744 = vmul.f32 %v1727, %v1430
    %v1745 = vmul.f32 %v1729, %v1431
    %v1746 = vmul.f32 %v1715, %v1730
    %v1747 = vmul.f32 %v1717, %v1731
    %v1748 = vadd.f32 %v1744, %v1746
    %v1749 = vadd.f32 %v1745, %v1747
    %v1750 = vtanh.pop %v1748
    %v1751 = vtanh.pop %v1749
    %v1752 = vmul.f32 %v1741, %v1750
    %v1753 = vmul.f32 %v1743, %v1751
    %s1754 = scalar_lea.vmem [#allocation14], 48
    %1755 = vst [vmem:[%s1754] sm:$0xff] %v1596
    %1756 = vst [vmem:[%s1754 + $0x8] sm:$0xff] %v1597
    %s1757 = scalar_lea.vmem [#allocation15], 64
    %1758 = vst [vmem:[%s1757] sm:$0xff] %v1752
    %1759 = vst [vmem:[%s1757 + $0x8] sm:$0xff] %v1753
    %s1760 = scalar_lea.vmem [#allocation6], 128
    %v1761 = vld [vmem:[%s1760] sm:$0xff]
    %v1762 = vld [vmem:[%s1760 + $0x8] sm:$0xff]
    %v1763 = vld [vmem:[%s1760 + $0x10] sm:$0xff]
    %v1764 = vld [vmem:[%s1760 + $0x18] sm:$0xff]
    %v1765 = vunpack.c.l.bf16 %v1761
    %v1766 = vunpack.c.h.bf16 %v1761
    %v1767 = vunpack.c.l.bf16 %v1762
    %v1768 = vunpack.c.h.bf16 %v1762
    %v1769 = vunpack.c.l.bf16 %v1763
    %v1770 = vunpack.c.h.bf16 %v1763
    %v1771 = vunpack.c.l.bf16 %v1764
    %v1772 = vunpack.c.h.bf16 %v1764
    %v1773 = vpack.c.bf16 %v1597, %v1596
    %1774 = vmatprep.subr.bf16.mxu0 %v280
    %1775 = vmatpush1.bf16.msra.mxu0 %v279
    %1776 = vmatprep.subr.bf16.mxu0 %v284
    %1777 = vmatpush1.bf16.msra.mxu0 %v283
    %1778 = vmatprep.subr.bf16.mxu0 %v288
    %1779 = vmatpush1.bf16.msra.mxu0 %v287
    %1780 = vmatprep.subr.bf16.mxu0 %v292
    %1781 = vmatpush1.bf16.msra.mxu0 %v291
    %1782 = vmatprep.subr.bf16.mxu0 %v296
    %1783 = vmatpush1.bf16.msra.mxu0 %v295
    %1784 = vmatprep.subr.bf16.mxu0 %v300
    %1785 = vmatpush1.bf16.msra.mxu0 %v299
    %1786 = vmatprep.subr.bf16.mxu0 %v304
    %1787 = vmatpush1.bf16.msra.mxu0 %v303
    %1788 = vmatprep.subr.bf16.mxu0 %v308
    %1789 = vmatpush1.bf16.msra.mxu0 %v307
    %1790 = vmatprep.subr.bf16.mxu0 0
    %1791 = vmatpush1.bf16.msra.mxu0 0
    %1792 = vmatprep.subr.bf16.mxu0 0
    %1793 = vmatpush1.bf16.msra.mxu0 0
    %1794 = vmatprep.subr.bf16.mxu0 0
    %1795 = vmatpush1.bf16.msra.mxu0 0
    %1796 = vmatprep.subr.bf16.mxu0 0
    %1797 = vmatpush1.bf16.msra.mxu0 0
    %1798 = vmatprep.subr.bf16.mxu0 0
    %1799 = vmatpush1.bf16.msra.mxu0 0
    %1800 = vmatprep.subr.bf16.mxu0 0
    %1801 = vmatpush1.bf16.msra.mxu0 0
    %1802 = vmatprep.subr.bf16.mxu0 0
    %1803 = vmatpush1.bf16.msra.mxu0 0
    %1804 = vmatprep.subr.bf16.mxu0 0
    %1805 = vmatpush1.bf16.msra.mxu0 0
    %1806 = vmatprep.mubr.bf16.mxu0 0
    %1807 = vmatmul.mubr.bf16.gmra.mrb[0].mxu0 %v1773
    %v1808 = vpop.f32.mrb[0].mxu0
    %v1809 = vadd.f32 0.0, %v1808
    %v1810 = vpop.f32.mrb[0].mxu0
    %v1811 = vadd.f32 0.0, %v1810
    %v1812 = vpop.f32.mrb[0].mxu0
    %v1813 = vadd.f32 0.0, %v1812
    %v1814 = vpop.f32.mrb[0].mxu0
    %v1815 = vadd.f32 0.0, %v1814
    %1816 = vdwg.mxu0
    %1817 = vmatprep.subr.bf16.mxu0 %v282
    %1818 = vmatpush1.bf16.msra.mxu0 %v281
    %1819 = vmatprep.subr.bf16.mxu0 %v286
    %1820 = vmatpush1.bf16.msra.mxu0 %v285
    %1821 = vmatprep.subr.bf16.mxu0 %v290
    %1822 = vmatpush1.bf16.msra.mxu0 %v289
    %1823 = vmatprep.subr.bf16.mxu0 %v294
    %1824 = vmatpush1.bf16.msra.mxu0 %v293
    %1825 = vmatprep.subr.bf16.mxu0 %v298
    %1826 = vmatpush1.bf16.msra.mxu0 %v297
    %1827 = vmatprep.subr.bf16.mxu0 %v302
    %1828 = vmatpush1.bf16.msra.mxu0 %v301
    %1829 = vmatprep.subr.bf16.mxu0 %v306
    %1830 = vmatpush1.bf16.msra.mxu0 %v305
    %1831 = vmatprep.subr.bf16.mxu0 %v310
    %1832 = vmatpush1.bf16.msra.mxu0 %v309
    %1833 = vmatprep.subr.bf16.mxu0 0
    %1834 = vmatpush1.bf16.msra.mxu0 0
    %1835 = vmatprep.subr.bf16.mxu0 0
    %1836 = vmatpush1.bf16.msra.mxu0 0
    %1837 = vmatprep.subr.bf16.mxu0 0
    %1838 = vmatpush1.bf16.msra.mxu0 0
    %1839 = vmatprep.subr.bf16.mxu0 0
    %1840 = vmatpush1.bf16.msra.mxu0 0
    %1841 = vmatprep.subr.bf16.mxu0 0
    %1842 = vmatpush1.bf16.msra.mxu0 0
    %1843 = vmatprep.subr.bf16.mxu0 0
    %1844 = vmatpush1.bf16.msra.mxu0 0
    %1845 = vmatprep.subr.bf16.mxu0 0
    %1846 = vmatpush1.bf16.msra.mxu0 0
    %1847 = vmatprep.subr.bf16.mxu0 0
    %1848 = vmatpush1.bf16.msra.mxu0 0
    %1849 = vmatprep.mubr.bf16.mxu0 0
    %1850 = vmatmul.mubr.bf16.gmra.mrb[0].mxu0 %v1773
    %v1851 = vpop.f32.mrb[0].mxu0
    %v1852 = vadd.f32 0.0, %v1851
    %v1853 = vpop.f32.mrb[0].mxu0
    %v1854 = vadd.f32 0.0, %v1853
    %v1855 = vpop.f32.mrb[0].mxu0
    %v1856 = vadd.f32 0.0, %v1855
    %v1857 = vpop.f32.mrb[0].mxu0
    %v1858 = vadd.f32 0.0, %v1857
    %1859 = vdwg.mxu0
    %v1860 = vadd.f32 %v1765, %v1809
    %v1861 = vadd.f32 %v1766, %v1811
    %v1862 = vadd.f32 %v1767, %v1852
    %v1863 = vadd.f32 %v1768, %v1854
    %v1864 = vadd.f32 %v1769, %v1813
    %v1865 = vadd.f32 %v1770, %v1815
    %v1866 = vadd.f32 %v1771, %v1856
    %v1867 = vadd.f32 %v1772, %v1858
    %v1868 = vxor.u32 %v1860, 2147483648
    %v1869 = vxor.u32 %v1864, 2147483648
    %v1870 = vmul.f32 %v1868, 1.442695
    %v1871 = vpow.pop %v1870
    %v1872 = vmul.f32 %v1869, 1.442695
    %v1873 = vpow.pop %v1872
    %v1874 = vadd.f32 %v1871, 1.0
    %v1875 = vadd.f32 %v1873, 1.0
    %v1876 = vrcp.pop %v1874
    %v1877 = vmul.f32 1.0, %v1876
    %v1878 = vrcp.pop %v1875
    %v1879 = vmul.f32 1.0, %v1878
    %v1880 = vxor.u32 %v1861, 2147483648
    %v1881 = vxor.u32 %v1865, 2147483648
    %v1882 = vmul.f32 %v1880, 1.442695
    %v1883 = vpow.pop %v1882
    %v1884 = vmul.f32 %v1881, 1.442695
    %v1885 = vpow.pop %v1884
    %v1886 = vadd.f32 %v1883, 1.0
    %v1887 = vadd.f32 %v1885, 1.0
    %v1888 = vrcp.pop %v1886
    %v1889 = vmul.f32 1.0, %v1888
    %v1890 = vrcp.pop %v1887
    %v1891 = vmul.f32 1.0, %v1890
    %v1892 = vtanh.pop %v1862
    %v1893 = vtanh.pop %v1866
    %v1894 = vxor.u32 %v1863, 2147483648
    %v1895 = vxor.u32 %v1867, 2147483648
    %v1896 = vmul.f32 %v1894, 1.442695
    %v1897 = vpow.pop %v1896
    %v1898 = vmul.f32 %v1895, 1.442695
    %v1899 = vpow.pop %v1898
    %v1900 = vadd.f32 %v1897, 1.0
    %v1901 = vadd.f32 %v1899, 1.0
    %v1902 = vrcp.pop %v1900
    %v1903 = vmul.f32 1.0, %v1902
    %v1904 = vrcp.pop %v1901
    %v1905 = vmul.f32 1.0, %v1904
    %v1906 = vmul.f32 %v1889, %v1592
    %v1907 = vmul.f32 %v1891, %v1593
    %v1908 = vmul.f32 %v1877, %v1892
    %v1909 = vmul.f32 %v1879, %v1893
    %v1910 = vadd.f32 %v1906, %v1908
    %v1911 = vadd.f32 %v1907, %v1909
    %v1912 = vtanh.pop %v1910
    %v1913 = vtanh.pop %v1911
    %v1914 = vmul.f32 %v1903, %v1912
    %v1915 = vmul.f32 %v1905, %v1913
    %s1916 = scalar_lea.vmem [#allocation9], 96
    %v1917 = vld [vmem:[%s1916] sm:$0xff]
    %v1918 = vld [vmem:[%s1916 + $0x8] sm:$0xff]
    %v1919 = vld [vmem:[%s1916 + $0x10] sm:$0xff]
    %v1920 = vld [vmem:[%s1916 + $0x18] sm:$0xff]
    %v1921 = vunpack.c.l.bf16 %v1917
    %v1922 = vunpack.c.h.bf16 %v1917
    %v1923 = vunpack.c.l.bf16 %v1918
    %v1924 = vunpack.c.h.bf16 %v1918
    %v1925 = vunpack.c.l.bf16 %v1919
    %v1926 = vunpack.c.h.bf16 %v1919
    %v1927 = vunpack.c.l.bf16 %v1920
    %v1928 = vunpack.c.h.bf16 %v1920
    %v1929 = vpack.c.bf16 %v1753, %v1752
    %1930 = vmatprep.subr.bf16.mxu0 %v596
    %1931 = vmatpush1.bf16.msra.mxu0 %v595
    %1932 = vmatprep.subr.bf16.mxu0 %v600
    %1933 = vmatpush1.bf16.msra.mxu0 %v599
    %1934 = vmatprep.subr.bf16.mxu0 %v604
    %1935 = vmatpush1.bf16.msra.mxu0 %v603
    %1936 = vmatprep.subr.bf16.mxu0 %v608
    %1937 = vmatpush1.bf16.msra.mxu0 %v607
    %1938 = vmatprep.subr.bf16.mxu0 %v612
    %1939 = vmatpush1.bf16.msra.mxu0 %v611
    %1940 = vmatprep.subr.bf16.mxu0 %v616
    %1941 = vmatpush1.bf16.msra.mxu0 %v615
    %1942 = vmatprep.subr.bf16.mxu0 %v620
    %1943 = vmatpush1.bf16.msra.mxu0 %v619
    %1944 = vmatprep.subr.bf16.mxu0 %v624
    %1945 = vmatpush1.bf16.msra.mxu0 %v623
    %1946 = vmatprep.subr.bf16.mxu0 0
    %1947 = vmatpush1.bf16.msra.mxu0 0
    %1948 = vmatprep.subr.bf16.mxu0 0
    %1949 = vmatpush1.bf16.msra.mxu0 0
    %1950 = vmatprep.subr.bf16.mxu0 0
    %1951 = vmatpush1.bf16.msra.mxu0 0
    %1952 = vmatprep.subr.bf16.mxu0 0
    %1953 = vmatpush1.bf16.msra.mxu0 0
    %1954 = vmatprep.subr.bf16.mxu0 0
    %1955 = vmatpush1.bf16.msra.mxu0 0
    %1956 = vmatprep.subr.bf16.mxu0 0
    %1957 = vmatpush1.bf16.msra.mxu0 0
    %1958 = vmatprep.subr.bf16.mxu0 0
    %1959 = vmatpush1.bf16.msra.mxu0 0
    %1960 = vmatprep.subr.bf16.mxu0 0
    %1961 = vmatpush1.bf16.msra.mxu0 0
    %1962 = vmatprep.mubr.bf16.mxu0 0
    %1963 = vmatmul.mubr.bf16.gmra.mrb[0].mxu0 %v1929
    %v1964 = vpop.f32.mrb[0].mxu0
    %v1965 = vadd.f32 0.0, %v1964
    %v1966 = vpop.f32.mrb[0].mxu0
    %v1967 = vadd.f32 0.0, %v1966
    %v1968 = vpop.f32.mrb[0].mxu0
    %v1969 = vadd.f32 0.0, %v1968
    %v1970 = vpop.f32.mrb[0].mxu0
    %v1971 = vadd.f32 0.0, %v1970
    %1972 = vdwg.mxu0
    %1973 = vmatprep.subr.bf16.mxu0 %v598
    %1974 = vmatpush1.bf16.msra.mxu0 %v597
    %1975 = vmatprep.subr.bf16.mxu0 %v602
    %1976 = vmatpush1.bf16.msra.mxu0 %v601
    %1977 = vmatprep.subr.bf16.mxu0 %v606
    %1978 = vmatpush1.bf16.msra.mxu0 %v605
    %1979 = vmatprep.subr.bf16.mxu0 %v610
    %1980 = vmatpush1.bf16.msra.mxu0 %v609
    %1981 = vmatprep.subr.bf16.mxu0 %v614
    %1982 = vmatpush1.bf16.msra.mxu0 %v613
    %1983 = vmatprep.subr.bf16.mxu0 %v618
    %1984 = vmatpush1.bf16.msra.mxu0 %v617
    %1985 = vmatprep.subr.bf16.mxu0 %v622
    %1986 = vmatpush1.bf16.msra.mxu0 %v621
    %1987 = vmatprep.subr.bf16.mxu0 %v626
    %1988 = vmatpush1.bf16.msra.mxu0 %v625
    %1989 = vmatprep.subr.bf16.mxu0 0
    %1990 = vmatpush1.bf16.msra.mxu0 0
    %1991 = vmatprep.subr.bf16.mxu0 0
    %1992 = vmatpush1.bf16.msra.mxu0 0
    %1993 = vmatprep.subr.bf16.mxu0 0
    %1994 = vmatpush1.bf16.msra.mxu0 0
    %1995 = vmatprep.subr.bf16.mxu0 0
    %1996 = vmatpush1.bf16.msra.mxu0 0
    %1997 = vmatprep.subr.bf16.mxu0 0
    %1998 = vmatpush1.bf16.msra.mxu0 0
    %1999 = vmatprep.subr.bf16.mxu0 0
    %2000 = vmatpush1.bf16.msra.mxu0 0
    %2001 = vmatprep.subr.bf16.mxu0 0
    %2002 = vmatpush1.bf16.msra.mxu0 0
    %2003 = vmatprep.subr.bf16.mxu0 0
    %2004 = vmatpush1.bf16.msra.mxu0 0
    %2005 = vmatprep.mubr.bf16.mxu0 0
    %2006 = vmatmul.mubr.bf16.gmra.mrb[0].mxu0 %v1929
    %v2007 = vpop.f32.mrb[0].mxu0
    %v2008 = vadd.f32 0.0, %v2007
    %v2009 = vpop.f32.mrb[0].mxu0
    %v2010 = vadd.f32 0.0, %v2009
    %v2011 = vpop.f32.mrb[0].mxu0
    %v2012 = vadd.f32 0.0, %v2011
    %v2013 = vpop.f32.mrb[0].mxu0
    %v2014 = vadd.f32 0.0, %v2013
    %2015 = vdwg.mxu0
    %v2016 = vadd.f32 %v1921, %v1965
    %v2017 = vadd.f32 %v1922, %v1967
    %v2018 = vadd.f32 %v1923, %v2008
    %v2019 = vadd.f32 %v1924, %v2010
    %v2020 = vadd.f32 %v1925, %v1969
    %v2021 = vadd.f32 %v1926, %v1971
    %v2022 = vadd.f32 %v1927, %v2012
    %v2023 = vadd.f32 %v1928, %v2014
    %v2024 = vxor.u32 %v2016, 2147483648
    %v2025 = vxor.u32 %v2020, 2147483648
    %v2026 = vmul.f32 %v2024, 1.442695
    %v2027 = vpow.pop %v2026
    %v2028 = vmul.f32 %v2025, 1.442695
    %v2029 = vpow.pop %v2028
    %v2030 = vadd.f32 %v2027, 1.0
    %v2031 = vadd.f32 %v2029, 1.0
    %v2032 = vrcp.pop %v2030
    %v2033 = vmul.f32 1.0, %v2032
    %v2034 = vrcp.pop %v2031
    %v2035 = vmul.f32 1.0, %v2034
    %v2036 = vxor.u32 %v2017, 2147483648
    %v2037 = vxor.u32 %v2021, 2147483648
    %v2038 = vmul.f32 %v2036, 1.442695
    %v2039 = vpow.pop %v2038
    %v2040 = vmul.f32 %v2037, 1.442695
    %v2041 = vpow.pop %v2040
    %v2042 = vadd.f32 %v2039, 1.0
    %v2043 = vadd.f32 %v2041, 1.0
    %v2044 = vrcp.pop %v2042
    %v2045 = vmul.f32 1.0, %v2044
    %v2046 = vrcp.pop %v2043
    %v2047 = vmul.f32 1.0, %v2046
    %v2048 = vtanh.pop %v2018
    %v2049 = vtanh.pop %v2022
    %v2050 = vxor.u32 %v2019, 2147483648
    %v2051 = vxor.u32 %v2023, 2147483648
    %v2052 = vmul.f32 %v2050, 1.442695
    %v2053 = vpow.pop %v2052
    %v2054 = vmul.f32 %v2051, 1.442695
    %v2055 = vpow.pop %v2054
    %v2056 = vadd.f32 %v2053, 1.0
    %v2057 = vadd.f32 %v2055, 1.0
    %v2058 = vrcp.pop %v2056
    %v2059 = vmul.f32 1.0, %v2058
    %v2060 = vrcp.pop %v2057
    %v2061 = vmul.f32 1.0, %v2060
    %v2062 = vmul.f32 %v2045, %v1748
    %v2063 = vmul.f32 %v2047, %v1749
    %v2064 = vmul.f32 %v2033, %v2048
    %v2065 = vmul.f32 %v2035, %v2049
    %v2066 = vadd.f32 %v2062, %v2064
    %v2067 = vadd.f32 %v2063, %v2065
    %v2068 = vtanh.pop %v2066
    %v2069 = vtanh.pop %v2067
    %v2070 = vmul.f32 %v2059, %v2068
    %v2071 = vmul.f32 %v2061, %v2069
    %s2072 = scalar_lea.vmem [#allocation14], 64
    %2073 = vst [vmem:[%s2072] sm:$0xff] %v1914
    %2074 = vst [vmem:[%s2072 + $0x8] sm:$0xff] %v1915
    %s2075 = scalar_lea.vmem [#allocation15], 48
    %2076 = vst [vmem:[%s2075] sm:$0xff] %v2070
    %2077 = vst [vmem:[%s2075 + $0x8] sm:$0xff] %v2071
    %s2078 = scalar_lea.vmem [#allocation6], 160
    %v2079 = vld [vmem:[%s2078] sm:$0xff]
    %v2080 = vld [vmem:[%s2078 + $0x8] sm:$0xff]
    %v2081 = vld [vmem:[%s2078 + $0x10] sm:$0xff]
    %v2082 = vld [vmem:[%s2078 + $0x18] sm:$0xff]
    %v2083 = vunpack.c.l.bf16 %v2079
    %v2084 = vunpack.c.h.bf16 %v2079
    %v2085 = vunpack.c.l.bf16 %v2080
    %v2086 = vunpack.c.h.bf16 %v2080
    %v2087 = vunpack.c.l.bf16 %v2081
    %v2088 = vunpack.c.h.bf16 %v2081
    %v2089 = vunpack.c.l.bf16 %v2082
    %v2090 = vunpack.c.h.bf16 %v2082
    %v2091 = vpack.c.bf16 %v1915, %v1914
    %2092 = vmatprep.subr.bf16.mxu0 %v280
    %2093 = vmatpush1.bf16.msra.mxu0 %v279
    %2094 = vmatprep.subr.bf16.mxu0 %v284
    %2095 = vmatpush1.bf16.msra.mxu0 %v283
    %2096 = vmatprep.subr.bf16.mxu0 %v288
    %2097 = vmatpush1.bf16.msra.mxu0 %v287
    %2098 = vmatprep.subr.bf16.mxu0 %v292
    %2099 = vmatpush1.bf16.msra.mxu0 %v291
    %2100 = vmatprep.subr.bf16.mxu0 %v296
    %2101 = vmatpush1.bf16.msra.mxu0 %v295
    %2102 = vmatprep.subr.bf16.mxu0 %v300
    %2103 = vmatpush1.bf16.msra.mxu0 %v299
    %2104 = vmatprep.subr.bf16.mxu0 %v304
    %2105 = vmatpush1.bf16.msra.mxu0 %v303
    %2106 = vmatprep.subr.bf16.mxu0 %v308
    %2107 = vmatpush1.bf16.msra.mxu0 %v307
    %2108 = vmatprep.subr.bf16.mxu0 0
    %2109 = vmatpush1.bf16.msra.mxu0 0
    %2110 = vmatprep.subr.bf16.mxu0 0
    %2111 = vmatpush1.bf16.msra.mxu0 0
    %2112 = vmatprep.subr.bf16.mxu0 0
    %2113 = vmatpush1.bf16.msra.mxu0 0
    %2114 = vmatprep.subr.bf16.mxu0 0
    %2115 = vmatpush1.bf16.msra.mxu0 0
    %2116 = vmatprep.subr.bf16.mxu0 0
    %2117 = vmatpush1.bf16.msra.mxu0 0
    %2118 = vmatprep.subr.bf16.mxu0 0
    %2119 = vmatpush1.bf16.msra.mxu0 0
    %2120 = vmatprep.subr.bf16.mxu0 0
    %2121 = vmatpush1.bf16.msra.mxu0 0
    %2122 = vmatprep.subr.bf16.mxu0 0
    %2123 = vmatpush1.bf16.msra.mxu0 0
    %2124 = vmatprep.mubr.bf16.mxu0 0
    %2125 = vmatmul.mubr.bf16.gmra.mrb[0].mxu0 %v2091
    %v2126 = vpop.f32.mrb[0].mxu0
    %v2127 = vadd.f32 0.0, %v2126
    %v2128 = vpop.f32.mrb[0].mxu0
    %v2129 = vadd.f32 0.0, %v2128
    %v2130 = vpop.f32.mrb[0].mxu0
    %v2131 = vadd.f32 0.0, %v2130
    %v2132 = vpop.f32.mrb[0].mxu0
    %v2133 = vadd.f32 0.0, %v2132
    %2134 = vdwg.mxu0
    %2135 = vmatprep.subr.bf16.mxu0 %v282
    %2136 = vmatpush1.bf16.msra.mxu0 %v281
    %2137 = vmatprep.subr.bf16.mxu0 %v286
    %2138 = vmatpush1.bf16.msra.mxu0 %v285
    %2139 = vmatprep.subr.bf16.mxu0 %v290
    %2140 = vmatpush1.bf16.msra.mxu0 %v289
    %2141 = vmatprep.subr.bf16.mxu0 %v294
    %2142 = vmatpush1.bf16.msra.mxu0 %v293
    %2143 = vmatprep.subr.bf16.mxu0 %v298
    %2144 = vmatpush1.bf16.msra.mxu0 %v297
    %2145 = vmatprep.subr.bf16.mxu0 %v302
    %2146 = vmatpush1.bf16.msra.mxu0 %v301
    %2147 = vmatprep.subr.bf16.mxu0 %v306
    %2148 = vmatpush1.bf16.msra.mxu0 %v305
    %2149 = vmatprep.subr.bf16.mxu0 %v310
    %2150 = vmatpush1.bf16.msra.mxu0 %v309
    %2151 = vmatprep.subr.bf16.mxu0 0
    %2152 = vmatpush1.bf16.msra.mxu0 0
    %2153 = vmatprep.subr.bf16.mxu0 0
    %2154 = vmatpush1.bf16.msra.mxu0 0
    %2155 = vmatprep.subr.bf16.mxu0 0
    %2156 = vmatpush1.bf16.msra.mxu0 0
    %2157 = vmatprep.subr.bf16.mxu0 0
    %2158 = vmatpush1.bf16.msra.mxu0 0
    %2159 = vmatprep.subr.bf16.mxu0 0
    %2160 = vmatpush1.bf16.msra.mxu0 0
    %2161 = vmatprep.subr.bf16.mxu0 0
    %2162 = vmatpush1.bf16.msra.mxu0 0
    %2163 = vmatprep.subr.bf16.mxu0 0
    %2164 = vmatpush1.bf16.msra.mxu0 0
    %2165 = vmatprep.subr.bf16.mxu0 0
    %2166 = vmatpush1.bf16.msra.mxu0 0
    %2167 = vmatprep.mubr.bf16.mxu0 0
    %2168 = vmatmul.mubr.bf16.gmra.mrb[0].mxu0 %v2091
    %v2169 = vpop.f32.mrb[0].mxu0
    %v2170 = vadd.f32 0.0, %v2169
    %v2171 = vpop.f32.mrb[0].mxu0
    %v2172 = vadd.f32 0.0, %v2171
    %v2173 = vpop.f32.mrb[0].mxu0
    %v2174 = vadd.f32 0.0, %v2173
    %v2175 = vpop.f32.mrb[0].mxu0
    %v2176 = vadd.f32 0.0, %v2175
    %2177 = vdwg.mxu0
    %v2178 = vadd.f32 %v2083, %v2127
    %v2179 = vadd.f32 %v2084, %v2129
    %v2180 = vadd.f32 %v2085, %v2170
    %v2181 = vadd.f32 %v2086, %v2172
    %v2182 = vadd.f32 %v2087, %v2131
    %v2183 = vadd.f32 %v2088, %v2133
    %v2184 = vadd.f32 %v2089, %v2174
    %v2185 = vadd.f32 %v2090, %v2176
    %v2186 = vxor.u32 %v2178, 2147483648
    %v2187 = vxor.u32 %v2182, 2147483648
    %v2188 = vmul.f32 %v2186, 1.442695
    %v2189 = vpow.pop %v2188
    %v2190 = vmul.f32 %v2187, 1.442695
    %v2191 = vpow.pop %v2190
    %v2192 = vadd.f32 %v2189, 1.0
    %v2193 = vadd.f32 %v2191, 1.0
    %v2194 = vrcp.pop %v2192
    %v2195 = vmul.f32 1.0, %v2194
    %v2196 = vrcp.pop %v2193
    %v2197 = vmul.f32 1.0, %v2196
    %v2198 = vxor.u32 %v2179, 2147483648
    %v2199 = vxor.u32 %v2183, 2147483648
    %v2200 = vmul.f32 %v2198, 1.442695
    %v2201 = vpow.pop %v2200
    %v2202 = vmul.f32 %v2199, 1.442695
    %v2203 = vpow.pop %v2202
    %v2204 = vadd.f32 %v2201, 1.0
    %v2205 = vadd.f32 %v2203, 1.0
    %v2206 = vrcp.pop %v2204
    %v2207 = vmul.f32 1.0, %v2206
    %v2208 = vrcp.pop %v2205
    %v2209 = vmul.f32 1.0, %v2208
    %v2210 = vtanh.pop %v2180
    %v2211 = vtanh.pop %v2184
    %v2212 = vxor.u32 %v2181, 2147483648
    %v2213 = vxor.u32 %v2185, 2147483648
    %v2214 = vmul.f32 %v2212, 1.442695
    %v2215 = vpow.pop %v2214
    %v2216 = vmul.f32 %v2213, 1.442695
    %v2217 = vpow.pop %v2216
    %v2218 = vadd.f32 %v2215, 1.0
    %v2219 = vadd.f32 %v2217, 1.0
    %v2220 = vrcp.pop %v2218
    %v2221 = vmul.f32 1.0, %v2220
    %v2222 = vrcp.pop %v2219
    %v2223 = vmul.f32 1.0, %v2222
    %v2224 = vmul.f32 %v2207, %v1910
    %v2225 = vmul.f32 %v2209, %v1911
    %v2226 = vmul.f32 %v2195, %v2210
    %v2227 = vmul.f32 %v2197, %v2211
    %v2228 = vadd.f32 %v2224, %v2226
    %v2229 = vadd.f32 %v2225, %v2227
    %v2230 = vtanh.pop %v2228
    %v2231 = vtanh.pop %v2229
    %v2232 = vmul.f32 %v2221, %v2230
    %v2233 = vmul.f32 %v2223, %v2231
    %s2234 = scalar_lea.vmem [#allocation9], 64
    %v2235 = vld [vmem:[%s2234] sm:$0xff]
    %v2236 = vld [vmem:[%s2234 + $0x8] sm:$0xff]
    %v2237 = vld [vmem:[%s2234 + $0x10] sm:$0xff]
    %v2238 = vld [vmem:[%s2234 + $0x18] sm:$0xff]
    %v2239 = vunpack.c.l.bf16 %v2235
    %v2240 = vunpack.c.h.bf16 %v2235
    %v2241 = vunpack.c.l.bf16 %v2236
    %v2242 = vunpack.c.h.bf16 %v2236
    %v2243 = vunpack.c.l.bf16 %v2237
    %v2244 = vunpack.c.h.bf16 %v2237
    %v2245 = vunpack.c.l.bf16 %v2238
    %v2246 = vunpack.c.h.bf16 %v2238
    %v2247 = vpack.c.bf16 %v2071, %v2070
    %2248 = vmatprep.subr.bf16.mxu0 %v596
    %2249 = vmatpush1.bf16.msra.mxu0 %v595
    %2250 = vmatprep.subr.bf16.mxu0 %v600
    %2251 = vmatpush1.bf16.msra.mxu0 %v599
    %2252 = vmatprep.subr.bf16.mxu0 %v604
    %2253 = vmatpush1.bf16.msra.mxu0 %v603
    %2254 = vmatprep.subr.bf16.mxu0 %v608
    %2255 = vmatpush1.bf16.msra.mxu0 %v607
    %2256 = vmatprep.subr.bf16.mxu0 %v612
    %2257 = vmatpush1.bf16.msra.mxu0 %v611
    %2258 = vmatprep.subr.bf16.mxu0 %v616
    %2259 = vmatpush1.bf16.msra.mxu0 %v615
    %2260 = vmatprep.subr.bf16.mxu0 %v620
    %2261 = vmatpush1.bf16.msra.mxu0 %v619
    %2262 = vmatprep.subr.bf16.mxu0 %v624
    %2263 = vmatpush1.bf16.msra.mxu0 %v623
    %2264 = vmatprep.subr.bf16.mxu0 0
    %2265 = vmatpush1.bf16.msra.mxu0 0
    %2266 = vmatprep.subr.bf16.mxu0 0
    %2267 = vmatpush1.bf16.msra.mxu0 0
    %2268 = vmatprep.subr.bf16.mxu0 0
    %2269 = vmatpush1.bf16.msra.mxu0 0
    %2270 = vmatprep.subr.bf16.mxu0 0
    %2271 = vmatpush1.bf16.msra.mxu0 0
    %2272 = vmatprep.subr.bf16.mxu0 0
    %2273 = vmatpush1.bf16.msra.mxu0 0
    %2274 = vmatprep.subr.bf16.mxu0 0
    %2275 = vmatpush1.bf16.msra.mxu0 0
    %2276 = vmatprep.subr.bf16.mxu0 0
    %2277 = vmatpush1.bf16.msra.mxu0 0
    %2278 = vmatprep.subr.bf16.mxu0 0
    %2279 = vmatpush1.bf16.msra.mxu0 0
    %2280 = vmatprep.mubr.bf16.mxu0 0
    %2281 = vmatmul.mubr.bf16.gmra.mrb[0].mxu0 %v2247
    %v2282 = vpop.f32.mrb[0].mxu0
    %v2283 = vadd.f32 0.0, %v2282
    %v2284 = vpop.f32.mrb[0].mxu0
    %v2285 = vadd.f32 0.0, %v2284
    %v2286 = vpop.f32.mrb[0].mxu0
    %v2287 = vadd.f32 0.0, %v2286
    %v2288 = vpop.f32.mrb[0].mxu0
    %v2289 = vadd.f32 0.0, %v2288
    %2290 = vdwg.mxu0
    %2291 = vmatprep.subr.bf16.mxu0 %v598
    %2292 = vmatpush1.bf16.msra.mxu0 %v597
    %2293 = vmatprep.subr.bf16.mxu0 %v602
    %2294 = vmatpush1.bf16.msra.mxu0 %v601
    %2295 = vmatprep.subr.bf16.mxu0 %v606
    %2296 = vmatpush1.bf16.msra.mxu0 %v605
    %2297 = vmatprep.subr.bf16.mxu0 %v610
    %2298 = vmatpush1.bf16.msra.mxu0 %v609
    %2299 = vmatprep.subr.bf16.mxu0 %v614
    %2300 = vmatpush1.bf16.msra.mxu0 %v613
    %2301 = vmatprep.subr.bf16.mxu0 %v618
    %2302 = vmatpush1.bf16.msra.mxu0 %v617
    %2303 = vmatprep.subr.bf16.mxu0 %v622
    %2304 = vmatpush1.bf16.msra.mxu0 %v621
    %2305 = vmatprep.subr.bf16.mxu0 %v626
    %2306 = vmatpush1.bf16.msra.mxu0 %v625
    %2307 = vmatprep.subr.bf16.mxu0 0
    %2308 = vmatpush1.bf16.msra.mxu0 0
    %2309 = vmatprep.subr.bf16.mxu0 0
    %2310 = vmatpush1.bf16.msra.mxu0 0
    %2311 = vmatprep.subr.bf16.mxu0 0
    %2312 = vmatpush1.bf16.msra.mxu0 0
    %2313 = vmatprep.subr.bf16.mxu0 0
    %2314 = vmatpush1.bf16.msra.mxu0 0
    %2315 = vmatprep.subr.bf16.mxu0 0
    %2316 = vmatpush1.bf16.msra.mxu0 0
    %2317 = vmatprep.subr.bf16.mxu0 0
    %2318 = vmatpush1.bf16.msra.mxu0 0
    %2319 = vmatprep.subr.bf16.mxu0 0
    %2320 = vmatpush1.bf16.msra.mxu0 0
    %2321 = vmatprep.subr.bf16.mxu0 0
    %2322 = vmatpush1.bf16.msra.mxu0 0
    %2323 = vmatprep.mubr.bf16.mxu0 0
    %2324 = vmatmul.mubr.bf16.gmra.mrb[0].mxu0 %v2247
    %v2325 = vpop.f32.mrb[0].mxu0
    %v2326 = vadd.f32 0.0, %v2325
    %v2327 = vpop.f32.mrb[0].mxu0
    %v2328 = vadd.f32 0.0, %v2327
    %v2329 = vpop.f32.mrb[0].mxu0
    %v2330 = vadd.f32 0.0, %v2329
    %v2331 = vpop.f32.mrb[0].mxu0
    %v2332 = vadd.f32 0.0, %v2331
    %2333 = vdwg.mxu0
    %v2334 = vadd.f32 %v2239, %v2283
    %v2335 = vadd.f32 %v2240, %v2285
    %v2336 = vadd.f32 %v2241, %v2326
    %v2337 = vadd.f32 %v2242, %v2328
    %v2338 = vadd.f32 %v2243, %v2287
    %v2339 = vadd.f32 %v2244, %v2289
    %v2340 = vadd.f32 %v2245, %v2330
    %v2341 = vadd.f32 %v2246, %v2332
    %v2342 = vxor.u32 %v2334, 2147483648
    %v2343 = vxor.u32 %v2338, 2147483648
    %v2344 = vmul.f32 %v2342, 1.442695
    %v2345 = vpow.pop %v2344
    %v2346 = vmul.f32 %v2343, 1.442695
    %v2347 = vpow.pop %v2346
    %v2348 = vadd.f32 %v2345, 1.0
    %v2349 = vadd.f32 %v2347, 1.0
    %v2350 = vrcp.pop %v2348
    %v2351 = vmul.f32 1.0, %v2350
    %v2352 = vrcp.pop %v2349
    %v2353 = vmul.f32 1.0, %v2352
    %v2354 = vxor.u32 %v2335, 2147483648
    %v2355 = vxor.u32 %v2339, 2147483648
    %v2356 = vmul.f32 %v2354, 1.442695
    %v2357 = vpow.pop %v2356
    %v2358 = vmul.f32 %v2355, 1.442695
    %v2359 = vpow.pop %v2358
    %v2360 = vadd.f32 %v2357, 1.0
    %v2361 = vadd.f32 %v2359, 1.0
    %v2362 = vrcp.pop %v2360
    %v2363 = vmul.f32 1.0, %v2362
    %v2364 = vrcp.pop %v2361
    %v2365 = vmul.f32 1.0, %v2364
    %v2366 = vtanh.pop %v2336
    %v2367 = vtanh.pop %v2340
    %v2368 = vxor.u32 %v2337, 2147483648
    %v2369 = vxor.u32 %v2341, 2147483648
    %v2370 = vmul.f32 %v2368, 1.442695
    %v2371 = vpow.pop %v2370
    %v2372 = vmul.f32 %v2369, 1.442695
    %v2373 = vpow.pop %v2372
    %v2374 = vadd.f32 %v2371, 1.0
    %v2375 = vadd.f32 %v2373, 1.0
    %v2376 = vrcp.pop %v2374
    %v2377 = vmul.f32 1.0, %v2376
    %v2378 = vrcp.pop %v2375
    %v2379 = vmul.f32 1.0, %v2378
    %v2380 = vmul.f32 %v2363, %v2066
    %v2381 = vmul.f32 %v2365, %v2067
    %v2382 = vmul.f32 %v2351, %v2366
    %v2383 = vmul.f32 %v2353, %v2367
    %v2384 = vadd.f32 %v2380, %v2382
    %v2385 = vadd.f32 %v2381, %v2383
    %v2386 = vtanh.pop %v2384
    %v2387 = vtanh.pop %v2385
    %v2388 = vmul.f32 %v2377, %v2386
    %v2389 = vmul.f32 %v2379, %v2387
    %s2390 = scalar_lea.vmem [#allocation14], 80
    %2391 = vst [vmem:[%s2390] sm:$0xff] %v2232
    %2392 = vst [vmem:[%s2390 + $0x8] sm:$0xff] %v2233
    %s2393 = scalar_lea.vmem [#allocation15], 32
    %2394 = vst [vmem:[%s2393] sm:$0xff] %v2388
    %2395 = vst [vmem:[%s2393 + $0x8] sm:$0xff] %v2389
    %s2396 = scalar_lea.vmem [#allocation6], 192
    %v2397 = vld [vmem:[%s2396] sm:$0xff]
    %v2398 = vld [vmem:[%s2396 + $0x8] sm:$0xff]
    %v2399 = vld [vmem:[%s2396 + $0x10] sm:$0xff]
    %v2400 = vld [vmem:[%s2396 + $0x18] sm:$0xff]
    %v2401 = vunpack.c.l.bf16 %v2397
    %v2402 = vunpack.c.h.bf16 %v2397
    %v2403 = vunpack.c.l.bf16 %v2398
    %v2404 = vunpack.c.h.bf16 %v2398
    %v2405 = vunpack.c.l.bf16 %v2399
    %v2406 = vunpack.c.h.bf16 %v2399
    %v2407 = vunpack.c.l.bf16 %v2400
    %v2408 = vunpack.c.h.bf16 %v2400
    %v2409 = vpack.c.bf16 %v2233, %v2232
    %2410 = vmatprep.subr.bf16.mxu0 %v280
    %2411 = vmatpush1.bf16.msra.mxu0 %v279
    %2412 = vmatprep.subr.bf16.mxu0 %v284
    %2413 = vmatpush1.bf16.msra.mxu0 %v283
    %2414 = vmatprep.subr.bf16.mxu0 %v288
    %2415 = vmatpush1.bf16.msra.mxu0 %v287
    %2416 = vmatprep.subr.bf16.mxu0 %v292
    %2417 = vmatpush1.bf16.msra.mxu0 %v291
    %2418 = vmatprep.subr.bf16.mxu0 %v296
    %2419 = vmatpush1.bf16.msra.mxu0 %v295
    %2420 = vmatprep.subr.bf16.mxu0 %v300
    %2421 = vmatpush1.bf16.msra.mxu0 %v299
    %2422 = vmatprep.subr.bf16.mxu0 %v304
    %2423 = vmatpush1.bf16.msra.mxu0 %v303
    %2424 = vmatprep.subr.bf16.mxu0 %v308
    %2425 = vmatpush1.bf16.msra.mxu0 %v307
    %2426 = vmatprep.subr.bf16.mxu0 0
    %2427 = vmatpush1.bf16.msra.mxu0 0
    %2428 = vmatprep.subr.bf16.mxu0 0
    %2429 = vmatpush1.bf16.msra.mxu0 0
    %2430 = vmatprep.subr.bf16.mxu0 0
    %2431 = vmatpush1.bf16.msra.mxu0 0
    %2432 = vmatprep.subr.bf16.mxu0 0
    %2433 = vmatpush1.bf16.msra.mxu0 0
    %2434 = vmatprep.subr.bf16.mxu0 0
    %2435 = vmatpush1.bf16.msra.mxu0 0
    %2436 = vmatprep.subr.bf16.mxu0 0
    %2437 = vmatpush1.bf16.msra.mxu0 0
    %2438 = vmatprep.subr.bf16.mxu0 0
    %2439 = vmatpush1.bf16.msra.mxu0 0
    %2440 = vmatprep.subr.bf16.mxu0 0
    %2441 = vmatpush1.bf16.msra.mxu0 0
    %2442 = vmatprep.mubr.bf16.mxu0 0
    %2443 = vmatmul.mubr.bf16.gmra.mrb[0].mxu0 %v2409
    %v2444 = vpop.f32.mrb[0].mxu0
    %v2445 = vadd.f32 0.0, %v2444
    %v2446 = vpop.f32.mrb[0].mxu0
    %v2447 = vadd.f32 0.0, %v2446
    %v2448 = vpop.f32.mrb[0].mxu0
    %v2449 = vadd.f32 0.0, %v2448
    %v2450 = vpop.f32.mrb[0].mxu0
    %v2451 = vadd.f32 0.0, %v2450
    %2452 = vdwg.mxu0
    %2453 = vmatprep.subr.bf16.mxu0 %v282
    %2454 = vmatpush1.bf16.msra.mxu0 %v281
    %2455 = vmatprep.subr.bf16.mxu0 %v286
    %2456 = vmatpush1.bf16.msra.mxu0 %v285
    %2457 = vmatprep.subr.bf16.mxu0 %v290
    %2458 = vmatpush1.bf16.msra.mxu0 %v289
    %2459 = vmatprep.subr.bf16.mxu0 %v294
    %2460 = vmatpush1.bf16.msra.mxu0 %v293
    %2461 = vmatprep.subr.bf16.mxu0 %v298
    %2462 = vmatpush1.bf16.msra.mxu0 %v297
    %2463 = vmatprep.subr.bf16.mxu0 %v302
    %2464 = vmatpush1.bf16.msra.mxu0 %v301
    %2465 = vmatprep.subr.bf16.mxu0 %v306
    %2466 = vmatpush1.bf16.msra.mxu0 %v305
    %2467 = vmatprep.subr.bf16.mxu0 %v310
    %2468 = vmatpush1.bf16.msra.mxu0 %v309
    %2469 = vmatprep.subr.bf16.mxu0 0
    %2470 = vmatpush1.bf16.msra.mxu0 0
    %2471 = vmatprep.subr.bf16.mxu0 0
    %2472 = vmatpush1.bf16.msra.mxu0 0
    %2473 = vmatprep.subr.bf16.mxu0 0
    %2474 = vmatpush1.bf16.msra.mxu0 0
    %2475 = vmatprep.subr.bf16.mxu0 0
    %2476 = vmatpush1.bf16.msra.mxu0 0
    %2477 = vmatprep.subr.bf16.mxu0 0
    %2478 = vmatpush1.bf16.msra.mxu0 0
    %2479 = vmatprep.subr.bf16.mxu0 0
    %2480 = vmatpush1.bf16.msra.mxu0 0
    %2481 = vmatprep.subr.bf16.mxu0 0
    %2482 = vmatpush1.bf16.msra.mxu0 0
    %2483 = vmatprep.subr.bf16.mxu0 0
    %2484 = vmatpush1.bf16.msra.mxu0 0
    %2485 = vmatprep.mubr.bf16.mxu0 0
    %2486 = vmatmul.mubr.bf16.gmra.mrb[0].mxu0 %v2409
    %v2487 = vpop.f32.mrb[0].mxu0
    %v2488 = vadd.f32 0.0, %v2487
    %v2489 = vpop.f32.mrb[0].mxu0
    %v2490 = vadd.f32 0.0, %v2489
    %v2491 = vpop.f32.mrb[0].mxu0
    %v2492 = vadd.f32 0.0, %v2491
    %v2493 = vpop.f32.mrb[0].mxu0
    %v2494 = vadd.f32 0.0, %v2493
    %2495 = vdwg.mxu0
    %v2496 = vadd.f32 %v2401, %v2445
    %v2497 = vadd.f32 %v2402, %v2447
    %v2498 = vadd.f32 %v2403, %v2488
    %v2499 = vadd.f32 %v2404, %v2490
    %v2500 = vadd.f32 %v2405, %v2449
    %v2501 = vadd.f32 %v2406, %v2451
    %v2502 = vadd.f32 %v2407, %v2492
    %v2503 = vadd.f32 %v2408, %v2494
    %v2504 = vxor.u32 %v2496, 2147483648
    %v2505 = vxor.u32 %v2500, 2147483648
    %v2506 = vmul.f32 %v2504, 1.442695
    %v2507 = vpow.pop %v2506
    %v2508 = vmul.f32 %v2505, 1.442695
    %v2509 = vpow.pop %v2508
    %v2510 = vadd.f32 %v2507, 1.0
    %v2511 = vadd.f32 %v2509, 1.0
    %v2512 = vrcp.pop %v2510
    %v2513 = vmul.f32 1.0, %v2512
    %v2514 = vrcp.pop %v2511
    %v2515 = vmul.f32 1.0, %v2514
    %v2516 = vxor.u32 %v2497, 2147483648
    %v2517 = vxor.u32 %v2501, 2147483648
    %v2518 = vmul.f32 %v2516, 1.442695
    %v2519 = vpow.pop %v2518
    %v2520 = vmul.f32 %v2517, 1.442695
    %v2521 = vpow.pop %v2520
    %v2522 = vadd.f32 %v2519, 1.0
    %v2523 = vadd.f32 %v2521, 1.0
    %v2524 = vrcp.pop %v2522
    %v2525 = vmul.f32 1.0, %v2524
    %v2526 = vrcp.pop %v2523
    %v2527 = vmul.f32 1.0, %v2526
    %v2528 = vtanh.pop %v2498
    %v2529 = vtanh.pop %v2502
    %v2530 = vxor.u32 %v2499, 2147483648
    %v2531 = vxor.u32 %v2503, 2147483648
    %v2532 = vmul.f32 %v2530, 1.442695
    %v2533 = vpow.pop %v2532
    %v2534 = vmul.f32 %v2531, 1.442695
    %v2535 = vpow.pop %v2534
    %v2536 = vadd.f32 %v2533, 1.0
    %v2537 = vadd.f32 %v2535, 1.0
    %v2538 = vrcp.pop %v2536
    %v2539 = vmul.f32 1.0, %v2538
    %v2540 = vrcp.pop %v2537
    %v2541 = vmul.f32 1.0, %v2540
    %v2542 = vmul.f32 %v2525, %v2228
    %v2543 = vmul.f32 %v2527, %v2229
    %v2544 = vmul.f32 %v2513, %v2528
    %v2545 = vmul.f32 %v2515, %v2529
    %v2546 = vadd.f32 %v2542, %v2544
    %v2547 = vadd.f32 %v2543, %v2545
    %v2548 = vtanh.pop %v2546
    %v2549 = vtanh.pop %v2547
    %v2550 = vmul.f32 %v2539, %v2548
    %v2551 = vmul.f32 %v2541, %v2549
    %s2552 = scalar_lea.vmem [#allocation9], 32
    %v2553 = vld [vmem:[%s2552] sm:$0xff]
    %v2554 = vld [vmem:[%s2552 + $0x8] sm:$0xff]
    %v2555 = vld [vmem:[%s2552 + $0x10] sm:$0xff]
    %v2556 = vld [vmem:[%s2552 + $0x18] sm:$0xff]
    %v2557 = vunpack.c.l.bf16 %v2553
    %v2558 = vunpack.c.h.bf16 %v2553
    %v2559 = vunpack.c.l.bf16 %v2554
    %v2560 = vunpack.c.h.bf16 %v2554
    %v2561 = vunpack.c.l.bf16 %v2555
    %v2562 = vunpack.c.h.bf16 %v2555
    %v2563 = vunpack.c.l.bf16 %v2556
    %v2564 = vunpack.c.h.bf16 %v2556
    %v2565 = vpack.c.bf16 %v2389, %v2388
    %2566 = vmatprep.subr.bf16.mxu0 %v596
    %2567 = vmatpush1.bf16.msra.mxu0 %v595
    %2568 = vmatprep.subr.bf16.mxu0 %v600
    %2569 = vmatpush1.bf16.msra.mxu0 %v599
    %2570 = vmatprep.subr.bf16.mxu0 %v604
    %2571 = vmatpush1.bf16.msra.mxu0 %v603
    %2572 = vmatprep.subr.bf16.mxu0 %v608
    %2573 = vmatpush1.bf16.msra.mxu0 %v607
    %2574 = vmatprep.subr.bf16.mxu0 %v612
    %2575 = vmatpush1.bf16.msra.mxu0 %v611
    %2576 = vmatprep.subr.bf16.mxu0 %v616
    %2577 = vmatpush1.bf16.msra.mxu0 %v615
    %2578 = vmatprep.subr.bf16.mxu0 %v620
    %2579 = vmatpush1.bf16.msra.mxu0 %v619
    %2580 = vmatprep.subr.bf16.mxu0 %v624
    %2581 = vmatpush1.bf16.msra.mxu0 %v623
    %2582 = vmatprep.subr.bf16.mxu0 0
    %2583 = vmatpush1.bf16.msra.mxu0 0
    %2584 = vmatprep.subr.bf16.mxu0 0
    %2585 = vmatpush1.bf16.msra.mxu0 0
    %2586 = vmatprep.subr.bf16.mxu0 0
    %2587 = vmatpush1.bf16.msra.mxu0 0
    %2588 = vmatprep.subr.bf16.mxu0 0
    %2589 = vmatpush1.bf16.msra.mxu0 0
    %2590 = vmatprep.subr.bf16.mxu0 0
    %2591 = vmatpush1.bf16.msra.mxu0 0
    %2592 = vmatprep.subr.bf16.mxu0 0
    %2593 = vmatpush1.bf16.msra.mxu0 0
    %2594 = vmatprep.subr.bf16.mxu0 0
    %2595 = vmatpush1.bf16.msra.mxu0 0
    %2596 = vmatprep.subr.bf16.mxu0 0
    %2597 = vmatpush1.bf16.msra.mxu0 0
    %2598 = vmatprep.mubr.bf16.mxu0 0
    %2599 = vmatmul.mubr.bf16.gmra.mrb[0].mxu0 %v2565
    %v2600 = vpop.f32.mrb[0].mxu0
    %v2601 = vadd.f32 0.0, %v2600
    %v2602 = vpop.f32.mrb[0].mxu0
    %v2603 = vadd.f32 0.0, %v2602
    %v2604 = vpop.f32.mrb[0].mxu0
    %v2605 = vadd.f32 0.0, %v2604
    %v2606 = vpop.f32.mrb[0].mxu0
    %v2607 = vadd.f32 0.0, %v2606
    %2608 = vdwg.mxu0
    %2609 = vmatprep.subr.bf16.mxu0 %v598
    %2610 = vmatpush1.bf16.msra.mxu0 %v597
    %2611 = vmatprep.subr.bf16.mxu0 %v602
    %2612 = vmatpush1.bf16.msra.mxu0 %v601
    %2613 = vmatprep.subr.bf16.mxu0 %v606
    %2614 = vmatpush1.bf16.msra.mxu0 %v605
    %2615 = vmatprep.subr.bf16.mxu0 %v610
    %2616 = vmatpush1.bf16.msra.mxu0 %v609
    %2617 = vmatprep.subr.bf16.mxu0 %v614
    %2618 = vmatpush1.bf16.msra.mxu0 %v613
    %2619 = vmatprep.subr.bf16.mxu0 %v618
    %2620 = vmatpush1.bf16.msra.mxu0 %v617
    %2621 = vmatprep.subr.bf16.mxu0 %v622
    %2622 = vmatpush1.bf16.msra.mxu0 %v621
    %2623 = vmatprep.subr.bf16.mxu0 %v626
    %2624 = vmatpush1.bf16.msra.mxu0 %v625
    %2625 = vmatprep.subr.bf16.mxu0 0
    %2626 = vmatpush1.bf16.msra.mxu0 0
    %2627 = vmatprep.subr.bf16.mxu0 0
    %2628 = vmatpush1.bf16.msra.mxu0 0
    %2629 = vmatprep.subr.bf16.mxu0 0
    %2630 = vmatpush1.bf16.msra.mxu0 0
    %2631 = vmatprep.subr.bf16.mxu0 0
    %2632 = vmatpush1.bf16.msra.mxu0 0
    %2633 = vmatprep.subr.bf16.mxu0 0
    %2634 = vmatpush1.bf16.msra.mxu0 0
    %2635 = vmatprep.subr.bf16.mxu0 0
    %2636 = vmatpush1.bf16.msra.mxu0 0
    %2637 = vmatprep.subr.bf16.mxu0 0
    %2638 = vmatpush1.bf16.msra.mxu0 0
    %2639 = vmatprep.subr.bf16.mxu0 0
    %2640 = vmatpush1.bf16.msra.mxu0 0
    %2641 = vmatprep.mubr.bf16.mxu0 0
    %2642 = vmatmul.mubr.bf16.gmra.mrb[0].mxu0 %v2565
    %v2643 = vpop.f32.mrb[0].mxu0
    %v2644 = vadd.f32 0.0, %v2643
    %v2645 = vpop.f32.mrb[0].mxu0
    %v2646 = vadd.f32 0.0, %v2645
    %v2647 = vpop.f32.mrb[0].mxu0
    %v2648 = vadd.f32 0.0, %v2647
    %v2649 = vpop.f32.mrb[0].mxu0
    %v2650 = vadd.f32 0.0, %v2649
    %2651 = vdwg.mxu0
    %v2652 = vadd.f32 %v2557, %v2601
    %v2653 = vadd.f32 %v2558, %v2603
    %v2654 = vadd.f32 %v2559, %v2644
    %v2655 = vadd.f32 %v2560, %v2646
    %v2656 = vadd.f32 %v2561, %v2605
    %v2657 = vadd.f32 %v2562, %v2607
    %v2658 = vadd.f32 %v2563, %v2648
    %v2659 = vadd.f32 %v2564, %v2650
    %v2660 = vxor.u32 %v2652, 2147483648
    %v2661 = vxor.u32 %v2656, 2147483648
    %v2662 = vmul.f32 %v2660, 1.442695
    %v2663 = vpow.pop %v2662
    %v2664 = vmul.f32 %v2661, 1.442695
    %v2665 = vpow.pop %v2664
    %v2666 = vadd.f32 %v2663, 1.0
    %v2667 = vadd.f32 %v2665, 1.0
    %v2668 = vrcp.pop %v2666
    %v2669 = vmul.f32 1.0, %v2668
    %v2670 = vrcp.pop %v2667
    %v2671 = vmul.f32 1.0, %v2670
    %v2672 = vxor.u32 %v2653, 2147483648
    %v2673 = vxor.u32 %v2657, 2147483648
    %v2674 = vmul.f32 %v2672, 1.442695
    %v2675 = vpow.pop %v2674
    %v2676 = vmul.f32 %v2673, 1.442695
    %v2677 = vpow.pop %v2676
    %v2678 = vadd.f32 %v2675, 1.0
    %v2679 = vadd.f32 %v2677, 1.0
    %v2680 = vrcp.pop %v2678
    %v2681 = vmul.f32 1.0, %v2680
    %v2682 = vrcp.pop %v2679
    %v2683 = vmul.f32 1.0, %v2682
    %v2684 = vtanh.pop %v2654
    %v2685 = vtanh.pop %v2658
    %v2686 = vxor.u32 %v2655, 2147483648
    %v2687 = vxor.u32 %v2659, 2147483648
    %v2688 = vmul.f32 %v2686, 1.442695
    %v2689 = vpow.pop %v2688
    %v2690 = vmul.f32 %v2687, 1.442695
    %v2691 = vpow.pop %v2690
    %v2692 = vadd.f32 %v2689, 1.0
    %v2693 = vadd.f32 %v2691, 1.0
    %v2694 = vrcp.pop %v2692
    %v2695 = vmul.f32 1.0, %v2694
    %v2696 = vrcp.pop %v2693
    %v2697 = vmul.f32 1.0, %v2696
    %v2698 = vmul.f32 %v2681, %v2384
    %v2699 = vmul.f32 %v2683, %v2385
    %v2700 = vmul.f32 %v2669, %v2684
    %v2701 = vmul.f32 %v2671, %v2685
    %v2702 = vadd.f32 %v2698, %v2700
    %v2703 = vadd.f32 %v2699, %v2701
    %v2704 = vtanh.pop %v2702
    %v2705 = vtanh.pop %v2703
    %v2706 = vmul.f32 %v2695, %v2704
    %v2707 = vmul.f32 %v2697, %v2705
    %s2708 = scalar_lea.vmem [#allocation14], 96
    %2709 = vst [vmem:[%s2708] sm:$0xff] %v2550
    %2710 = vst [vmem:[%s2708 + $0x8] sm:$0xff] %v2551
    %s2711 = scalar_lea.vmem [#allocation15], 16
    %2712 = vst [vmem:[%s2711] sm:$0xff] %v2706
    %2713 = vst [vmem:[%s2711 + $0x8] sm:$0xff] %v2707
    %s2714 = scalar_lea.vmem [#allocation6], 224
    %v2715 = vld [vmem:[%s2714] sm:$0xff]
    %v2716 = vld [vmem:[%s2714 + $0x8] sm:$0xff]
    %v2717 = vld [vmem:[%s2714 + $0x10] sm:$0xff]
    %v2718 = vld [vmem:[%s2714 + $0x18] sm:$0xff]
    %v2719 = vunpack.c.l.bf16 %v2715
    %v2720 = vunpack.c.h.bf16 %v2715
    %v2721 = vunpack.c.l.bf16 %v2716
    %v2722 = vunpack.c.h.bf16 %v2716
    %v2723 = vunpack.c.l.bf16 %v2717
    %v2724 = vunpack.c.h.bf16 %v2717
    %v2725 = vunpack.c.l.bf16 %v2718
    %v2726 = vunpack.c.h.bf16 %v2718
    %v2727 = vpack.c.bf16 %v2551, %v2550
    %2728 = vmatprep.subr.bf16.mxu0 %v280
    %2729 = vmatpush1.bf16.msra.mxu0 %v279
    %2730 = vmatprep.subr.bf16.mxu0 %v284
    %2731 = vmatpush1.bf16.msra.mxu0 %v283
    %2732 = vmatprep.subr.bf16.mxu0 %v288
    %2733 = vmatpush1.bf16.msra.mxu0 %v287
    %2734 = vmatprep.subr.bf16.mxu0 %v292
    %2735 = vmatpush1.bf16.msra.mxu0 %v291
    %2736 = vmatprep.subr.bf16.mxu0 %v296
    %2737 = vmatpush1.bf16.msra.mxu0 %v295
    %2738 = vmatprep.subr.bf16.mxu0 %v300
    %2739 = vmatpush1.bf16.msra.mxu0 %v299
    %2740 = vmatprep.subr.bf16.mxu0 %v304
    %2741 = vmatpush1.bf16.msra.mxu0 %v303
    %2742 = vmatprep.subr.bf16.mxu0 %v308
    %2743 = vmatpush1.bf16.msra.mxu0 %v307
    %2744 = vmatprep.subr.bf16.mxu0 0
    %2745 = vmatpush1.bf16.msra.mxu0 0
    %2746 = vmatprep.subr.bf16.mxu0 0
    %2747 = vmatpush1.bf16.msra.mxu0 0
    %2748 = vmatprep.subr.bf16.mxu0 0
    %2749 = vmatpush1.bf16.msra.mxu0 0
    %2750 = vmatprep.subr.bf16.mxu0 0
    %2751 = vmatpush1.bf16.msra.mxu0 0
    %2752 = vmatprep.subr.bf16.mxu0 0
    %2753 = vmatpush1.bf16.msra.mxu0 0
    %2754 = vmatprep.subr.bf16.mxu0 0
    %2755 = vmatpush1.bf16.msra.mxu0 0
    %2756 = vmatprep.subr.bf16.mxu0 0
    %2757 = vmatpush1.bf16.msra.mxu0 0
    %2758 = vmatprep.subr.bf16.mxu0 0
    %2759 = vmatpush1.bf16.msra.mxu0 0
    %2760 = vmatprep.mubr.bf16.mxu0 0
    %2761 = vmatmul.mubr.bf16.gmra.mrb[0].mxu0 %v2727
    %v2762 = vpop.f32.mrb[0].mxu0
    %v2763 = vadd.f32 0.0, %v2762
    %v2764 = vpop.f32.mrb[0].mxu0
    %v2765 = vadd.f32 0.0, %v2764
    %v2766 = vpop.f32.mrb[0].mxu0
    %v2767 = vadd.f32 0.0, %v2766
    %v2768 = vpop.f32.mrb[0].mxu0
    %v2769 = vadd.f32 0.0, %v2768
    %2770 = vdwg.mxu0
    %2771 = vmatprep.subr.bf16.mxu0 %v282
    %2772 = vmatpush1.bf16.msra.mxu0 %v281
    %2773 = vmatprep.subr.bf16.mxu0 %v286
    %2774 = vmatpush1.bf16.msra.mxu0 %v285
    %2775 = vmatprep.subr.bf16.mxu0 %v290
    %2776 = vmatpush1.bf16.msra.mxu0 %v289
    %2777 = vmatprep.subr.bf16.mxu0 %v294
    %2778 = vmatpush1.bf16.msra.mxu0 %v293
    %2779 = vmatprep.subr.bf16.mxu0 %v298
    %2780 = vmatpush1.bf16.msra.mxu0 %v297
    %2781 = vmatprep.subr.bf16.mxu0 %v302
    %2782 = vmatpush1.bf16.msra.mxu0 %v301
    %2783 = vmatprep.subr.bf16.mxu0 %v306
    %2784 = vmatpush1.bf16.msra.mxu0 %v305
    %2785 = vmatprep.subr.bf16.mxu0 %v310
    %2786 = vmatpush1.bf16.msra.mxu0 %v309
    %2787 = vmatprep.subr.bf16.mxu0 0
    %2788 = vmatpush1.bf16.msra.mxu0 0
    %2789 = vmatprep.subr.bf16.mxu0 0
    %2790 = vmatpush1.bf16.msra.mxu0 0
    %2791 = vmatprep.subr.bf16.mxu0 0
    %2792 = vmatpush1.bf16.msra.mxu0 0
    %2793 = vmatprep.subr.bf16.mxu0 0
    %2794 = vmatpush1.bf16.msra.mxu0 0
    %2795 = vmatprep.subr.bf16.mxu0 0
    %2796 = vmatpush1.bf16.msra.mxu0 0
    %2797 = vmatprep.subr.bf16.mxu0 0
    %2798 = vmatpush1.bf16.msra.mxu0 0
    %2799 = vmatprep.subr.bf16.mxu0 0
    %2800 = vmatpush1.bf16.msra.mxu0 0
    %2801 = vmatprep.subr.bf16.mxu0 0
    %2802 = vmatpush1.bf16.msra.mxu0 0
    %2803 = vmatprep.mubr.bf16.mxu0 0
    %2804 = vmatmul.mubr.bf16.gmra.mrb[0].mxu0 %v2727
    %v2805 = vpop.f32.mrb[0].mxu0
    %v2806 = vadd.f32 0.0, %v2805
    %v2807 = vpop.f32.mrb[0].mxu0
    %v2808 = vadd.f32 0.0, %v2807
    %v2809 = vpop.f32.mrb[0].mxu0
    %v2810 = vadd.f32 0.0, %v2809
    %v2811 = vpop.f32.mrb[0].mxu0
    %v2812 = vadd.f32 0.0, %v2811
    %2813 = vdwg.mxu0
    %v2814 = vadd.f32 %v2719, %v2763
    %v2815 = vadd.f32 %v2720, %v2765
    %v2816 = vadd.f32 %v2721, %v2806
    %v2817 = vadd.f32 %v2722, %v2808
    %v2818 = vadd.f32 %v2723, %v2767
    %v2819 = vadd.f32 %v2724, %v2769
    %v2820 = vadd.f32 %v2725, %v2810
    %v2821 = vadd.f32 %v2726, %v2812
    %v2822 = vxor.u32 %v2814, 2147483648
    %v2823 = vxor.u32 %v2818, 2147483648
    %v2824 = vmul.f32 %v2822, 1.442695
    %v2825 = vpow.pop %v2824
    %v2826 = vmul.f32 %v2823, 1.442695
    %v2827 = vpow.pop %v2826
    %v2828 = vadd.f32 %v2825, 1.0
    %v2829 = vadd.f32 %v2827, 1.0
    %v2830 = vrcp.pop %v2828
    %v2831 = vmul.f32 1.0, %v2830
    %v2832 = vrcp.pop %v2829
    %v2833 = vmul.f32 1.0, %v2832
    %v2834 = vxor.u32 %v2815, 2147483648
    %v2835 = vxor.u32 %v2819, 2147483648
    %v2836 = vmul.f32 %v2834, 1.442695
    %v2837 = vpow.pop %v2836
    %v2838 = vmul.f32 %v2835, 1.442695
    %v2839 = vpow.pop %v2838
    %v2840 = vadd.f32 %v2837, 1.0
    %v2841 = vadd.f32 %v2839, 1.0
    %v2842 = vrcp.pop %v2840
    %v2843 = vmul.f32 1.0, %v2842
    %v2844 = vrcp.pop %v2841
    %v2845 = vmul.f32 1.0, %v2844
    %v2846 = vtanh.pop %v2816
    %v2847 = vtanh.pop %v2820
    %v2848 = vxor.u32 %v2817, 2147483648
    %v2849 = vxor.u32 %v2821, 2147483648
    %v2850 = vmul.f32 %v2848, 1.442695
    %v2851 = vpow.pop %v2850
    %v2852 = vmul.f32 %v2849, 1.442695
    %v2853 = vpow.pop %v2852
    %v2854 = vadd.f32 %v2851, 1.0
    %v2855 = vadd.f32 %v2853, 1.0
    %v2856 = vrcp.pop %v2854
    %v2857 = vmul.f32 1.0, %v2856
    %v2858 = vrcp.pop %v2855
    %v2859 = vmul.f32 1.0, %v2858
    %v2860 = vmul.f32 %v2843, %v2546
    %v2861 = vmul.f32 %v2845, %v2547
    %v2862 = vmul.f32 %v2831, %v2846
    %v2863 = vmul.f32 %v2833, %v2847
    %v2864 = vadd.f32 %v2860, %v2862
    %v2865 = vadd.f32 %v2861, %v2863
    %v2866 = vtanh.pop %v2864
    %v2867 = vtanh.pop %v2865
    %v2868 = vmul.f32 %v2857, %v2866
    %v2869 = vmul.f32 %v2859, %v2867
    %v2870 = vld [vmem:[#allocation9] sm:$0xff]
    %v2871 = vld [vmem:[#allocation9 + $0x8] sm:$0xff]
    %v2872 = vld [vmem:[#allocation9 + $0x10] sm:$0xff]
    %v2873 = vld [vmem:[#allocation9 + $0x18] sm:$0xff]
    %v2874 = vunpack.c.l.bf16 %v2870
    %v2875 = vunpack.c.h.bf16 %v2870
    %v2876 = vunpack.c.l.bf16 %v2871
    %v2877 = vunpack.c.h.bf16 %v2871
    %v2878 = vunpack.c.l.bf16 %v2872
    %v2879 = vunpack.c.h.bf16 %v2872
    %v2880 = vunpack.c.l.bf16 %v2873
    %v2881 = vunpack.c.h.bf16 %v2873
    %v2882 = vpack.c.bf16 %v2707, %v2706
    %2883 = vmatprep.subr.bf16.mxu0 %v596
    %2884 = vmatpush1.bf16.msra.mxu0 %v595
    %2885 = vmatprep.subr.bf16.mxu0 %v600
    %2886 = vmatpush1.bf16.msra.mxu0 %v599
    %2887 = vmatprep.subr.bf16.mxu0 %v604
    %2888 = vmatpush1.bf16.msra.mxu0 %v603
    %2889 = vmatprep.subr.bf16.mxu0 %v608
    %2890 = vmatpush1.bf16.msra.mxu0 %v607
    %2891 = vmatprep.subr.bf16.mxu0 %v612
    %2892 = vmatpush1.bf16.msra.mxu0 %v611
    %2893 = vmatprep.subr.bf16.mxu0 %v616
    %2894 = vmatpush1.bf16.msra.mxu0 %v615
    %2895 = vmatprep.subr.bf16.mxu0 %v620
    %2896 = vmatpush1.bf16.msra.mxu0 %v619
    %2897 = vmatprep.subr.bf16.mxu0 %v624
    %2898 = vmatpush1.bf16.msra.mxu0 %v623
    %2899 = vmatprep.subr.bf16.mxu0 0
    %2900 = vmatpush1.bf16.msra.mxu0 0
    %2901 = vmatprep.subr.bf16.mxu0 0
    %2902 = vmatpush1.bf16.msra.mxu0 0
    %2903 = vmatprep.subr.bf16.mxu0 0
    %2904 = vmatpush1.bf16.msra.mxu0 0
    %2905 = vmatprep.subr.bf16.mxu0 0
    %2906 = vmatpush1.bf16.msra.mxu0 0
    %2907 = vmatprep.subr.bf16.mxu0 0
    %2908 = vmatpush1.bf16.msra.mxu0 0
    %2909 = vmatprep.subr.bf16.mxu0 0
    %2910 = vmatpush1.bf16.msra.mxu0 0
    %2911 = vmatprep.subr.bf16.mxu0 0
    %2912 = vmatpush1.bf16.msra.mxu0 0
    %2913 = vmatprep.subr.bf16.mxu0 0
    %2914 = vmatpush1.bf16.msra.mxu0 0
    %2915 = vmatprep.mubr.bf16.mxu0 0
    %2916 = vmatmul.mubr.bf16.gmra.mrb[0].mxu0 %v2882
    %v2917 = vpop.f32.mrb[0].mxu0
    %v2918 = vadd.f32 0.0, %v2917
    %v2919 = vpop.f32.mrb[0].mxu0
    %v2920 = vadd.f32 0.0, %v2919
    %v2921 = vpop.f32.mrb[0].mxu0
    %v2922 = vadd.f32 0.0, %v2921
    %v2923 = vpop.f32.mrb[0].mxu0
    %v2924 = vadd.f32 0.0, %v2923
    %2925 = vdwg.mxu0
    %2926 = vmatprep.subr.bf16.mxu0 %v598
    %2927 = vmatpush1.bf16.msra.mxu0 %v597
    %2928 = vmatprep.subr.bf16.mxu0 %v602
    %2929 = vmatpush1.bf16.msra.mxu0 %v601
    %2930 = vmatprep.subr.bf16.mxu0 %v606
    %2931 = vmatpush1.bf16.msra.mxu0 %v605
    %2932 = vmatprep.subr.bf16.mxu0 %v610
    %2933 = vmatpush1.bf16.msra.mxu0 %v609
    %2934 = vmatprep.subr.bf16.mxu0 %v614
    %2935 = vmatpush1.bf16.msra.mxu0 %v613
    %2936 = vmatprep.subr.bf16.mxu0 %v618
    %2937 = vmatpush1.bf16.msra.mxu0 %v617
    %2938 = vmatprep.subr.bf16.mxu0 %v622
    %2939 = vmatpush1.bf16.msra.mxu0 %v621
    %2940 = vmatprep.subr.bf16.mxu0 %v626
    %2941 = vmatpush1.bf16.msra.mxu0 %v625
    %2942 = vmatprep.subr.bf16.mxu0 0
    %2943 = vmatpush1.bf16.msra.mxu0 0
    %2944 = vmatprep.subr.bf16.mxu0 0
    %2945 = vmatpush1.bf16.msra.mxu0 0
    %2946 = vmatprep.subr.bf16.mxu0 0
    %2947 = vmatpush1.bf16.msra.mxu0 0
    %2948 = vmatprep.subr.bf16.mxu0 0
    %2949 = vmatpush1.bf16.msra.mxu0 0
    %2950 = vmatprep.subr.bf16.mxu0 0
    %2951 = vmatpush1.bf16.msra.mxu0 0
    %2952 = vmatprep.subr.bf16.mxu0 0
    %2953 = vmatpush1.bf16.msra.mxu0 0
    %2954 = vmatprep.subr.bf16.mxu0 0
    %2955 = vmatpush1.bf16.msra.mxu0 0
    %2956 = vmatprep.subr.bf16.mxu0 0
    %2957 = vmatpush1.bf16.msra.mxu0 0
    %2958 = vmatprep.mubr.bf16.mxu0 0
    %2959 = vmatmul.mubr.bf16.gmra.mrb[0].mxu0 %v2882
    %v2960 = vpop.f32.mrb[0].mxu0
    %v2961 = vadd.f32 0.0, %v2960
    %v2962 = vpop.f32.mrb[0].mxu0
    %v2963 = vadd.f32 0.0, %v2962
    %v2964 = vpop.f32.mrb[0].mxu0
    %v2965 = vadd.f32 0.0, %v2964
    %v2966 = vpop.f32.mrb[0].mxu0
    %v2967 = vadd.f32 0.0, %v2966
    %2968 = vdwg.mxu0
    %v2969 = vadd.f32 %v2874, %v2918
    %v2970 = vadd.f32 %v2875, %v2920
    %v2971 = vadd.f32 %v2876, %v2961
    %v2972 = vadd.f32 %v2877, %v2963
    %v2973 = vadd.f32 %v2878, %v2922
    %v2974 = vadd.f32 %v2879, %v2924
    %v2975 = vadd.f32 %v2880, %v2965
    %v2976 = vadd.f32 %v2881, %v2967
    %v2977 = vxor.u32 %v2969, 2147483648
    %v2978 = vxor.u32 %v2973, 2147483648
    %v2979 = vmul.f32 %v2977, 1.442695
    %v2980 = vpow.pop %v2979
    %v2981 = vmul.f32 %v2978, 1.442695
    %v2982 = vpow.pop %v2981
    %v2983 = vadd.f32 %v2980, 1.0
    %v2984 = vadd.f32 %v2982, 1.0
    %v2985 = vrcp.pop %v2983
    %v2986 = vmul.f32 1.0, %v2985
    %v2987 = vrcp.pop %v2984
    %v2988 = vmul.f32 1.0, %v2987
    %v2989 = vxor.u32 %v2970, 2147483648
    %v2990 = vxor.u32 %v2974, 2147483648
    %v2991 = vmul.f32 %v2989, 1.442695
    %v2992 = vpow.pop %v2991
    %v2993 = vmul.f32 %v2990, 1.442695
    %v2994 = vpow.pop %v2993
    %v2995 = vadd.f32 %v2992, 1.0
    %v2996 = vadd.f32 %v2994, 1.0
    %v2997 = vrcp.pop %v2995
    %v2998 = vmul.f32 1.0, %v2997
    %v2999 = vrcp.pop %v2996
    %v3000 = vmul.f32 1.0, %v2999
    %v3001 = vtanh.pop %v2971
    %v3002 = vtanh.pop %v2975
    %v3003 = vxor.u32 %v2972, 2147483648
    %v3004 = vxor.u32 %v2976, 2147483648
    %v3005 = vmul.f32 %v3003, 1.442695
    %v3006 = vpow.pop %v3005
    %v3007 = vmul.f32 %v3004, 1.442695
    %v3008 = vpow.pop %v3007
    %v3009 = vadd.f32 %v3006, 1.0
    %v3010 = vadd.f32 %v3008, 1.0
    %v3011 = vrcp.pop %v3009
    %v3012 = vmul.f32 1.0, %v3011
    %v3013 = vrcp.pop %v3010
    %v3014 = vmul.f32 1.0, %v3013
    %v3015 = vmul.f32 %v2998, %v2702
    %v3016 = vmul.f32 %v3000, %v2703
    %v3017 = vmul.f32 %v2986, %v3001
    %v3018 = vmul.f32 %v2988, %v3002
    %v3019 = vadd.f32 %v3015, %v3017
    %v3020 = vadd.f32 %v3016, %v3018
    %v3021 = vtanh.pop %v3019
    %v3022 = vtanh.pop %v3020
    %v3023 = vmul.f32 %v3012, %v3021
    %v3024 = vmul.f32 %v3014, %v3022
    %s3025 = scalar_lea.vmem [#allocation14], 112
    %3026 = vst [vmem:[%s3025] sm:$0xff] %v2868
    %3027 = vst [vmem:[%s3025 + $0x8] sm:$0xff] %v2869
    %3028 = vst [vmem:[#allocation15] sm:$0xff] %v3023
    %3029 = vst [vmem:[#allocation15 + $0x8] sm:$0xff] %v3024
    %3030 = vst [vmem:[#allocation2] sm:$0xff] %v2868
    %3031 = vst [vmem:[#allocation2 + $0x8] sm:$0xff] %v2869
    %3032 = vst [vmem:[#allocation3] sm:$0xff] %v2864
    %3033 = vst [vmem:[#allocation3 + $0x8] sm:$0xff] %v2865
    %3034 = vst [vmem:[#allocation4] sm:$0xff] %v3023
    %3035 = vst [vmem:[#allocation4 + $0x8] sm:$0xff] %v3024
    %3036 = vst [vmem:[#allocation5] sm:$0xff] %v3019
    %3037 = vst [vmem:[#allocation5 + $0x8] sm:$0xff] %v3020
    // Predicated region
    $region38: #{tpu_custom_call.1} parent=1 // pred_check
      _
    $region39: #{tpu_custom_call.1} parent=1 // pred_check_branch
      %3039 = sbr.rel (0) target = $region41
    $region40: #{tpu_custom_call.1} parent=1 // pred_region
      %s3041 = ssub.s32 2048, 2048
      %3042 = vsyncadd [#allocation8], %s3041
      %s3043 = sshll.u32 [#allocation14], 4
      %s3044 = int_to_ptr.vmem [resolvable:$true] %s3043
      %3049 = dma.vmem_to_hbm [thread:$0]  %s3044, 2048, %s4, [#allocation8], 128, 128, 8
    $region41: #{tpu_custom_call.1} parent=1 // pred_fallthru
      _
    // Predicated region
    $region42: #{tpu_custom_call.1} parent=1 // pred_check
      _
    $region43: #{tpu_custom_call.1} parent=1 // pred_check_branch
      %3051 = sbr.rel (0) target = $region45
    $region44: #{tpu_custom_call.1} parent=1 // pred_region
      %s3052 = ssub.s32 0, 0
      %s3053 = smul.u32 8, %s3052
      %s3055 = ssub.s32 2048, 2048
      %3056 = vsyncadd [#allocation16], %s3055
      %s3057 = smul.addr %s3053, 2
      %s3058 = smul.addr %s3057, 128
      %s3059 = scalar_lea.hbm %s5, %s3058
      %s3060 = sshll.u32 [#allocation15], 4
      %s3061 = int_to_ptr.vmem [resolvable:$true] %s3060
      %3066 = dma.vmem_to_hbm [thread:$0]  %s3061, 2048, %s3059, [#allocation16], 128, 128, 8
    $region45: #{tpu_custom_call.1} parent=1 // pred_fallthru
      _
    // Predicated region
    $region46: #{tpu_custom_call.1} parent=1 // pred_check
      _
    $region47: #{tpu_custom_call.1} parent=1 // pred_check_branch
      %3068 = sbr.rel (0) target = $region49
    $region48: #{tpu_custom_call.1} parent=1 // pred_region
      %3069 = dma.done [#allocation8], 2048
    $region49: #{tpu_custom_call.1} parent=1 // pred_fallthru
      _
    // Predicated region
    $region50: #{tpu_custom_call.1} parent=1 // pred_check
      _
    $region51: #{tpu_custom_call.1} parent=1 // pred_check_branch
      %3071 = sbr.rel (0) target = $region53
    $region52: #{tpu_custom_call.1} parent=1 // pred_region
      %3072 = dma.done [#allocation16], 2048
    $region53: #{tpu_custom_call.1} parent=1 // pred_fallthru
      _
    %3073 = vsyncpa [#allocation7], 1
    %3074 = vsyncpa [#allocation10], 1
    %3075 = vsyncpa [#allocation13], 1
    %3076 = vsyncpa [#allocation8], 1
    %3077 = vsyncpa [#allocation16], 1

</llo_original>
